<compile_context>
chip_gen: v7x
topology: tpu7x:2x2x1
jax: 0.10.0
libtpu: 0.0.40
codegen_flags: <defaults>
</compile_context>

<pallas_src>
import functools
import math

import jax
import jax.numpy as jnp
from jax.experimental import pallas as pl
from jax.experimental.pallas import tpu as pltpu

ROW_TILE_CAP = 512   # row tile for 2-D slab kernels (multiple of 8 and 128)
Q_TILE_CAP = 256     # query-row tile for attention


def _row_tile(n, cap=ROW_TILE_CAP):
    # Full extent if it fits, else a (8,128)-aligned cap; Pallas clamps the last
    # block, and every kernel here is pure per-row, so clamping is safe.
    return n if n <= cap else cap


# ----------------------------------------------------------------------------
# In-kernel math helpers
# ----------------------------------------------------------------------------
def _erf_f32(x):
    # Eigen / XLA float32 erf rational approximation (matches torch.erf in f32).
    x = jnp.clip(x, -3.832506856900711, 3.832506856900711)
    x2 = x * x
    p = jnp.float32(-2.72614225801306e-10)
    p = p * x2 + jnp.float32(2.77068142495902e-08)
    p = p * x2 + jnp.float32(-2.10102402082508e-06)
    p = p * x2 + jnp.float32(-5.69250639462346e-05)
    p = p * x2 + jnp.float32(-7.34990630326855e-04)
    p = p * x2 + jnp.float32(-2.95459980854025e-03)
    p = p * x2 + jnp.float32(-1.60960333262415e-02)
    p = p * x
    q = jnp.float32(-1.45660718464996e-05)
    q = q * x2 + jnp.float32(-2.13374055278905e-04)
    q = q * x2 + jnp.float32(-1.68282697438203e-03)
    q = q * x2 + jnp.float32(-7.37332916720468e-03)
    q = q * x2 + jnp.float32(-1.42647390514189e-02)
    return p / q


def _layernorm(x, g, b):
    mean = jnp.mean(x, axis=-1, keepdims=True)
    xc = x - mean
    var = jnp.mean(xc * xc, axis=-1, keepdims=True)
    return xc * jax.lax.rsqrt(var + 1e-5) * g + b


# ----------------------------------------------------------------------------
# Kernels
# ----------------------------------------------------------------------------
def _ln_matmul_kernel(x_ref, g_ref, b_ref, w_ref, o_ref):
    # LayerNorm(eps=1e-5) fused with a bias-less projection: LN(x) @ W.
    xn = _layernorm(x_ref[...].astype(jnp.float32), g_ref[...], b_ref[...])
    o_ref[...] = jnp.dot(xn, w_ref[...],
                         preferred_element_type=jnp.float32).astype(o_ref.dtype)


def _matmul_kernel(x_ref, w_ref, o_ref):
    # Bias-less projection (kv from `line`).
    o_ref[...] = jnp.dot(x_ref[...], w_ref[...],
                         preferred_element_type=jnp.float32).astype(o_ref.dtype)


def _linear_residual_kernel(x_ref, w_ref, b_ref, r_ref, o_ref):
    # Output projection + bias + residual add, fused.
    acc = jnp.dot(x_ref[...], w_ref[...], preferred_element_type=jnp.float32)
    o_ref[...] = (acc + b_ref[...] + r_ref[...].astype(jnp.float32)).astype(o_ref.dtype)


def _geglu_ffn_kernel(x_ref, g_ref, b_ref, wx_ref, bx_ref, wg_ref, bg_ref, o_ref):
    # LayerNorm + Linear(dim, 8*dim) (split into aligned halves) + exact GELU gate.
    xn = _layernorm(x_ref[...].astype(jnp.float32), g_ref[...], b_ref[...])
    a = jnp.dot(xn, wx_ref[...], preferred_element_type=jnp.float32) + bx_ref[...]
    gt = jnp.dot(xn, wg_ref[...], preferred_element_type=jnp.float32) + bg_ref[...]
    gelu = 0.5 * gt * (1.0 + _erf_f32(gt * 0.7071067811865476))   # exact (erf) GELU
    o_ref[...] = (a * gelu).astype(o_ref.dtype)


def _attention_kernel(q_ref, k_ref, v_ref, o_ref, *, n_heads, head_dim, scale):
    # q block: (1, tq, H*D); k/v blocks: (1, Sk, H*D).  Heads are sliced from the
    # lane dimension in-register — no host-side (B,H,S,D) relayouts.
    q = q_ref[0].astype(jnp.float32)
    k = k_ref[0].astype(jnp.float32)
    v = v_ref[0].astype(jnp.float32)
    outs = []
    for h in range(n_heads):
        lo = h * head_dim
        hi = lo + head_dim
        qh = q[:, lo:hi]
        kh = k[:, lo:hi]
        vh = v[:, lo:hi]
        s = jax.lax.dot_general(qh, kh, (((1,), (1,)), ((), ())),
                                preferred_element_type=jnp.float32) * scale
        m = jnp.max(s, axis=-1, keepdims=True)
        p = jnp.exp(s - m)
        l = jnp.sum(p, axis=-1, keepdims=True)
        o = jnp.dot(p, vh, preferred_element_type=jnp.float32)
        outs.append(o * pl.reciprocal(l, approx=True))
    o_ref[0] = jnp.concatenate(outs, axis=-1).astype(o_ref.dtype)


# ----------------------------------------------------------------------------
# pallas_call wrappers
# ----------------------------------------------------------------------------
_PARALLEL_1D = pltpu.CompilerParams(dimension_semantics=("parallel",))


def ln_matmul(x2d, gamma, beta, w):
    n, d = x2d.shape
    m = w.shape[1]
    rt = _row_tile(n)
    return pl.pallas_call(
        _ln_matmul_kernel,
        out_shape=jax.ShapeDtypeStruct((n, m), x2d.dtype),
        grid=(pl.cdiv(n, rt),),
        in_specs=[pl.BlockSpec((rt, d), lambda i: (i, 0)),
                  pl.BlockSpec((1, d), lambda i: (0, 0)),
                  pl.BlockSpec((1, d), lambda i: (0, 0)),
                  pl.BlockSpec((d, m), lambda i: (0, 0))],
        out_specs=pl.BlockSpec((rt, m), lambda i: (i, 0)),
        compiler_params=_PARALLEL_1D,
    )(x2d, gamma.reshape(1, d), beta.reshape(1, d), w)


def matmul_nobias(x2d, w):
    n, d = x2d.shape
    m = w.shape[1]
    rt = _row_tile(n)
    return pl.pallas_call(
        _matmul_kernel,
        out_shape=jax.ShapeDtypeStruct((n, m), x2d.dtype),
        grid=(pl.cdiv(n, rt),),
        in_specs=[pl.BlockSpec((rt, d), lambda i: (i, 0)),
                  pl.BlockSpec((d, m), lambda i: (0, 0))],
        out_specs=pl.BlockSpec((rt, m), lambda i: (i, 0)),
        compiler_params=_PARALLEL_1D,
    )(x2d, w)


def linear_residual(x2d, w, b, res2d):
    n, k = x2d.shape
    m = w.shape[1]
    rt = _row_tile(n)
    # Alias residual -> output (dead afterwards).  Only when the tile divides n
    # exactly so clamped (overlapping) last blocks can never race with writeback.
    alias = {3: 0} if (n % rt == 0) else {}
    return pl.pallas_call(
        _linear_residual_kernel,
        out_shape=jax.ShapeDtypeStruct((n, m), res2d.dtype),
        grid=(pl.cdiv(n, rt),),
        in_specs=[pl.BlockSpec((rt, k), lambda i: (i, 0)),
                  pl.BlockSpec((k, m), lambda i: (0, 0)),
                  pl.BlockSpec((1, m), lambda i: (0, 0)),
                  pl.BlockSpec((rt, m), lambda i: (i, 0))],
        out_specs=pl.BlockSpec((rt, m), lambda i: (i, 0)),
        input_output_aliases=alias,
        compiler_params=_PARALLEL_1D,
    )(x2d, w, b.reshape(1, m), res2d)


def geglu_ffn(x2d, gamma, beta, wx, bx, wg, bg):
    n, d = x2d.shape
    m = wx.shape[1]
    rt = _row_tile(n)
    return pl.pallas_call(
        _geglu_ffn_kernel,
        out_shape=jax.ShapeDtypeStruct((n, m), x2d.dtype),
        grid=(pl.cdiv(n, rt),),
        in_specs=[pl.BlockSpec((rt, d), lambda i: (i, 0)),
                  pl.BlockSpec((1, d), lambda i: (0, 0)),
                  pl.BlockSpec((1, d), lambda i: (0, 0)),
                  pl.BlockSpec((d, m), lambda i: (0, 0)),
                  pl.BlockSpec((1, m), lambda i: (0, 0)),
                  pl.BlockSpec((d, m), lambda i: (0, 0)),
                  pl.BlockSpec((1, m), lambda i: (0, 0))],
        out_specs=pl.BlockSpec((rt, m), lambda i: (i, 0)),
        compiler_params=_PARALLEL_1D,
    )(x2d, gamma.reshape(1, d), beta.reshape(1, d),
      wx, bx.reshape(1, m), wg, bg.reshape(1, m))


def attention(q, k, v, n_heads, head_dim):
    # q: (B, Sq, H*D); k/v: (B, Sk, H*D) — all lane-dense, no head transposes.
    b, sq, hd = q.shape
    sk = k.shape[1]
    tq = sq if sq <= Q_TILE_CAP else Q_TILE_CAP
    kern = functools.partial(_attention_kernel, n_heads=n_heads,
                             head_dim=head_dim, scale=1.0 / math.sqrt(head_dim))
    return pl.pallas_call(
        kern,
        out_shape=jax.ShapeDtypeStruct((b, sq, hd), q.dtype),
        grid=(b, pl.cdiv(sq, tq)),
        in_specs=[pl.BlockSpec((1, tq, hd), lambda i, j: (i, j, 0)),
                  pl.BlockSpec((1, sk, hd), lambda i, j: (i, 0, 0)),
                  pl.BlockSpec((1, sk, hd), lambda i, j: (i, 0, 0))],
        out_specs=pl.BlockSpec((1, tq, hd), lambda i, j: (i, j, 0)),
        compiler_params=pltpu.CompilerParams(
            dimension_semantics=("parallel", "parallel")),
    )(q, k, v)


# ----------------------------------------------------------------------------
# Module forward (composition of kernels)
# ----------------------------------------------------------------------------
def cross_attention(x, line, p, n_heads, head_dim):
    """Returns cross_attention(x, line) + x (residual fused into out-proj)."""
    b, s, dm = x.shape
    inner = n_heads * head_dim
    x2 = x.reshape(b * s, dm)
    # Fused LayerNorm + q projection (no bias).
    q2 = ln_matmul(x2, p["ln_g"], p["ln_b"], p["wq"])                  # (B*S, H*D)
    if line is None:
        # Self-attention: kv comes from LN(x) as well (LN fused, no bias).
        kv2 = ln_matmul(x2, p["ln_g"], p["ln_b"], p["wkv"])            # (B*S, 2*H*D)
        sl = s
    else:
        _, sl, _ = line.shape
        kv2 = matmul_nobias(line.reshape(b * sl, dm), p["wkv"])        # (B*Sl, 2*H*D)
    assert sl % 2 == 0, "kv .chunk(2, dim=1) requires an even source sequence"
    kv = kv2.reshape(b, sl, 2 * inner)
    # torch: .chunk(2, dim=1) splits along the *sequence* axis, then
    # reshape(B, -1, H, D) flattens each 2*inner row into two inner-wide tokens,
    # so K and V each keep sequence length sl.  Reproduced exactly:
    k = kv[:, : sl // 2, :].reshape(b, sl, inner)
    v = kv[:, sl // 2:, :].reshape(b, sl, inner)
    q3 = q2.reshape(b, s, inner)
    h = attention(q3, k, v, n_heads, head_dim)                         # (B, S, H*D)
    out = linear_residual(h.reshape(b * s, inner), p["wo"], p["bo"], x2)
    return out.reshape(b, s, dm)


def transformer_block(x, line, params, n_heads, head_dim):
    # x = cross_1(x, None) + x
    x = cross_attention(x, None, params["cross_1"], n_heads, head_dim)
    # x = cross_2(x, line) + x
    x = cross_attention(x, line, params["cross_2"], n_heads, head_dim)
    # x = out(geglu(x)) + x   — LN + proj + erf-GELU gate fused in one kernel.
    b, s, dm = x.shape
    g = params["geglu"]
    half = g["wp"].shape[1] // 2
    gated = geglu_ffn(x.reshape(b * s, dm), g["ln_g"], g["ln_b"],
                      g["wp"][:, :half], g["bp"][:half],
                      g["wp"][:, half:], g["bp"][half:])               # (B*S, 4*dim)
    out = linear_residual(gated, params["wout"], params["bout"], x.reshape(b * s, dm))
    return out.reshape(b, s, dm)


# ----------------------------------------------------------------------------
# Deterministic parameter init (weights stored transposed: (in, out))
# ----------------------------------------------------------------------------
def init_params(key, dim, n_heads, head_dim):
    inner = n_heads * head_dim

    def _w(k, shape, scale=0.05):
        return scale * jax.random.normal(k, shape, jnp.float32)

    def _cross(k0):
        kk = jax.random.split(k0, 6)
        return dict(
            ln_g=1.0 + 0.1 * jax.random.normal(kk[0], (dim,), jnp.float32),
            ln_b=0.1 * jax.random.normal(kk[1], (dim,), jnp.float32),
            wq=_w(kk[2], (dim, inner)),
            wkv=_w(kk[3], (dim, 2 * inner)),
            wo=_w(kk[4], (inner, dim)),
            bo=0.1 * jax.random.normal(kk[5], (dim,), jnp.float32),
        )

    k1, k2, k3, k4, k5, k6, k7, k8 = jax.random.split(key, 8)
    return dict(
        cross_1=_cross(k1),
        cross_2=_cross(k2),
        geglu=dict(
            ln_g=1.0 + 0.1 * jax.random.normal(k3, (dim,), jnp.float32),
            ln_b=0.1 * jax.random.normal(k4, (dim,), jnp.float32),
            wp=_w(k5, (dim, 2 * 4 * dim)),
            bp=0.1 * jax.random.normal(k6, (2 * 4 * dim,), jnp.float32),
        ),
        wout=_w(k7, (4 * dim, dim)),
        bout=0.1 * jax.random.normal(k8, (dim,), jnp.float32),
    )


if __name__ == "__main__":
    dim, n_heads, head_dim = 32, 2, 16
    B, S, S_LINE = 2, 16, 8

    key = jax.random.PRNGKey(0)
    kx, kl, kp = jax.random.split(key, 3)
    x = jax.random.normal(kx, (B, S, dim), jnp.float32)
    line = jax.random.normal(kl, (B, S_LINE, dim), jnp.float32)
    params = init_params(kp, dim, n_heads, head_dim)

    fwd = jax.jit(functools.partial(transformer_block,
                                    n_heads=n_heads, head_dim=head_dim))
    y = fwd(x, line, params)
    y = jax.block_until_ready(y)

    assert y.shape == (B, S, dim), y.shape
    assert bool(jnp.all(jnp.isfinite(y)))
    print("KERNEL_OK")
</pallas_src>

<mosaic_0001>
module attributes {stable_mosaic.version = 11 : i64} {
  func.func @_matmul_kernel(%arg0: i32, %arg1: memref<16x32xf32, #tpu.memory_space<vmem>>, %arg2: memref<32x64xf32, #tpu.memory_space<vmem>>, %arg3: memref<16x64xf32, #tpu.memory_space<vmem>>) attributes {dimension_semantics = [#tpu.dimension_semantics<parallel>], iteration_bounds = array<i64: 1>, scalar_prefetch = 0 : i64, scratch_operands = 0 : i64, tpu.core_type = #tpu.core_type<tc>, window_params = [{transform_indices = @transform_0, window_bounds = array<i64: 16, 32>}, {pipeline_mode = #tpu.pipeline_mode<synchronous>, transform_indices = @transform_1, window_bounds = array<i64: 32, 64>}, {transform_indices = @transform_2, window_bounds = array<i64: 16, 64>}]} {
    %c0 = arith.constant 0 : index
    %c0_0 = arith.constant 0 : index
    %0 = vector.load %arg1[%c0, %c0_0] : memref<16x32xf32, #tpu.memory_space<vmem>>, vector<16x32xf32>
    %c0_1 = arith.constant 0 : index
    %c0_2 = arith.constant 0 : index
    %1 = vector.load %arg2[%c0_1, %c0_2] : memref<32x64xf32, #tpu.memory_space<vmem>>, vector<32x64xf32>
    %cst = arith.constant dense<0.000000e+00> : vector<16x64xf32>
    %2 = tpu.matmul %0, %1, %cst {dimension_numbers = #tpu.dot_dimension_numbers<[1], [0], [0], [1], [0, 0, 1, 1], [], []>} : vector<16x32xf32>, vector<32x64xf32>, vector<16x64xf32> -> vector<16x64xf32>
    %c0_3 = arith.constant 0 : index
    %c0_4 = arith.constant 0 : index
    %3 = vector.load %arg3[%c0_3, %c0_4] : memref<16x64xf32, #tpu.memory_space<vmem>>, vector<16x64xf32>
    tpu.vector_store %arg3[%c0_3, %c0_4], %2 {strides = array<i32>} : memref<16x64xf32, #tpu.memory_space<vmem>>, vector<16x64xf32>,
    return
  }
  func.func @transform_0(%arg0: i32) -> (i32, i32) {
    %c0_i32 = arith.constant 0 : i32
    %c0_i32_0 = arith.constant 0 : i32
    return %arg0, %c0_i32 : i32, i32
  }
  func.func @transform_1(%arg0: i32) -> (i32, i32) {
    %c0_i32 = arith.constant 0 : i32
    %c0_i32_0 = arith.constant 0 : i32
    %c0_i32_1 = arith.constant 0 : i32
    return %c0_i32, %c0_i32_0 : i32, i32
  }
  func.func @transform_2(%arg0: i32) -> (i32, i32) {
    %c0_i32 = arith.constant 0 : i32
    %c0_i32_0 = arith.constant 0 : i32
    return %arg0, %c0_i32 : i32, i32
  }
}

module attributes {stable_mosaic.version = 11 : i64} {
  func.func @_ln_matmul_kernel(%arg0: i32, %arg1: memref<32x32xf32, #tpu.memory_space<vmem>>, %arg2: memref<1x32xf32, #tpu.memory_space<vmem>>, %arg3: memref<1x32xf32, #tpu.memory_space<vmem>>, %arg4: memref<32x64xf32, #tpu.memory_space<vmem>>, %arg5: memref<32x64xf32, #tpu.memory_space<vmem>>) attributes {dimension_semantics = [#tpu.dimension_semantics<parallel>], iteration_bounds = array<i64: 1>, scalar_prefetch = 0 : i64, scratch_operands = 0 : i64, tpu.core_type = #tpu.core_type<tc>, window_params = [{transform_indices = @transform_0, window_bounds = array<i64: 32, 32>}, {pipeline_mode = #tpu.pipeline_mode<synchronous>, transform_indices = @transform_1, window_bounds = array<i64: 1, 32>}, {pipeline_mode = #tpu.pipeline_mode<synchronous>, transform_indices = @transform_2, window_bounds = array<i64: 1, 32>}, {pipeline_mode = #tpu.pipeline_mode<synchronous>, transform_indices = @transform_3, window_bounds = array<i64: 32, 64>}, {transform_indices = @transform_4, window_bounds = array<i64: 32, 64>}]} {
    %c0 = arith.constant 0 : index
    %c0_0 = arith.constant 0 : index
    %0 = vector.load %arg1[%c0, %c0_0] : memref<32x32xf32, #tpu.memory_space<vmem>>, vector<32x32xf32>
    %c0_1 = arith.constant 0 : index
    %c0_2 = arith.constant 0 : index
    %1 = vector.load %arg2[%c0_1, %c0_2] : memref<1x32xf32, #tpu.memory_space<vmem>>, vector<1x32xf32>
    %c0_3 = arith.constant 0 : index
    %c0_4 = arith.constant 0 : index
    %2 = vector.load %arg3[%c0_3, %c0_4] : memref<1x32xf32, #tpu.memory_space<vmem>>, vector<1x32xf32>
    %cst = arith.constant dense<0.000000e+00> : vector<32xf32>
    %3 = vector.multi_reduction <add>, %0, %cst [1] : vector<32x32xf32> to vector<32xf32>
    %4 = vector.shape_cast %3 : vector<32xf32> to vector<32x1xf32>
    %cst_5 = arith.constant 3.200000e+01 : f32
    %5 = vector.broadcast %cst_5 : f32 to vector<32x1xf32>
    %6 = arith.divf %4, %5 : vector<32x1xf32>
    %7 = vector.broadcast %6 : vector<32x1xf32> to vector<32x32xf32>
    %8 = arith.subf %0, %7 : vector<32x32xf32>
    %9 = arith.mulf %8, %8 : vector<32x32xf32>
    %cst_6 = arith.constant dense<0.000000e+00> : vector<32xf32>
    %10 = vector.multi_reduction <add>, %9, %cst_6 [1] : vector<32x32xf32> to vector<32xf32>
    %11 = vector.shape_cast %10 : vector<32xf32> to vector<32x1xf32>
    %cst_7 = arith.constant 3.200000e+01 : f32
    %12 = vector.broadcast %cst_7 : f32 to vector<32x1xf32>
    %13 = arith.divf %11, %12 : vector<32x1xf32>
    %cst_8 = arith.constant 9.99999974E-6 : f32
    %14 = vector.broadcast %cst_8 : f32 to vector<32x1xf32>
    %15 = arith.addf %13, %14 : vector<32x1xf32>
    %16 = math.rsqrt %15 : vector<32x1xf32>
    %17 = vector.broadcast %16 : vector<32x1xf32> to vector<32x32xf32>
    %18 = arith.mulf %8, %17 : vector<32x32xf32>
    %19 = vector.broadcast %1 : vector<1x32xf32> to vector<32x32xf32>
    %20 = arith.mulf %18, %19 : vector<32x32xf32>
    %21 = vector.broadcast %2 : vector<1x32xf32> to vector<32x32xf32>
    %22 = arith.addf %20, %21 : vector<32x32xf32>
    %c0_9 = arith.constant 0 : index
    %c0_10 = arith.constant 0 : index
    %23 = vector.load %arg4[%c0_9, %c0_10] : memref<32x64xf32, #tpu.memory_space<vmem>>, vector<32x64xf32>
    %cst_11 = arith.constant dense<0.000000e+00> : vector<32x64xf32>
    %24 = tpu.matmul %22, %23, %cst_11 {dimension_numbers = #tpu.dot_dimension_numbers<[1], [0], [0], [1], [0, 0, 1, 1], [], []>} : vector<32x32xf32>, vector<32x64xf32>, vector<32x64xf32> -> vector<32x64xf32>
    %c0_12 = arith.constant 0 : index
    %c0_13 = arith.constant 0 : index
    %25 = vector.load %arg5[%c0_12, %c0_13] : memref<32x64xf32, #tpu.memory_space<vmem>>, vector<32x64xf32>
    tpu.vector_store %arg5[%c0_12, %c0_13], %24 {strides = array<i32>} : memref<32x64xf32, #tpu.memory_space<vmem>>, vector<32x64xf32>,
    return
  }
  func.func @transform_0(%arg0: i32) -> (i32, i32) {
    %c0_i32 = arith.constant 0 : i32
    %c0_i32_0 = arith.constant 0 : i32
    return %arg0, %c0_i32 : i32, i32
  }
  func.func @transform_1(%arg0: i32) -> (i32, i32) {
    %c0_i32 = arith.constant 0 : i32
    %c0_i32_0 = arith.constant 0 : i32
    %c0_i32_1 = arith.constant 0 : i32
    return %c0_i32, %c0_i32_0 : i32, i32
  }
  func.func @transform_2(%arg0: i32) -> (i32, i32) {
    %c0_i32 = arith.constant 0 : i32
    %c0_i32_0 = arith.constant 0 : i32
    %c0_i32_1 = arith.constant 0 : i32
    return %c0_i32, %c0_i32_0 : i32, i32
  }
  func.func @transform_3(%arg0: i32) -> (i32, i32) {
    %c0_i32 = arith.constant 0 : i32
    %c0_i32_0 = arith.constant 0 : i32
    %c0_i32_1 = arith.constant 0 : i32
    return %c0_i32, %c0_i32_0 : i32, i32
  }
  func.func @transform_4(%arg0: i32) -> (i32, i32) {
    %c0_i32 = arith.constant 0 : i32
    %c0_i32_0 = arith.constant 0 : i32
    return %arg0, %c0_i32 : i32, i32
  }
}

module attributes {stable_mosaic.version = 11 : i64} {
  func.func @_attention_kernel(%arg0: i32, %arg1: i32, %arg2: memref<1x16x32xf32, #tpu.memory_space<vmem>>, %arg3: memref<1x16x32xf32, #tpu.memory_space<vmem>>, %arg4: memref<1x16x32xf32, #tpu.memory_space<vmem>>, %arg5: memref<1x16x32xf32, #tpu.memory_space<vmem>>) attributes {dimension_semantics = [#tpu.dimension_semantics<parallel>, #tpu.dimension_semantics<parallel>], iteration_bounds = array<i64: 2, 1>, scalar_prefetch = 0 : i64, scratch_operands = 0 : i64, tpu.core_type = #tpu.core_type<tc>, window_params = [{transform_indices = @transform_0, window_bounds = array<i64: 1, 16, 32>}, {transform_indices = @transform_1, window_bounds = array<i64: 1, 16, 32>}, {transform_indices = @transform_2, window_bounds = array<i64: 1, 16, 32>}, {transform_indices = @transform_3, window_bounds = array<i64: 1, 16, 32>}]} {
    %c0 = arith.constant 0 : index
    %c0_0 = arith.constant 0 : index
    %c0_1 = arith.constant 0 : index
    %0 = vector.load %arg2[%c0, %c0_0, %c0_1] : memref<1x16x32xf32, #tpu.memory_space<vmem>>, vector<1x16x32xf32>
    %1 = vector.shape_cast %0 : vector<1x16x32xf32> to vector<16x32xf32>
    %c0_2 = arith.constant 0 : index
    %c0_3 = arith.constant 0 : index
    %c0_4 = arith.constant 0 : index
    %2 = vector.load %arg3[%c0_2, %c0_3, %c0_4] : memref<1x16x32xf32, #tpu.memory_space<vmem>>, vector<1x16x32xf32>
    %3 = vector.shape_cast %2 : vector<1x16x32xf32> to vector<16x32xf32>
    %c0_5 = arith.constant 0 : index
    %c0_6 = arith.constant 0 : index
    %c0_7 = arith.constant 0 : index
    %4 = vector.load %arg4[%c0_5, %c0_6, %c0_7] : memref<1x16x32xf32, #tpu.memory_space<vmem>>, vector<1x16x32xf32>
    %5 = vector.shape_cast %4 : vector<1x16x32xf32> to vector<16x32xf32>
    %6 = vector.extract_strided_slice %1 {offsets = [0, 0], sizes = [16, 16], strides = [1, 1]} : vector<16x32xf32> to vector<16x16xf32>
    %7 = vector.extract_strided_slice %3 {offsets = [0, 0], sizes = [16, 16], strides = [1, 1]} : vector<16x32xf32> to vector<16x16xf32>
    %8 = vector.extract_strided_slice %5 {offsets = [0, 0], sizes = [16, 16], strides = [1, 1]} : vector<16x32xf32> to vector<16x16xf32>
    %cst = arith.constant dense<0.000000e+00> : vector<16x16xf32>
    %9 = tpu.matmul %6, %7, %cst {dimension_numbers = #tpu.dot_dimension_numbers<[1], [1], [0], [0], [0, 0, 1, 0], [], []>} : vector<16x16xf32>, vector<16x16xf32>, vector<16x16xf32> -> vector<16x16xf32>
    %cst_8 = arith.constant 2.500000e-01 : f32
    %10 = vector.broadcast %cst_8 : f32 to vector<16x16xf32>
    %11 = arith.mulf %9, %10 : vector<16x16xf32>
    %cst_9 = arith.constant dense<0xFF800000> : vector<16xf32>
    %12 = vector.multi_reduction <maximumf>, %11, %cst_9 [1] : vector<16x16xf32> to vector<16xf32>
    %13 = vector.shape_cast %12 : vector<16xf32> to vector<16x1xf32>
    %14 = vector.broadcast %13 : vector<16x1xf32> to vector<16x16xf32>
    %15 = arith.subf %11, %14 : vector<16x16xf32>
    %16 = math.exp %15 : vector<16x16xf32>
    %cst_10 = arith.constant dense<0.000000e+00> : vector<16xf32>
    %17 = vector.multi_reduction <add>, %16, %cst_10 [1] : vector<16x16xf32> to vector<16xf32>
    %18 = vector.shape_cast %17 : vector<16xf32> to vector<16x1xf32>
    %cst_11 = arith.constant dense<0.000000e+00> : vector<16x16xf32>
    %19 = tpu.matmul %16, %8, %cst_11 {dimension_numbers = #tpu.dot_dimension_numbers<[1], [0], [0], [1], [0, 0, 1, 1], [], []>} : vector<16x16xf32>, vector<16x16xf32>, vector<16x16xf32> -> vector<16x16xf32>
    %20 = tpu.reciprocal %18 {approx = true} : vector<16x1xf32> -> vector<16x1xf32>
    %21 = vector.broadcast %20 : vector<16x1xf32> to vector<16x16xf32>
    %22 = arith.mulf %19, %21 : vector<16x16xf32>
    %23 = vector.extract_strided_slice %1 {offsets = [0, 16], sizes = [16, 16], strides = [1, 1]} : vector<16x32xf32> to vector<16x16xf32>
    %24 = vector.extract_strided_slice %3 {offsets = [0, 16], sizes = [16, 16], strides = [1, 1]} : vector<16x32xf32> to vector<16x16xf32>
    %25 = vector.extract_strided_slice %5 {offsets = [0, 16], sizes = [16, 16], strides = [1, 1]} : vector<16x32xf32> to vector<16x16xf32>
    %cst_12 = arith.constant dense<0.000000e+00> : vector<16x16xf32>
    %26 = tpu.matmul %23, %24, %cst_12 {dimension_numbers = #tpu.dot_dimension_numbers<[1], [1], [0], [0], [0, 0, 1, 0], [], []>} : vector<16x16xf32>, vector<16x16xf32>, vector<16x16xf32> -> vector<16x16xf32>
    %cst_13 = arith.constant 2.500000e-01 : f32
    %27 = vector.broadcast %cst_13 : f32 to vector<16x16xf32>
    %28 = arith.mulf %26, %27 : vector<16x16xf32>
    %cst_14 = arith.constant dense<0xFF800000> : vector<16xf32>
    %29 = vector.multi_reduction <maximumf>, %28, %cst_14 [1] : vector<16x16xf32> to vector<16xf32>
    %30 = vector.shape_cast %29 : vector<16xf32> to vector<16x1xf32>
    %31 = vector.broadcast %30 : vector<16x1xf32> to vector<16x16xf32>
    %32 = arith.subf %28, %31 : vector<16x16xf32>
    %33 = math.exp %32 : vector<16x16xf32>
    %cst_15 = arith.constant dense<0.000000e+00> : vector<16xf32>
    %34 = vector.multi_reduction <add>, %33, %cst_15 [1] : vector<16x16xf32> to vector<16xf32>
    %35 = vector.shape_cast %34 : vector<16xf32> to vector<16x1xf32>
    %cst_16 = arith.constant dense<0.000000e+00> : vector<16x16xf32>
    %36 = tpu.matmul %33, %25, %cst_16 {dimension_numbers = #tpu.dot_dimension_numbers<[1], [0], [0], [1], [0, 0, 1, 1], [], []>} : vector<16x16xf32>, vector<16x16xf32>, vector<16x16xf32> -> vector<16x16xf32>
    %37 = tpu.reciprocal %35 {approx = true} : vector<16x1xf32> -> vector<16x1xf32>
    %38 = vector.broadcast %37 : vector<16x1xf32> to vector<16x16xf32>
    %39 = arith.mulf %36, %38 : vector<16x16xf32>
    %40 = tpu.concatenate %22, %39 in 1 : vector<16x16xf32>, vector<16x16xf32> -> vector<16x32xf32>
    %c0_17 = arith.constant 0 : index
    %c0_18 = arith.constant 0 : index
    %c0_19 = arith.constant 0 : index
    %41 = vector.load %arg5[%c0_17, %c0_18, %c0_19] : memref<1x16x32xf32, #tpu.memory_space<vmem>>, vector<1x16x32xf32>
    %42 = vector.shape_cast %41 : vector<1x16x32xf32> to vector<16x32xf32>
    %43 = vector.shape_cast %40 : vector<16x32xf32> to vector<1x16x32xf32>
    tpu.vector_store %arg5[%c0_17, %c0_18, %c0_19], %43 {strides = array<i32>} : memref<1x16x32xf32, #tpu.memory_space<vmem>>, vector<1x16x32xf32>,
    return
  }
  func.func @transform_0(%arg0: i32, %arg1: i32) -> (i32, i32, i32) {
    %c0_i32 = arith.constant 0 : i32
    %c0_i32_0 = arith.constant 0 : i32
    return %arg0, %arg1, %c0_i32 : i32, i32, i32
  }
  func.func @transform_1(%arg0: i32, %arg1: i32) -> (i32, i32, i32) {
    %c0_i32 = arith.constant 0 : i32
    %c0_i32_0 = arith.constant 0 : i32
    %c0_i32_1 = arith.constant 0 : i32
    return %arg0, %c0_i32, %c0_i32_0 : i32, i32, i32
  }
  func.func @transform_2(%arg0: i32, %arg1: i32) -> (i32, i32, i32) {
    %c0_i32 = arith.constant 0 : i32
    %c0_i32_0 = arith.constant 0 : i32
    %c0_i32_1 = arith.constant 0 : i32
    return %arg0, %c0_i32, %c0_i32_0 : i32, i32, i32
  }
  func.func @transform_3(%arg0: i32, %arg1: i32) -> (i32, i32, i32) {
    %c0_i32 = arith.constant 0 : i32
    %c0_i32_0 = arith.constant 0 : i32
    return %arg0, %arg1, %c0_i32 : i32, i32, i32
  }
}

module attributes {stable_mosaic.version = 11 : i64} {
  func.func @_ln_matmul_kernel(%arg0: i32, %arg1: memref<32x32xf32, #tpu.memory_space<vmem>>, %arg2: memref<1x32xf32, #tpu.memory_space<vmem>>, %arg3: memref<1x32xf32, #tpu.memory_space<vmem>>, %arg4: memref<32x32xf32, #tpu.memory_space<vmem>>, %arg5: memref<32x32xf32, #tpu.memory_space<vmem>>) attributes {dimension_semantics = [#tpu.dimension_semantics<parallel>], iteration_bounds = array<i64: 1>, scalar_prefetch = 0 : i64, scratch_operands = 0 : i64, tpu.core_type = #tpu.core_type<tc>, window_params = [{transform_indices = @transform_0, window_bounds = array<i64: 32, 32>}, {pipeline_mode = #tpu.pipeline_mode<synchronous>, transform_indices = @transform_1, window_bounds = array<i64: 1, 32>}, {pipeline_mode = #tpu.pipeline_mode<synchronous>, transform_indices = @transform_2, window_bounds = array<i64: 1, 32>}, {pipeline_mode = #tpu.pipeline_mode<synchronous>, transform_indices = @transform_3, window_bounds = array<i64: 32, 32>}, {transform_indices = @transform_4, window_bounds = array<i64: 32, 32>}]} {
    %c0 = arith.constant 0 : index
    %c0_0 = arith.constant 0 : index
    %0 = vector.load %arg1[%c0, %c0_0] : memref<32x32xf32, #tpu.memory_space<vmem>>, vector<32x32xf32>
    %c0_1 = arith.constant 0 : index
    %c0_2 = arith.constant 0 : index
    %1 = vector.load %arg2[%c0_1, %c0_2] : memref<1x32xf32, #tpu.memory_space<vmem>>, vector<1x32xf32>
    %c0_3 = arith.constant 0 : index
    %c0_4 = arith.constant 0 : index
    %2 = vector.load %arg3[%c0_3, %c0_4] : memref<1x32xf32, #tpu.memory_space<vmem>>, vector<1x32xf32>
    %cst = arith.constant dense<0.000000e+00> : vector<32xf32>
    %3 = vector.multi_reduction <add>, %0, %cst [1] : vector<32x32xf32> to vector<32xf32>
    %4 = vector.shape_cast %3 : vector<32xf32> to vector<32x1xf32>
    %cst_5 = arith.constant 3.200000e+01 : f32
    %5 = vector.broadcast %cst_5 : f32 to vector<32x1xf32>
    %6 = arith.divf %4, %5 : vector<32x1xf32>
    %7 = vector.broadcast %6 : vector<32x1xf32> to vector<32x32xf32>
    %8 = arith.subf %0, %7 : vector<32x32xf32>
    %9 = arith.mulf %8, %8 : vector<32x32xf32>
    %cst_6 = arith.constant dense<0.000000e+00> : vector<32xf32>
    %10 = vector.multi_reduction <add>, %9, %cst_6 [1] : vector<32x32xf32> to vector<32xf32>
    %11 = vector.shape_cast %10 : vector<32xf32> to vector<32x1xf32>
    %cst_7 = arith.constant 3.200000e+01 : f32
    %12 = vector.broadcast %cst_7 : f32 to vector<32x1xf32>
    %13 = arith.divf %11, %12 : vector<32x1xf32>
    %cst_8 = arith.constant 9.99999974E-6 : f32
    %14 = vector.broadcast %cst_8 : f32 to vector<32x1xf32>
    %15 = arith.addf %13, %14 : vector<32x1xf32>
    %16 = math.rsqrt %15 : vector<32x1xf32>
    %17 = vector.broadcast %16 : vector<32x1xf32> to vector<32x32xf32>
    %18 = arith.mulf %8, %17 : vector<32x32xf32>
    %19 = vector.broadcast %1 : vector<1x32xf32> to vector<32x32xf32>
    %20 = arith.mulf %18, %19 : vector<32x32xf32>
    %21 = vector.broadcast %2 : vector<1x32xf32> to vector<32x32xf32>
    %22 = arith.addf %20, %21 : vector<32x32xf32>
    %c0_9 = arith.constant 0 : index
    %c0_10 = arith.constant 0 : index
    %23 = vector.load %arg4[%c0_9, %c0_10] : memref<32x32xf32, #tpu.memory_space<vmem>>, vector<32x32xf32>
    %cst_11 = arith.constant dense<0.000000e+00> : vector<32x32xf32>
    %24 = tpu.matmul %22, %23, %cst_11 {dimension_numbers = #tpu.dot_dimension_numbers<[1], [0], [0], [1], [0, 0, 1, 1], [], []>} : vector<32x32xf32>, vector<32x32xf32>, vector<32x32xf32> -> vector<32x32xf32>
    %c0_12 = arith.constant 0 : index
    %c0_13 = arith.constant 0 : index
    %25 = vector.load %arg5[%c0_12, %c0_13] : memref<32x32xf32, #tpu.memory_space<vmem>>, vector<32x32xf32>
    tpu.vector_store %arg5[%c0_12, %c0_13], %24 {strides = array<i32>} : memref<32x32xf32, #tpu.memory_space<vmem>>, vector<32x32xf32>,
    return
  }
  func.func @transform_0(%arg0: i32) -> (i32, i32) {
    %c0_i32 = arith.constant 0 : i32
    %c0_i32_0 = arith.constant 0 : i32
    return %arg0, %c0_i32 : i32, i32
  }
  func.func @transform_1(%arg0: i32) -> (i32, i32) {
    %c0_i32 = arith.constant 0 : i32
    %c0_i32_0 = arith.constant 0 : i32
    %c0_i32_1 = arith.constant 0 : i32
    return %c0_i32, %c0_i32_0 : i32, i32
  }
  func.func @transform_2(%arg0: i32) -> (i32, i32) {
    %c0_i32 = arith.constant 0 : i32
    %c0_i32_0 = arith.constant 0 : i32
    %c0_i32_1 = arith.constant 0 : i32
    return %c0_i32, %c0_i32_0 : i32, i32
  }
  func.func @transform_3(%arg0: i32) -> (i32, i32) {
    %c0_i32 = arith.constant 0 : i32
    %c0_i32_0 = arith.constant 0 : i32
    %c0_i32_1 = arith.constant 0 : i32
    return %c0_i32, %c0_i32_0 : i32, i32
  }
  func.func @transform_4(%arg0: i32) -> (i32, i32) {
    %c0_i32 = arith.constant 0 : i32
    %c0_i32_0 = arith.constant 0 : i32
    return %arg0, %c0_i32 : i32, i32
  }
}

module attributes {stable_mosaic.version = 11 : i64} {
  func.func @_linear_residual_kernel(%arg0: i32, %arg1: memref<32x32xf32, #tpu.memory_space<vmem>>, %arg2: memref<32x32xf32, #tpu.memory_space<vmem>>, %arg3: memref<1x32xf32, #tpu.memory_space<vmem>>, %arg4: memref<32x32xf32, #tpu.memory_space<vmem>>, %arg5: memref<32x32xf32, #tpu.memory_space<vmem>>) attributes {dimension_semantics = [#tpu.dimension_semantics<parallel>], iteration_bounds = array<i64: 1>, scalar_prefetch = 0 : i64, scratch_operands = 0 : i64, tpu.core_type = #tpu.core_type<tc>, window_params = [{transform_indices = @transform_0, window_bounds = array<i64: 32, 32>}, {pipeline_mode = #tpu.pipeline_mode<synchronous>, transform_indices = @transform_1, window_bounds = array<i64: 32, 32>}, {pipeline_mode = #tpu.pipeline_mode<synchronous>, transform_indices = @transform_2, window_bounds = array<i64: 1, 32>}, {transform_indices = @transform_3, window_bounds = array<i64: 32, 32>}, {transform_indices = @transform_4, window_bounds = array<i64: 32, 32>}]} {
    %c0 = arith.constant 0 : index
    %c0_0 = arith.constant 0 : index
    %0 = vector.load %arg1[%c0, %c0_0] : memref<32x32xf32, #tpu.memory_space<vmem>>, vector<32x32xf32>
    %c0_1 = arith.constant 0 : index
    %c0_2 = arith.constant 0 : index
    %1 = vector.load %arg2[%c0_1, %c0_2] : memref<32x32xf32, #tpu.memory_space<vmem>>, vector<32x32xf32>
    %cst = arith.constant dense<0.000000e+00> : vector<32x32xf32>
    %2 = tpu.matmul %0, %1, %cst {dimension_numbers = #tpu.dot_dimension_numbers<[1], [0], [0], [1], [0, 0, 1, 1], [], []>} : vector<32x32xf32>, vector<32x32xf32>, vector<32x32xf32> -> vector<32x32xf32>
    %c0_3 = arith.constant 0 : index
    %c0_4 = arith.constant 0 : index
    %3 = vector.load %arg3[%c0_3, %c0_4] : memref<1x32xf32, #tpu.memory_space<vmem>>, vector<1x32xf32>
    %4 = vector.broadcast %3 : vector<1x32xf32> to vector<32x32xf32>
    %5 = arith.addf %2, %4 : vector<32x32xf32>
    %c0_5 = arith.constant 0 : index
    %c0_6 = arith.constant 0 : index
    %6 = vector.load %arg4[%c0_5, %c0_6] : memref<32x32xf32, #tpu.memory_space<vmem>>, vector<32x32xf32>
    %7 = arith.addf %5, %6 : vector<32x32xf32>
    %c0_7 = arith.constant 0 : index
    %c0_8 = arith.constant 0 : index
    %8 = vector.load %arg5[%c0_7, %c0_8] : memref<32x32xf32, #tpu.memory_space<vmem>>, vector<32x32xf32>
    tpu.vector_store %arg5[%c0_7, %c0_8], %7 {strides = array<i32>} : memref<32x32xf32, #tpu.memory_space<vmem>>, vector<32x32xf32>,
    return
  }
  func.func @transform_0(%arg0: i32) -> (i32, i32) {
    %c0_i32 = arith.constant 0 : i32
    %c0_i32_0 = arith.constant 0 : i32
    return %arg0, %c0_i32 : i32, i32
  }
  func.func @transform_1(%arg0: i32) -> (i32, i32) {
    %c0_i32 = arith.constant 0 : i32
    %c0_i32_0 = arith.constant 0 : i32
    %c0_i32_1 = arith.constant 0 : i32
    return %c0_i32, %c0_i32_0 : i32, i32
  }
  func.func @transform_2(%arg0: i32) -> (i32, i32) {
    %c0_i32 = arith.constant 0 : i32
    %c0_i32_0 = arith.constant 0 : i32
    %c0_i32_1 = arith.constant 0 : i32
    return %c0_i32, %c0_i32_0 : i32, i32
  }
  func.func @transform_3(%arg0: i32) -> (i32, i32) {
    %c0_i32 = arith.constant 0 : i32
    %c0_i32_0 = arith.constant 0 : i32
    return %arg0, %c0_i32 : i32, i32
  }
  func.func @transform_4(%arg0: i32) -> (i32, i32) {
    %c0_i32 = arith.constant 0 : i32
    %c0_i32_0 = arith.constant 0 : i32
    return %arg0, %c0_i32 : i32, i32
  }
}

module attributes {stable_mosaic.version = 11 : i64} {
  func.func @_attention_kernel(%arg0: i32, %arg1: i32, %arg2: memref<1x16x32xf32, #tpu.memory_space<vmem>>, %arg3: memref<1x8x32xf32, #tpu.memory_space<vmem>>, %arg4: memref<1x8x32xf32, #tpu.memory_space<vmem>>, %arg5: memref<1x16x32xf32, #tpu.memory_space<vmem>>) attributes {dimension_semantics = [#tpu.dimension_semantics<parallel>, #tpu.dimension_semantics<parallel>], iteration_bounds = array<i64: 2, 1>, scalar_prefetch = 0 : i64, scratch_operands = 0 : i64, tpu.core_type = #tpu.core_type<tc>, window_params = [{transform_indices = @transform_0, window_bounds = array<i64: 1, 16, 32>}, {transform_indices = @transform_1, window_bounds = array<i64: 1, 8, 32>}, {transform_indices = @transform_2, window_bounds = array<i64: 1, 8, 32>}, {transform_indices = @transform_3, window_bounds = array<i64: 1, 16, 32>}]} {
    %c0 = arith.constant 0 : index
    %c0_0 = arith.constant 0 : index
    %c0_1 = arith.constant 0 : index
    %0 = vector.load %arg2[%c0, %c0_0, %c0_1] : memref<1x16x32xf32, #tpu.memory_space<vmem>>, vector<1x16x32xf32>
    %1 = vector.shape_cast %0 : vector<1x16x32xf32> to vector<16x32xf32>
    %c0_2 = arith.constant 0 : index
    %c0_3 = arith.constant 0 : index
    %c0_4 = arith.constant 0 : index
    %2 = vector.load %arg3[%c0_2, %c0_3, %c0_4] : memref<1x8x32xf32, #tpu.memory_space<vmem>>, vector<1x8x32xf32>
    %3 = vector.shape_cast %2 : vector<1x8x32xf32> to vector<8x32xf32>
    %c0_5 = arith.constant 0 : index
    %c0_6 = arith.constant 0 : index
    %c0_7 = arith.constant 0 : index
    %4 = vector.load %arg4[%c0_5, %c0_6, %c0_7] : memref<1x8x32xf32, #tpu.memory_space<vmem>>, vector<1x8x32xf32>
    %5 = vector.shape_cast %4 : vector<1x8x32xf32> to vector<8x32xf32>
    %6 = vector.extract_strided_slice %1 {offsets = [0, 0], sizes = [16, 16], strides = [1, 1]} : vector<16x32xf32> to vector<16x16xf32>
    %7 = vector.extract_strided_slice %3 {offsets = [0, 0], sizes = [8, 16], strides = [1, 1]} : vector<8x32xf32> to vector<8x16xf32>
    %8 = vector.extract_strided_slice %5 {offsets = [0, 0], sizes = [8, 16], strides = [1, 1]} : vector<8x32xf32> to vector<8x16xf32>
    %cst = arith.constant dense<0.000000e+00> : vector<16x8xf32>
    %9 = tpu.matmul %6, %7, %cst {dimension_numbers = #tpu.dot_dimension_numbers<[1], [1], [0], [0], [0, 0, 1, 0], [], []>} : vector<16x16xf32>, vector<8x16xf32>, vector<16x8xf32> -> vector<16x8xf32>
    %cst_8 = arith.constant 2.500000e-01 : f32
    %10 = vector.broadcast %cst_8 : f32 to vector<16x8xf32>
    %11 = arith.mulf %9, %10 : vector<16x8xf32>
    %cst_9 = arith.constant dense<0xFF800000> : vector<16xf32>
    %12 = vector.multi_reduction <maximumf>, %11, %cst_9 [1] : vector<16x8xf32> to vector<16xf32>
    %13 = vector.shape_cast %12 : vector<16xf32> to vector<16x1xf32>
    %14 = vector.broadcast %13 : vector<16x1xf32> to vector<16x8xf32>
    %15 = arith.subf %11, %14 : vector<16x8xf32>
    %16 = math.exp %15 : vector<16x8xf32>
    %cst_10 = arith.constant dense<0.000000e+00> : vector<16xf32>
    %17 = vector.multi_reduction <add>, %16, %cst_10 [1] : vector<16x8xf32> to vector<16xf32>
    %18 = vector.shape_cast %17 : vector<16xf32> to vector<16x1xf32>
    %cst_11 = arith.constant dense<0.000000e+00> : vector<16x16xf32>
    %19 = tpu.matmul %16, %8, %cst_11 {dimension_numbers = #tpu.dot_dimension_numbers<[1], [0], [0], [1], [0, 0, 1, 1], [], []>} : vector<16x8xf32>, vector<8x16xf32>, vector<16x16xf32> -> vector<16x16xf32>
    %20 = tpu.reciprocal %18 {approx = true} : vector<16x1xf32> -> vector<16x1xf32>
    %21 = vector.broadcast %20 : vector<16x1xf32> to vector<16x16xf32>
    %22 = arith.mulf %19, %21 : vector<16x16xf32>
    %23 = vector.extract_strided_slice %1 {offsets = [0, 16], sizes = [16, 16], strides = [1, 1]} : vector<16x32xf32> to vector<16x16xf32>
    %24 = vector.extract_strided_slice %3 {offsets = [0, 16], sizes = [8, 16], strides = [1, 1]} : vector<8x32xf32> to vector<8x16xf32>
    %25 = vector.extract_strided_slice %5 {offsets = [0, 16], sizes = [8, 16], strides = [1, 1]} : vector<8x32xf32> to vector<8x16xf32>
    %cst_12 = arith.constant dense<0.000000e+00> : vector<16x8xf32>
    %26 = tpu.matmul %23, %24, %cst_12 {dimension_numbers = #tpu.dot_dimension_numbers<[1], [1], [0], [0], [0, 0, 1, 0], [], []>} : vector<16x16xf32>, vector<8x16xf32>, vector<16x8xf32> -> vector<16x8xf32>
    %cst_13 = arith.constant 2.500000e-01 : f32
    %27 = vector.broadcast %cst_13 : f32 to vector<16x8xf32>
    %28 = arith.mulf %26, %27 : vector<16x8xf32>
    %cst_14 = arith.constant dense<0xFF800000> : vector<16xf32>
    %29 = vector.multi_reduction <maximumf>, %28, %cst_14 [1] : vector<16x8xf32> to vector<16xf32>
    %30 = vector.shape_cast %29 : vector<16xf32> to vector<16x1xf32>
    %31 = vector.broadcast %30 : vector<16x1xf32> to vector<16x8xf32>
    %32 = arith.subf %28, %31 : vector<16x8xf32>
    %33 = math.exp %32 : vector<16x8xf32>
    %cst_15 = arith.constant dense<0.000000e+00> : vector<16xf32>
    %34 = vector.multi_reduction <add>, %33, %cst_15 [1] : vector<16x8xf32> to vector<16xf32>
    %35 = vector.shape_cast %34 : vector<16xf32> to vector<16x1xf32>
    %cst_16 = arith.constant dense<0.000000e+00> : vector<16x16xf32>
    %36 = tpu.matmul %33, %25, %cst_16 {dimension_numbers = #tpu.dot_dimension_numbers<[1], [0], [0], [1], [0, 0, 1, 1], [], []>} : vector<16x8xf32>, vector<8x16xf32>, vector<16x16xf32> -> vector<16x16xf32>
    %37 = tpu.reciprocal %35 {approx = true} : vector<16x1xf32> -> vector<16x1xf32>
    %38 = vector.broadcast %37 : vector<16x1xf32> to vector<16x16xf32>
    %39 = arith.mulf %36, %38 : vector<16x16xf32>
    %40 = tpu.concatenate %22, %39 in 1 : vector<16x16xf32>, vector<16x16xf32> -> vector<16x32xf32>
    %c0_17 = arith.constant 0 : index
    %c0_18 = arith.constant 0 : index
    %c0_19 = arith.constant 0 : index
    %41 = vector.load %arg5[%c0_17, %c0_18, %c0_19] : memref<1x16x32xf32, #tpu.memory_space<vmem>>, vector<1x16x32xf32>
    %42 = vector.shape_cast %41 : vector<1x16x32xf32> to vector<16x32xf32>
    %43 = vector.shape_cast %40 : vector<16x32xf32> to vector<1x16x32xf32>
    tpu.vector_store %arg5[%c0_17, %c0_18, %c0_19], %43 {strides = array<i32>} : memref<1x16x32xf32, #tpu.memory_space<vmem>>, vector<1x16x32xf32>,
    return
  }
  func.func @transform_0(%arg0: i32, %arg1: i32) -> (i32, i32, i32) {
    %c0_i32 = arith.constant 0 : i32
    %c0_i32_0 = arith.constant 0 : i32
    return %arg0, %arg1, %c0_i32 : i32, i32, i32
  }
  func.func @transform_1(%arg0: i32, %arg1: i32) -> (i32, i32, i32) {
    %c0_i32 = arith.constant 0 : i32
    %c0_i32_0 = arith.constant 0 : i32
    %c0_i32_1 = arith.constant 0 : i32
    return %arg0, %c0_i32, %c0_i32_0 : i32, i32, i32
  }
  func.func @transform_2(%arg0: i32, %arg1: i32) -> (i32, i32, i32) {
    %c0_i32 = arith.constant 0 : i32
    %c0_i32_0 = arith.constant 0 : i32
    %c0_i32_1 = arith.constant 0 : i32
    return %arg0, %c0_i32, %c0_i32_0 : i32, i32, i32
  }
  func.func @transform_3(%arg0: i32, %arg1: i32) -> (i32, i32, i32) {
    %c0_i32 = arith.constant 0 : i32
    %c0_i32_0 = arith.constant 0 : i32
    return %arg0, %arg1, %c0_i32 : i32, i32, i32
  }
}

module attributes {stable_mosaic.version = 11 : i64} {
  func.func @_geglu_ffn_kernel(%arg0: i32, %arg1: memref<32x32xf32, #tpu.memory_space<vmem>>, %arg2: memref<1x32xf32, #tpu.memory_space<vmem>>, %arg3: memref<1x32xf32, #tpu.memory_space<vmem>>, %arg4: memref<32x128xf32, #tpu.memory_space<vmem>>, %arg5: memref<1x128xf32, #tpu.memory_space<vmem>>, %arg6: memref<32x128xf32, #tpu.memory_space<vmem>>, %arg7: memref<1x128xf32, #tpu.memory_space<vmem>>, %arg8: memref<32x128xf32, #tpu.memory_space<vmem>>) attributes {dimension_semantics = [#tpu.dimension_semantics<parallel>], iteration_bounds = array<i64: 1>, scalar_prefetch = 0 : i64, scratch_operands = 0 : i64, tpu.core_type = #tpu.core_type<tc>, window_params = [{transform_indices = @transform_0, window_bounds = array<i64: 32, 32>}, {pipeline_mode = #tpu.pipeline_mode<synchronous>, transform_indices = @transform_1, window_bounds = array<i64: 1, 32>}, {pipeline_mode = #tpu.pipeline_mode<synchronous>, transform_indices = @transform_2, window_bounds = array<i64: 1, 32>}, {pipeline_mode = #tpu.pipeline_mode<synchronous>, transform_indices = @transform_3, window_bounds = array<i64: 32, 128>}, {pipeline_mode = #tpu.pipeline_mode<synchronous>, transform_indices = @transform_4, window_bounds = array<i64: 1, 128>}, {pipeline_mode = #tpu.pipeline_mode<synchronous>, transform_indices = @transform_5, window_bounds = array<i64: 32, 128>}, {pipeline_mode = #tpu.pipeline_mode<synchronous>, transform_indices = @transform_6, window_bounds = array<i64: 1, 128>}, {transform_indices = @transform_7, window_bounds = array<i64: 32, 128>}]} {
    %c0 = arith.constant 0 : index
    %c0_0 = arith.constant 0 : index
    %0 = vector.load %arg1[%c0, %c0_0] : memref<32x32xf32, #tpu.memory_space<vmem>>, vector<32x32xf32>
    %c0_1 = arith.constant 0 : index
    %c0_2 = arith.constant 0 : index
    %1 = vector.load %arg2[%c0_1, %c0_2] : memref<1x32xf32, #tpu.memory_space<vmem>>, vector<1x32xf32>
    %c0_3 = arith.constant 0 : index
    %c0_4 = arith.constant 0 : index
    %2 = vector.load %arg3[%c0_3, %c0_4] : memref<1x32xf32, #tpu.memory_space<vmem>>, vector<1x32xf32>
    %cst = arith.constant dense<0.000000e+00> : vector<32xf32>
    %3 = vector.multi_reduction <add>, %0, %cst [1] : vector<32x32xf32> to vector<32xf32>
    %4 = vector.shape_cast %3 : vector<32xf32> to vector<32x1xf32>
    %cst_5 = arith.constant 3.200000e+01 : f32
    %5 = vector.broadcast %cst_5 : f32 to vector<32x1xf32>
    %6 = arith.divf %4, %5 : vector<32x1xf32>
    %7 = vector.broadcast %6 : vector<32x1xf32> to vector<32x32xf32>
    %8 = arith.subf %0, %7 : vector<32x32xf32>
    %9 = arith.mulf %8, %8 : vector<32x32xf32>
    %cst_6 = arith.constant dense<0.000000e+00> : vector<32xf32>
    %10 = vector.multi_reduction <add>, %9, %cst_6 [1] : vector<32x32xf32> to vector<32xf32>
    %11 = vector.shape_cast %10 : vector<32xf32> to vector<32x1xf32>
    %cst_7 = arith.constant 3.200000e+01 : f32
    %12 = vector.broadcast %cst_7 : f32 to vector<32x1xf32>
    %13 = arith.divf %11, %12 : vector<32x1xf32>
    %cst_8 = arith.constant 9.99999974E-6 : f32
    %14 = vector.broadcast %cst_8 : f32 to vector<32x1xf32>
    %15 = arith.addf %13, %14 : vector<32x1xf32>
    %16 = math.rsqrt %15 : vector<32x1xf32>
    %17 = vector.broadcast %16 : vector<32x1xf32> to vector<32x32xf32>
    %18 = arith.mulf %8, %17 : vector<32x32xf32>
    %19 = vector.broadcast %1 : vector<1x32xf32> to vector<32x32xf32>
    %20 = arith.mulf %18, %19 : vector<32x32xf32>
    %21 = vector.broadcast %2 : vector<1x32xf32> to vector<32x32xf32>
    %22 = arith.addf %20, %21 : vector<32x32xf32>
    %c0_9 = arith.constant 0 : index
    %c0_10 = arith.constant 0 : index
    %23 = vector.load %arg4[%c0_9, %c0_10] : memref<32x128xf32, #tpu.memory_space<vmem>>, vector<32x128xf32>
    %cst_11 = arith.constant dense<0.000000e+00> : vector<32x128xf32>
    %24 = tpu.matmul %22, %23, %cst_11 {dimension_numbers = #tpu.dot_dimension_numbers<[1], [0], [0], [1], [0, 0, 1, 1], [], []>} : vector<32x32xf32>, vector<32x128xf32>, vector<32x128xf32> -> vector<32x128xf32>
    %c0_12 = arith.constant 0 : index
    %c0_13 = arith.constant 0 : index
    %25 = vector.load %arg5[%c0_12, %c0_13] : memref<1x128xf32, #tpu.memory_space<vmem>>, vector<1x128xf32>
    %26 = vector.broadcast %25 : vector<1x128xf32> to vector<32x128xf32>
    %27 = arith.addf %24, %26 : vector<32x128xf32>
    %c0_14 = arith.constant 0 : index
    %c0_15 = arith.constant 0 : index
    %28 = vector.load %arg6[%c0_14, %c0_15] : memref<32x128xf32, #tpu.memory_space<vmem>>, vector<32x128xf32>
    %cst_16 = arith.constant dense<0.000000e+00> : vector<32x128xf32>
    %29 = tpu.matmul %22, %28, %cst_16 {dimension_numbers = #tpu.dot_dimension_numbers<[1], [0], [0], [1], [0, 0, 1, 1], [], []>} : vector<32x32xf32>, vector<32x128xf32>, vector<32x128xf32> -> vector<32x128xf32>
    %c0_17 = arith.constant 0 : index
    %c0_18 = arith.constant 0 : index
    %30 = vector.load %arg7[%c0_17, %c0_18] : memref<1x128xf32, #tpu.memory_space<vmem>>, vector<1x128xf32>
    %31 = vector.broadcast %30 : vector<1x128xf32> to vector<32x128xf32>
    %32 = arith.addf %29, %31 : vector<32x128xf32>
    %cst_19 = arith.constant 5.000000e-01 : f32
    %33 = vector.broadcast %cst_19 : f32 to vector<32x128xf32>
    %34 = arith.mulf %33, %32 : vector<32x128xf32>
    %cst_20 = arith.constant 0.707106769 : f32
    %35 = vector.broadcast %cst_20 : f32 to vector<32x128xf32>
    %36 = arith.mulf %32, %35 : vector<32x128xf32>
    %cst_21 = arith.constant -3.8325069 : f32
    %cst_22 = arith.constant 3.8325069 : f32
    %37 = vector.broadcast %cst_21 : f32 to vector<32x128xf32>
    %38 = arith.maximumf %37, %36 : vector<32x128xf32>
    %39 = vector.broadcast %cst_22 : f32 to vector<32x128xf32>
    %40 = arith.minimumf %39, %38 : vector<32x128xf32>
    %41 = arith.mulf %40, %40 : vector<32x128xf32>
    %cst_23 = arith.constant -2.72614237E-10 : f32
    %42 = vector.broadcast %cst_23 : f32 to vector<32x128xf32>
    %43 = arith.mulf %42, %41 : vector<32x128xf32>
    %cst_24 = arith.constant 2.77068146E-8 : f32
    %44 = vector.broadcast %cst_24 : f32 to vector<32x128xf32>
    %45 = arith.addf %43, %44 : vector<32x128xf32>
    %46 = arith.mulf %45, %41 : vector<32x128xf32>
    %cst_25 = arith.constant -2.10102394E-6 : f32
    %47 = vector.broadcast %cst_25 : f32 to vector<32x128xf32>
    %48 = arith.addf %46, %47 : vector<32x128xf32>
    %49 = arith.mulf %48, %41 : vector<32x128xf32>
    %cst_26 = arith.constant -5.69250624E-5 : f32
    %50 = vector.broadcast %cst_26 : f32 to vector<32x128xf32>
    %51 = arith.addf %49, %50 : vector<32x128xf32>
    %52 = arith.mulf %51, %41 : vector<32x128xf32>
    %cst_27 = arith.constant -7.34990637E-4 : f32
    %53 = vector.broadcast %cst_27 : f32 to vector<32x128xf32>
    %54 = arith.addf %52, %53 : vector<32x128xf32>
    %55 = arith.mulf %54, %41 : vector<32x128xf32>
    %cst_28 = arith.constant -2.954600e-03 : f32
    %56 = vector.broadcast %cst_28 : f32 to vector<32x128xf32>
    %57 = arith.addf %55, %56 : vector<32x128xf32>
    %58 = arith.mulf %57, %41 : vector<32x128xf32>
    %cst_29 = arith.constant -0.0160960332 : f32
    %59 = vector.broadcast %cst_29 : f32 to vector<32x128xf32>
    %60 = arith.addf %58, %59 : vector<32x128xf32>
    %61 = arith.mulf %60, %40 : vector<32x128xf32>
    %cst_30 = arith.constant -1.45660715E-5 : f32
    %62 = vector.broadcast %cst_30 : f32 to vector<32x128xf32>
    %63 = arith.mulf %62, %41 : vector<32x128xf32>
    %cst_31 = arith.constant -2.13374049E-4 : f32
    %64 = vector.broadcast %cst_31 : f32 to vector<32x128xf32>
    %65 = arith.addf %63, %64 : vector<32x128xf32>
    %66 = arith.mulf %65, %41 : vector<32x128xf32>
    %cst_32 = arith.constant -0.00168282702 : f32
    %67 = vector.broadcast %cst_32 : f32 to vector<32x128xf32>
    %68 = arith.addf %66, %67 : vector<32x128xf32>
    %69 = arith.mulf %68, %41 : vector<32x128xf32>
    %cst_33 = arith.constant -0.00737332925 : f32
    %70 = vector.broadcast %cst_33 : f32 to vector<32x128xf32>
    %71 = arith.addf %69, %70 : vector<32x128xf32>
    %72 = arith.mulf %71, %41 : vector<32x128xf32>
    %cst_34 = arith.constant -0.0142647391 : f32
    %73 = vector.broadcast %cst_34 : f32 to vector<32x128xf32>
    %74 = arith.addf %72, %73 : vector<32x128xf32>
    %75 = arith.divf %61, %74 : vector<32x128xf32>
    %cst_35 = arith.constant 1.000000e+00 : f32
    %76 = vector.broadcast %cst_35 : f32 to vector<32x128xf32>
    %77 = arith.addf %76, %75 : vector<32x128xf32>
    %78 = arith.mulf %34, %77 : vector<32x128xf32>
    %79 = arith.mulf %27, %78 : vector<32x128xf32>
    %c0_36 = arith.constant 0 : index
    %c0_37 = arith.constant 0 : index
    %80 = vector.load %arg8[%c0_36, %c0_37] : memref<32x128xf32, #tpu.memory_space<vmem>>, vector<32x128xf32>
    tpu.vector_store %arg8[%c0_36, %c0_37], %79 {strides = array<i32>} : memref<32x128xf32, #tpu.memory_space<vmem>>, vector<32x128xf32>,
    return
  }
  func.func @transform_0(%arg0: i32) -> (i32, i32) {
    %c0_i32 = arith.constant 0 : i32
    %c0_i32_0 = arith.constant 0 : i32
    return %arg0, %c0_i32 : i32, i32
  }
  func.func @transform_1(%arg0: i32) -> (i32, i32) {
    %c0_i32 = arith.constant 0 : i32
    %c0_i32_0 = arith.constant 0 : i32
    %c0_i32_1 = arith.constant 0 : i32
    return %c0_i32, %c0_i32_0 : i32, i32
  }
  func.func @transform_2(%arg0: i32) -> (i32, i32) {
    %c0_i32 = arith.constant 0 : i32
    %c0_i32_0 = arith.constant 0 : i32
    %c0_i32_1 = arith.constant 0 : i32
    return %c0_i32, %c0_i32_0 : i32, i32
  }
  func.func @transform_3(%arg0: i32) -> (i32, i32) {
    %c0_i32 = arith.constant 0 : i32
    %c0_i32_0 = arith.constant 0 : i32
    %c0_i32_1 = arith.constant 0 : i32
    return %c0_i32, %c0_i32_0 : i32, i32
  }
  func.func @transform_4(%arg0: i32) -> (i32, i32) {
    %c0_i32 = arith.constant 0 : i32
    %c0_i32_0 = arith.constant 0 : i32
    %c0_i32_1 = arith.constant 0 : i32
    return %c0_i32, %c0_i32_0 : i32, i32
  }
  func.func @transform_5(%arg0: i32) -> (i32, i32) {
    %c0_i32 = arith.constant 0 : i32
    %c0_i32_0 = arith.constant 0 : i32
    %c0_i32_1 = arith.constant 0 : i32
    return %c0_i32, %c0_i32_0 : i32, i32
  }
  func.func @transform_6(%arg0: i32) -> (i32, i32) {
    %c0_i32 = arith.constant 0 : i32
    %c0_i32_0 = arith.constant 0 : i32
    %c0_i32_1 = arith.constant 0 : i32
    return %c0_i32, %c0_i32_0 : i32, i32
  }
  func.func @transform_7(%arg0: i32) -> (i32, i32) {
    %c0_i32 = arith.constant 0 : i32
    %c0_i32_0 = arith.constant 0 : i32
    return %arg0, %c0_i32 : i32, i32
  }
}

module attributes {stable_mosaic.version = 11 : i64} {
  func.func @_linear_residual_kernel(%arg0: i32, %arg1: memref<32x128xf32, #tpu.memory_space<vmem>>, %arg2: memref<128x32xf32, #tpu.memory_space<vmem>>, %arg3: memref<1x32xf32, #tpu.memory_space<vmem>>, %arg4: memref<32x32xf32, #tpu.memory_space<vmem>>, %arg5: memref<32x32xf32, #tpu.memory_space<vmem>>) attributes {dimension_semantics = [#tpu.dimension_semantics<parallel>], iteration_bounds = array<i64: 1>, scalar_prefetch = 0 : i64, scratch_operands = 0 : i64, tpu.core_type = #tpu.core_type<tc>, window_params = [{transform_indices = @transform_0, window_bounds = array<i64: 32, 128>}, {pipeline_mode = #tpu.pipeline_mode<synchronous>, transform_indices = @transform_1, window_bounds = array<i64: 128, 32>}, {pipeline_mode = #tpu.pipeline_mode<synchronous>, transform_indices = @transform_2, window_bounds = array<i64: 1, 32>}, {transform_indices = @transform_3, window_bounds = array<i64: 32, 32>}, {transform_indices = @transform_4, window_bounds = array<i64: 32, 32>}]} {
    %c0 = arith.constant 0 : index
    %c0_0 = arith.constant 0 : index
    %0 = vector.load %arg1[%c0, %c0_0] : memref<32x128xf32, #tpu.memory_space<vmem>>, vector<32x128xf32>
    %c0_1 = arith.constant 0 : index
    %c0_2 = arith.constant 0 : index
    %1 = vector.load %arg2[%c0_1, %c0_2] : memref<128x32xf32, #tpu.memory_space<vmem>>, vector<128x32xf32>
    %cst = arith.constant dense<0.000000e+00> : vector<32x32xf32>
    %2 = tpu.matmul %0, %1, %cst {dimension_numbers = #tpu.dot_dimension_numbers<[1], [0], [0], [1], [0, 0, 1, 1], [], []>} : vector<32x128xf32>, vector<128x32xf32>, vector<32x32xf32> -> vector<32x32xf32>
    %c0_3 = arith.constant 0 : index
    %c0_4 = arith.constant 0 : index
    %3 = vector.load %arg3[%c0_3, %c0_4] : memref<1x32xf32, #tpu.memory_space<vmem>>, vector<1x32xf32>
    %4 = vector.broadcast %3 : vector<1x32xf32> to vector<32x32xf32>
    %5 = arith.addf %2, %4 : vector<32x32xf32>
    %c0_5 = arith.constant 0 : index
    %c0_6 = arith.constant 0 : index
    %6 = vector.load %arg4[%c0_5, %c0_6] : memref<32x32xf32, #tpu.memory_space<vmem>>, vector<32x32xf32>
    %7 = arith.addf %5, %6 : vector<32x32xf32>
    %c0_7 = arith.constant 0 : index
    %c0_8 = arith.constant 0 : index
    %8 = vector.load %arg5[%c0_7, %c0_8] : memref<32x32xf32, #tpu.memory_space<vmem>>, vector<32x32xf32>
    tpu.vector_store %arg5[%c0_7, %c0_8], %7 {strides = array<i32>} : memref<32x32xf32, #tpu.memory_space<vmem>>, vector<32x32xf32>,
    return
  }
  func.func @transform_0(%arg0: i32) -> (i32, i32) {
    %c0_i32 = arith.constant 0 : i32
    %c0_i32_0 = arith.constant 0 : i32
    return %arg0, %c0_i32 : i32, i32
  }
  func.func @transform_1(%arg0: i32) -> (i32, i32) {
    %c0_i32 = arith.constant 0 : i32
    %c0_i32_0 = arith.constant 0 : i32
    %c0_i32_1 = arith.constant 0 : i32
    return %c0_i32, %c0_i32_0 : i32, i32
  }
  func.func @transform_2(%arg0: i32) -> (i32, i32) {
    %c0_i32 = arith.constant 0 : i32
    %c0_i32_0 = arith.constant 0 : i32
    %c0_i32_1 = arith.constant 0 : i32
    return %c0_i32, %c0_i32_0 : i32, i32
  }
  func.func @transform_3(%arg0: i32) -> (i32, i32) {
    %c0_i32 = arith.constant 0 : i32
    %c0_i32_0 = arith.constant 0 : i32
    return %arg0, %c0_i32 : i32, i32
  }
  func.func @transform_4(%arg0: i32) -> (i32, i32) {
    %c0_i32 = arith.constant 0 : i32
    %c0_i32_0 = arith.constant 0 : i32
    return %arg0, %c0_i32 : i32, i32
  }
}

</mosaic_0001>

<llo_original>
// kernel: transformer_block.15
$region0: #{transformer_block.15}
  #allocation0 [shape = 'u32[]', space=smem, size = 0x4, offset = 0x4, fixed_abs, tag = 'smem constant byte address 0x4 - core index']
  #allocation1 [shape = 'u32[144,128]{1,0:T(1,128)}', space=vmem, size = 0x12000, scoped, tag = 'internal scratch']
  %s0 = inlined_call_operand.vmem [shape: f32[16,32], index: 0, kind: input, shape index: {}]
  %s1 = inlined_call_operand.vmem [shape: f32[32,64], index: 1, kind: input, shape index: {}]
  %s2 = inlined_call_operand.vmem [shape: f32[16,64], index: 2, kind: output, shape index: {}]
  %s3 = sld [smem:[#allocation0]]
  $region18: #{transformer_block.15} parent=0
    _
  %s5 = ssub.s32 1, %s3
  %s6 = scalar_select 0, %s5, %s3
  // Predicated region
  $region2: #{transformer_block.15} parent=0 // pred_check
    _
  $region3: #{transformer_block.15} parent=0 // pred_check_branch
    %8 = sbr.rel (0) target = $region5
  $region4: #{transformer_block.15} parent=0 // pred_region
    _
  $region5: #{transformer_block.15} parent=0 // pred_fallthru
    _
  // Predicated region
  $region6: #{transformer_block.15} parent=0 // pred_check
    _
  $region7: #{transformer_block.15} parent=0 // pred_check_branch
    %10 = sbr.rel (0) target = $region9
  $region8: #{transformer_block.15} parent=0 // pred_region
    _
  $region9: #{transformer_block.15} parent=0 // pred_fallthru
    _
  %v11 = vld [vmem:[%s0] sm:$0xff]
  %v12 = vld [vmem:[%s0 + $0x8] sm:$0xff]
  %v13 = vld [vmem:[%s1] sm:$0xff]
  %v14 = vld [vmem:[%s1 + $0x8] sm:$0xff]
  %v15 = vld [vmem:[%s1 + $0x10] sm:$0xff]
  %v16 = vld [vmem:[%s1 + $0x18] sm:$0xff]
  %vm17 = vcmask 261120
  %v19 = vsel %vm17, %v11, 0
  %v22 = vsel %vm17, %v12, 0
  %24 = vmatprep.subr.mxu0 0.0
  %25 = vmatpush1.msra.mxu0 %v13
  %26 = vmatprep.subr.mxu0 0.0
  %27 = vmatpush1.msra.mxu0 %v14
  %28 = vmatprep.subr.mxu0 0.0
  %29 = vmatpush1.msra.mxu0 %v15
  %30 = vmatprep.subr.mxu0 0.0
  %31 = vmatpush1.msra.mxu0 %v16
  %32 = vmatprep.subr.mxu0 0.0
  %33 = vmatpush1.msra.mxu0 0.0
  %34 = vmatprep.subr.mxu0 0.0
  %35 = vmatpush1.msra.mxu0 0.0
  %36 = vmatprep.subr.mxu0 0.0
  %37 = vmatpush1.msra.mxu0 0.0
  %38 = vmatprep.subr.mxu0 0.0
  %39 = vmatpush1.msra.mxu0 0.0
  %40 = vmatprep.subr.mxu0 0.0
  %41 = vmatpush1.msra.mxu0 0.0
  %42 = vmatprep.subr.mxu0 0.0
  %43 = vmatpush1.msra.mxu0 0.0
  %44 = vmatprep.subr.mxu0 0.0
  %45 = vmatpush1.msra.mxu0 0.0
  %46 = vmatprep.subr.mxu0 0.0
  %47 = vmatpush1.msra.mxu0 0.0
  %48 = vmatprep.subr.mxu0 0.0
  %49 = vmatpush1.msra.mxu0 0.0
  %50 = vmatprep.subr.mxu0 0.0
  %51 = vmatpush1.msra.mxu0 0.0
  %52 = vmatprep.subr.mxu0 0.0
  %53 = vmatpush1.msra.mxu0 0.0
  %54 = vmatprep.subr.mxu0 0.0
  %55 = vmatpush1.msra.mxu0 0.0
  %56 = vmatprep.subr.mxu0 0.0
  %57 = vmatpush1.msra.mxu0 0.0
  %58 = vmatprep.subr.mxu0 0.0
  %59 = vmatpush1.msra.mxu0 0.0
  %60 = vmatprep.subr.mxu0 0.0
  %61 = vmatpush1.msra.mxu0 0.0
  %62 = vmatprep.subr.mxu0 0.0
  %63 = vmatpush1.msra.mxu0 0.0
  %64 = vmatprep.subr.mxu0 0.0
  %65 = vmatpush1.msra.mxu0 0.0
  %66 = vmatprep.subr.mxu0 0.0
  %67 = vmatpush1.msra.mxu0 0.0
  %68 = vmatprep.subr.mxu0 0.0
  %69 = vmatpush1.msra.mxu0 0.0
  %70 = vmatprep.subr.mxu0 0.0
  %71 = vmatpush1.msra.mxu0 0.0
  %72 = vmatprep.subr.mxu0 0.0
  %73 = vmatpush1.msra.mxu0 0.0
  %74 = vmatprep.subr.mxu0 0.0
  %75 = vmatpush1.msra.mxu0 0.0
  %76 = vmatprep.subr.mxu0 0.0
  %77 = vmatpush1.msra.mxu0 0.0
  %78 = vmatprep.subr.mxu0 0.0
  %79 = vmatpush1.msra.mxu0 0.0
  %80 = vmatprep.subr.mxu0 0.0
  %81 = vmatpush1.msra.mxu0 0.0
  %82 = vmatprep.subr.mxu0 0.0
  %83 = vmatpush1.msra.mxu0 0.0
  %84 = vmatprep.subr.mxu0 0.0
  %85 = vmatpush1.msra.mxu0 0.0
  %86 = vmatprep.subr.mxu0 0.0
  %87 = vmatpush1.msra.mxu0 0.0
  %88 = vmatprep.mubr.f32.mxu0 0.0
  %89 = vmatmul.mubr.f32.gmra.mrb[0].mxu0 %v19
  %v90 = vpop.f32.mrb[0].mxu0
  %v91 = vadd.f32 0.0, %v90
  %v92 = vpop.f32.mrb[0].mxu0
  %93 = vmatprep.mubr.f32.mxu0 0.0
  %94 = vmatmul.mubr.f32.gmra.mrb[0].mxu0 %v22
  %v95 = vpop.f32.mrb[0].mxu0
  %v96 = vadd.f32 0.0, %v95
  %v97 = vpop.f32.mrb[0].mxu0
  %98 = vdwg.mxu0
  %vm99 = vcmask 523264
  %100 = vst.msk [vmem:[%s2] sm:$0xff] %vm99, %v91
  %101 = vst.msk [vmem:[%s2 + $0x8] sm:$0xff] %vm99, %v96
  // Predicated region
  $region10: #{transformer_block.15} parent=0 // pred_check
    _
  $region11: #{transformer_block.15} parent=0 // pred_check_branch
    %103 = sbr.rel (0) target = $region13
  $region12: #{transformer_block.15} parent=0 // pred_region
    _
  $region13: #{transformer_block.15} parent=0 // pred_fallthru
    _
  // Predicated region
  $region14: #{transformer_block.15} parent=0 // pred_check
    _
  $region15: #{transformer_block.15} parent=0 // pred_check_branch
    %105 = sbr.rel (0) target = $region17
  $region16: #{transformer_block.15} parent=0 // pred_region
    _
  $region17: #{transformer_block.15} parent=0 // pred_fallthru
    _

// kernel: transformer_block.11
$region0: #{transformer_block.11}
  #allocation0 [shape = 'u32[]', space=smem, size = 0x4, offset = 0x4, fixed_abs, tag = 'smem constant byte address 0x4 - core index']
  #allocation1 [shape = 'u32[144,128]{1,0:T(1,128)}', space=vmem, size = 0x12000, scoped, tag = 'internal scratch']
  %s0 = inlined_call_operand.vmem [shape: f32[32,32], index: 0, kind: input, shape index: {}]
  %s1 = inlined_call_operand.vmem [shape: f32[1,32], index: 1, kind: input, shape index: {}]
  %s2 = inlined_call_operand.vmem [shape: f32[1,32], index: 2, kind: input, shape index: {}]
  %s3 = inlined_call_operand.vmem [shape: f32[32,64], index: 3, kind: input, shape index: {}]
  %s4 = inlined_call_operand.vmem [shape: f32[32,64], index: 4, kind: output, shape index: {}]
  %s5 = sld [smem:[#allocation0]]
  $region26: #{transformer_block.11} parent=0
    _
  %s7 = ssub.s32 1, %s5
  %s8 = scalar_select 0, %s7, %s5
  // Predicated region
  $region2: #{transformer_block.11} parent=0 // pred_check
    _
  $region3: #{transformer_block.11} parent=0 // pred_check_branch
    %10 = sbr.rel (0) target = $region5
  $region4: #{transformer_block.11} parent=0 // pred_region
    _
  $region5: #{transformer_block.11} parent=0 // pred_fallthru
    _
  // Predicated region
  $region6: #{transformer_block.11} parent=0 // pred_check
    _
  $region7: #{transformer_block.11} parent=0 // pred_check_branch
    %12 = sbr.rel (0) target = $region9
  $region8: #{transformer_block.11} parent=0 // pred_region
    _
  $region9: #{transformer_block.11} parent=0 // pred_fallthru
    _
  // Predicated region
  $region10: #{transformer_block.11} parent=0 // pred_check
    _
  $region11: #{transformer_block.11} parent=0 // pred_check_branch
    %14 = sbr.rel (0) target = $region13
  $region12: #{transformer_block.11} parent=0 // pred_region
    _
  $region13: #{transformer_block.11} parent=0 // pred_fallthru
    _
  // Predicated region
  $region14: #{transformer_block.11} parent=0 // pred_check
    _
  $region15: #{transformer_block.11} parent=0 // pred_check_branch
    %16 = sbr.rel (0) target = $region17
  $region16: #{transformer_block.11} parent=0 // pred_region
    _
  $region17: #{transformer_block.11} parent=0 // pred_fallthru
    _
  %v17 = vld [vmem:[%s0] sm:$0xff]
  %v18 = vld [vmem:[%s0 + $0x8] sm:$0xff]
  %v19 = vld [vmem:[%s0 + $0x10] sm:$0xff]
  %v20 = vld [vmem:[%s0 + $0x18] sm:$0xff]
  %v21 = vld [vmem:[%s1] sm:$0x1]
  %v22 = vld [vmem:[%s2] sm:$0x1]
  %vm23 = vcmask 261120
  %v24 = vsel %vm23, %v17, 0.0
  %25 = vadd.xlane.f32.xlu0 %v24
  %v26 = vpop.xlane.xlu0 %25
  %v27 = vsel %vm23, %v18, 0.0
  %28 = vadd.xlane.f32.xlu0 %v27
  %v29 = vpop.xlane.xlu0 %28
  %v30 = vsel %vm23, %v19, 0.0
  %31 = vadd.xlane.f32.xlu0 %v30
  %v32 = vpop.xlane.xlu0 %31
  %v33 = vsel %vm23, %v20, 0.0
  %34 = vadd.xlane.f32.xlu0 %v33
  %v35 = vpop.xlane.xlu0 %34
  %v36 = vrcp.pop 32.0
  %v37 = vmul.f32 %v26, %v36
  %v38 = vmul.f32 %v29, %v36
  %v39 = vmul.f32 %v32, %v36
  %v40 = vmul.f32 %v35, %v36
  %v41 = vsub.f32 %v17, %v37
  %v42 = vsub.f32 %v18, %v38
  %v43 = vsub.f32 %v19, %v39
  %v44 = vsub.f32 %v20, %v40
  %v45 = vmul.f32 %v41, %v41
  %v46 = vmul.f32 %v42, %v42
  %v47 = vmul.f32 %v43, %v43
  %v48 = vmul.f32 %v44, %v44
  %v49 = vsel %vm23, %v45, 0.0
  %50 = vadd.xlane.f32.xlu0 %v49
  %v51 = vpop.xlane.xlu0 %50
  %v52 = vsel %vm23, %v46, 0.0
  %53 = vadd.xlane.f32.xlu0 %v52
  %v54 = vpop.xlane.xlu0 %53
  %v55 = vsel %vm23, %v47, 0.0
  %56 = vadd.xlane.f32.xlu0 %v55
  %v57 = vpop.xlane.xlu0 %56
  %v58 = vsel %vm23, %v48, 0.0
  %59 = vadd.xlane.f32.xlu0 %v58
  %v60 = vpop.xlane.xlu0 %59
  %v61 = vmul.f32 %v51, %v36
  %v62 = vmul.f32 %v54, %v36
  %v63 = vmul.f32 %v57, %v36
  %v64 = vmul.f32 %v60, %v36
  %v65 = vadd.f32 %v61, 1e-05
  %v66 = vadd.f32 %v62, 1e-05
  %v67 = vadd.f32 %v63, 1e-05
  %v68 = vadd.f32 %v64, 1e-05
  %v69 = vrsqrt.pop %v65
  %v70 = vrsqrt.pop %v66
  %v71 = vrsqrt.pop %v67
  %v72 = vrsqrt.pop %v68
  %v73 = vmul.f32 %v41, %v69
  %v74 = vmul.f32 %v42, %v70
  %v75 = vmul.f32 %v43, %v71
  %v76 = vmul.f32 %v44, %v72
  %v78 = vlaneseq
  %v79 = vshrl.u32 %v78, 7
  %v80 = vsub.s32 0, %v79
  %v81 = vrot.slane %v21, %v80
  %v83 = vmul.f32 %v73, %v81
  %v84 = vmul.f32 %v74, %v81
  %v85 = vmul.f32 %v75, %v81
  %v86 = vmul.f32 %v76, %v81
  %v88 = vlaneseq
  %v89 = vshrl.u32 %v88, 7
  %v90 = vsub.s32 0, %v89
  %v91 = vrot.slane %v22, %v90
  %v93 = vadd.f32 %v83, %v91
  %v94 = vadd.f32 %v84, %v91
  %v95 = vadd.f32 %v85, %v91
  %v96 = vadd.f32 %v86, %v91
  %v97 = vld [vmem:[%s3] sm:$0xff]
  %v98 = vld [vmem:[%s3 + $0x8] sm:$0xff]
  %v99 = vld [vmem:[%s3 + $0x10] sm:$0xff]
  %v100 = vld [vmem:[%s3 + $0x18] sm:$0xff]
  %v102 = vsel %vm23, %v93, 0
  %v105 = vsel %vm23, %v94, 0
  %v108 = vsel %vm23, %v95, 0
  %v111 = vsel %vm23, %v96, 0
  %113 = vmatprep.subr.mxu0 0.0
  %114 = vmatpush1.msra.mxu0 %v97
  %115 = vmatprep.subr.mxu0 0.0
  %116 = vmatpush1.msra.mxu0 %v98
  %117 = vmatprep.subr.mxu0 0.0
  %118 = vmatpush1.msra.mxu0 %v99
  %119 = vmatprep.subr.mxu0 0.0
  %120 = vmatpush1.msra.mxu0 %v100
  %121 = vmatprep.subr.mxu0 0.0
  %122 = vmatpush1.msra.mxu0 0.0
  %123 = vmatprep.subr.mxu0 0.0
  %124 = vmatpush1.msra.mxu0 0.0
  %125 = vmatprep.subr.mxu0 0.0
  %126 = vmatpush1.msra.mxu0 0.0
  %127 = vmatprep.subr.mxu0 0.0
  %128 = vmatpush1.msra.mxu0 0.0
  %129 = vmatprep.subr.mxu0 0.0
  %130 = vmatpush1.msra.mxu0 0.0
  %131 = vmatprep.subr.mxu0 0.0
  %132 = vmatpush1.msra.mxu0 0.0
  %133 = vmatprep.subr.mxu0 0.0
  %134 = vmatpush1.msra.mxu0 0.0
  %135 = vmatprep.subr.mxu0 0.0
  %136 = vmatpush1.msra.mxu0 0.0
  %137 = vmatprep.subr.mxu0 0.0
  %138 = vmatpush1.msra.mxu0 0.0
  %139 = vmatprep.subr.mxu0 0.0
  %140 = vmatpush1.msra.mxu0 0.0
  %141 = vmatprep.subr.mxu0 0.0
  %142 = vmatpush1.msra.mxu0 0.0
  %143 = vmatprep.subr.mxu0 0.0
  %144 = vmatpush1.msra.mxu0 0.0
  %145 = vmatprep.subr.mxu0 0.0
  %146 = vmatpush1.msra.mxu0 0.0
  %147 = vmatprep.subr.mxu0 0.0
  %148 = vmatpush1.msra.mxu0 0.0
  %149 = vmatprep.subr.mxu0 0.0
  %150 = vmatpush1.msra.mxu0 0.0
  %151 = vmatprep.subr.mxu0 0.0
  %152 = vmatpush1.msra.mxu0 0.0
  %153 = vmatprep.subr.mxu0 0.0
  %154 = vmatpush1.msra.mxu0 0.0
  %155 = vmatprep.subr.mxu0 0.0
  %156 = vmatpush1.msra.mxu0 0.0
  %157 = vmatprep.subr.mxu0 0.0
  %158 = vmatpush1.msra.mxu0 0.0
  %159 = vmatprep.subr.mxu0 0.0
  %160 = vmatpush1.msra.mxu0 0.0
  %161 = vmatprep.subr.mxu0 0.0
  %162 = vmatpush1.msra.mxu0 0.0
  %163 = vmatprep.subr.mxu0 0.0
  %164 = vmatpush1.msra.mxu0 0.0
  %165 = vmatprep.subr.mxu0 0.0
  %166 = vmatpush1.msra.mxu0 0.0
  %167 = vmatprep.subr.mxu0 0.0
  %168 = vmatpush1.msra.mxu0 0.0
  %169 = vmatprep.subr.mxu0 0.0
  %170 = vmatpush1.msra.mxu0 0.0
  %171 = vmatprep.subr.mxu0 0.0
  %172 = vmatpush1.msra.mxu0 0.0
  %173 = vmatprep.subr.mxu0 0.0
  %174 = vmatpush1.msra.mxu0 0.0
  %175 = vmatprep.subr.mxu0 0.0
  %176 = vmatpush1.msra.mxu0 0.0
  %177 = vmatprep.mubr.f32.mxu0 0.0
  %178 = vmatmul.mubr.f32.gmra.mrb[0].mxu0 %v102
  %v179 = vpop.f32.mrb[0].mxu0
  %v180 = vadd.f32 0.0, %v179
  %v181 = vpop.f32.mrb[0].mxu0
  %182 = vmatprep.mubr.f32.mxu0 0.0
  %183 = vmatmul.mubr.f32.gmra.mrb[0].mxu0 %v105
  %v184 = vpop.f32.mrb[0].mxu0
  %v185 = vadd.f32 0.0, %v184
  %v186 = vpop.f32.mrb[0].mxu0
  %187 = vmatprep.mubr.f32.mxu0 0.0
  %188 = vmatmul.mubr.f32.gmra.mrb[0].mxu0 %v108
  %v189 = vpop.f32.mrb[0].mxu0
  %v190 = vadd.f32 0.0, %v189
  %v191 = vpop.f32.mrb[0].mxu0
  %192 = vmatprep.mubr.f32.mxu0 0.0
  %193 = vmatmul.mubr.f32.gmra.mrb[0].mxu0 %v111
  %v194 = vpop.f32.mrb[0].mxu0
  %v195 = vadd.f32 0.0, %v194
  %v196 = vpop.f32.mrb[0].mxu0
  %197 = vdwg.mxu0
  %vm198 = vcmask 523264
  %199 = vst.msk [vmem:[%s4] sm:$0xff] %vm198, %v180
  %200 = vst.msk [vmem:[%s4 + $0x8] sm:$0xff] %vm198, %v185
  %201 = vst.msk [vmem:[%s4 + $0x10] sm:$0xff] %vm198, %v190
  %202 = vst.msk [vmem:[%s4 + $0x18] sm:$0xff] %vm198, %v195
  // Predicated region
  $region18: #{transformer_block.11} parent=0 // pred_check
    _
  $region19: #{transformer_block.11} parent=0 // pred_check_branch
    %204 = sbr.rel (0) target = $region21
  $region20: #{transformer_block.11} parent=0 // pred_region
    _
  $region21: #{transformer_block.11} parent=0 // pred_fallthru
    _
  // Predicated region
  $region22: #{transformer_block.11} parent=0 // pred_check
    _
  $region23: #{transformer_block.11} parent=0 // pred_check_branch
    %206 = sbr.rel (0) target = $region25
  $region24: #{transformer_block.11} parent=0 // pred_region
    _
  $region25: #{transformer_block.11} parent=0 // pred_fallthru
    _

// kernel: transformer_block.10
$region0: #{transformer_block.10}
  #allocation0 [shape = 'u32[]', space=smem, size = 0x4, offset = 0x4, fixed_abs, tag = 'smem constant byte address 0x4 - core index']
  #allocation1 [shape = 'u32[144,128]{1,0:T(1,128)}', space=vmem, size = 0x12000, scoped, tag = 'internal scratch']
  %s0 = inlined_call_operand.vmem [shape: f32[32,32], index: 0, kind: input, shape index: {}]
  %s1 = inlined_call_operand.vmem [shape: f32[1,32], index: 1, kind: input, shape index: {}]
  %s2 = inlined_call_operand.vmem [shape: f32[1,32], index: 2, kind: input, shape index: {}]
  %s3 = inlined_call_operand.vmem [shape: f32[32,32], index: 3, kind: input, shape index: {}]
  %s4 = inlined_call_operand.vmem [shape: f32[32,32], index: 4, kind: output, shape index: {}]
  %s5 = sld [smem:[#allocation0]]
  $region26: #{transformer_block.10} parent=0
    _
  %s7 = ssub.s32 1, %s5
  %s8 = scalar_select 0, %s7, %s5
  // Predicated region
  $region2: #{transformer_block.10} parent=0 // pred_check
    _
  $region3: #{transformer_block.10} parent=0 // pred_check_branch
    %10 = sbr.rel (0) target = $region5
  $region4: #{transformer_block.10} parent=0 // pred_region
    _
  $region5: #{transformer_block.10} parent=0 // pred_fallthru
    _
  // Predicated region
  $region6: #{transformer_block.10} parent=0 // pred_check
    _
  $region7: #{transformer_block.10} parent=0 // pred_check_branch
    %12 = sbr.rel (0) target = $region9
  $region8: #{transformer_block.10} parent=0 // pred_region
    _
  $region9: #{transformer_block.10} parent=0 // pred_fallthru
    _
  // Predicated region
  $region10: #{transformer_block.10} parent=0 // pred_check
    _
  $region11: #{transformer_block.10} parent=0 // pred_check_branch
    %14 = sbr.rel (0) target = $region13
  $region12: #{transformer_block.10} parent=0 // pred_region
    _
  $region13: #{transformer_block.10} parent=0 // pred_fallthru
    _
  // Predicated region
  $region14: #{transformer_block.10} parent=0 // pred_check
    _
  $region15: #{transformer_block.10} parent=0 // pred_check_branch
    %16 = sbr.rel (0) target = $region17
  $region16: #{transformer_block.10} parent=0 // pred_region
    _
  $region17: #{transformer_block.10} parent=0 // pred_fallthru
    _
  %v17 = vld [vmem:[%s0] sm:$0xff]
  %v18 = vld [vmem:[%s0 + $0x8] sm:$0xff]
  %v19 = vld [vmem:[%s0 + $0x10] sm:$0xff]
  %v20 = vld [vmem:[%s0 + $0x18] sm:$0xff]
  %v21 = vld [vmem:[%s1] sm:$0x1]
  %v22 = vld [vmem:[%s2] sm:$0x1]
  %vm23 = vcmask 261120
  %v24 = vsel %vm23, %v17, 0.0
  %25 = vadd.xlane.f32.xlu0 %v24
  %v26 = vpop.xlane.xlu0 %25
  %v27 = vsel %vm23, %v18, 0.0
  %28 = vadd.xlane.f32.xlu0 %v27
  %v29 = vpop.xlane.xlu0 %28
  %v30 = vsel %vm23, %v19, 0.0
  %31 = vadd.xlane.f32.xlu0 %v30
  %v32 = vpop.xlane.xlu0 %31
  %v33 = vsel %vm23, %v20, 0.0
  %34 = vadd.xlane.f32.xlu0 %v33
  %v35 = vpop.xlane.xlu0 %34
  %v36 = vrcp.pop 32.0
  %v37 = vmul.f32 %v26, %v36
  %v38 = vmul.f32 %v29, %v36
  %v39 = vmul.f32 %v32, %v36
  %v40 = vmul.f32 %v35, %v36
  %v41 = vsub.f32 %v17, %v37
  %v42 = vsub.f32 %v18, %v38
  %v43 = vsub.f32 %v19, %v39
  %v44 = vsub.f32 %v20, %v40
  %v45 = vmul.f32 %v41, %v41
  %v46 = vmul.f32 %v42, %v42
  %v47 = vmul.f32 %v43, %v43
  %v48 = vmul.f32 %v44, %v44
  %v49 = vsel %vm23, %v45, 0.0
  %50 = vadd.xlane.f32.xlu0 %v49
  %v51 = vpop.xlane.xlu0 %50
  %v52 = vsel %vm23, %v46, 0.0
  %53 = vadd.xlane.f32.xlu0 %v52
  %v54 = vpop.xlane.xlu0 %53
  %v55 = vsel %vm23, %v47, 0.0
  %56 = vadd.xlane.f32.xlu0 %v55
  %v57 = vpop.xlane.xlu0 %56
  %v58 = vsel %vm23, %v48, 0.0
  %59 = vadd.xlane.f32.xlu0 %v58
  %v60 = vpop.xlane.xlu0 %59
  %v61 = vmul.f32 %v51, %v36
  %v62 = vmul.f32 %v54, %v36
  %v63 = vmul.f32 %v57, %v36
  %v64 = vmul.f32 %v60, %v36
  %v65 = vadd.f32 %v61, 1e-05
  %v66 = vadd.f32 %v62, 1e-05
  %v67 = vadd.f32 %v63, 1e-05
  %v68 = vadd.f32 %v64, 1e-05
  %v69 = vrsqrt.pop %v65
  %v70 = vrsqrt.pop %v66
  %v71 = vrsqrt.pop %v67
  %v72 = vrsqrt.pop %v68
  %v73 = vmul.f32 %v41, %v69
  %v74 = vmul.f32 %v42, %v70
  %v75 = vmul.f32 %v43, %v71
  %v76 = vmul.f32 %v44, %v72
  %v78 = vlaneseq
  %v79 = vshrl.u32 %v78, 7
  %v80 = vsub.s32 0, %v79
  %v81 = vrot.slane %v21, %v80
  %v83 = vmul.f32 %v73, %v81
  %v84 = vmul.f32 %v74, %v81
  %v85 = vmul.f32 %v75, %v81
  %v86 = vmul.f32 %v76, %v81
  %v88 = vlaneseq
  %v89 = vshrl.u32 %v88, 7
  %v90 = vsub.s32 0, %v89
  %v91 = vrot.slane %v22, %v90
  %v93 = vadd.f32 %v83, %v91
  %v94 = vadd.f32 %v84, %v91
  %v95 = vadd.f32 %v85, %v91
  %v96 = vadd.f32 %v86, %v91
  %v97 = vld [vmem:[%s3] sm:$0xff]
  %v98 = vld [vmem:[%s3 + $0x8] sm:$0xff]
  %v99 = vld [vmem:[%s3 + $0x10] sm:$0xff]
  %v100 = vld [vmem:[%s3 + $0x18] sm:$0xff]
  %v102 = vsel %vm23, %v93, 0
  %v105 = vsel %vm23, %v94, 0
  %v108 = vsel %vm23, %v95, 0
  %v111 = vsel %vm23, %v96, 0
  %113 = vmatprep.subr.mxu0 0.0
  %114 = vmatpush1.msra.mxu0 %v97
  %115 = vmatprep.subr.mxu0 0.0
  %116 = vmatpush1.msra.mxu0 %v98
  %117 = vmatprep.subr.mxu0 0.0
  %118 = vmatpush1.msra.mxu0 %v99
  %119 = vmatprep.subr.mxu0 0.0
  %120 = vmatpush1.msra.mxu0 %v100
  %121 = vmatprep.subr.mxu0 0.0
  %122 = vmatpush1.msra.mxu0 0.0
  %123 = vmatprep.subr.mxu0 0.0
  %124 = vmatpush1.msra.mxu0 0.0
  %125 = vmatprep.subr.mxu0 0.0
  %126 = vmatpush1.msra.mxu0 0.0
  %127 = vmatprep.subr.mxu0 0.0
  %128 = vmatpush1.msra.mxu0 0.0
  %129 = vmatprep.subr.mxu0 0.0
  %130 = vmatpush1.msra.mxu0 0.0
  %131 = vmatprep.subr.mxu0 0.0
  %132 = vmatpush1.msra.mxu0 0.0
  %133 = vmatprep.subr.mxu0 0.0
  %134 = vmatpush1.msra.mxu0 0.0
  %135 = vmatprep.subr.mxu0 0.0
  %136 = vmatpush1.msra.mxu0 0.0
  %137 = vmatprep.subr.mxu0 0.0
  %138 = vmatpush1.msra.mxu0 0.0
  %139 = vmatprep.subr.mxu0 0.0
  %140 = vmatpush1.msra.mxu0 0.0
  %141 = vmatprep.subr.mxu0 0.0
  %142 = vmatpush1.msra.mxu0 0.0
  %143 = vmatprep.subr.mxu0 0.0
  %144 = vmatpush1.msra.mxu0 0.0
  %145 = vmatprep.subr.mxu0 0.0
  %146 = vmatpush1.msra.mxu0 0.0
  %147 = vmatprep.subr.mxu0 0.0
  %148 = vmatpush1.msra.mxu0 0.0
  %149 = vmatprep.subr.mxu0 0.0
  %150 = vmatpush1.msra.mxu0 0.0
  %151 = vmatprep.subr.mxu0 0.0
  %152 = vmatpush1.msra.mxu0 0.0
  %153 = vmatprep.subr.mxu0 0.0
  %154 = vmatpush1.msra.mxu0 0.0
  %155 = vmatprep.subr.mxu0 0.0
  %156 = vmatpush1.msra.mxu0 0.0
  %157 = vmatprep.subr.mxu0 0.0
  %158 = vmatpush1.msra.mxu0 0.0
  %159 = vmatprep.subr.mxu0 0.0
  %160 = vmatpush1.msra.mxu0 0.0
  %161 = vmatprep.subr.mxu0 0.0
  %162 = vmatpush1.msra.mxu0 0.0
  %163 = vmatprep.subr.mxu0 0.0
  %164 = vmatpush1.msra.mxu0 0.0
  %165 = vmatprep.subr.mxu0 0.0
  %166 = vmatpush1.msra.mxu0 0.0
  %167 = vmatprep.subr.mxu0 0.0
  %168 = vmatpush1.msra.mxu0 0.0
  %169 = vmatprep.subr.mxu0 0.0
  %170 = vmatpush1.msra.mxu0 0.0
  %171 = vmatprep.subr.mxu0 0.0
  %172 = vmatpush1.msra.mxu0 0.0
  %173 = vmatprep.subr.mxu0 0.0
  %174 = vmatpush1.msra.mxu0 0.0
  %175 = vmatprep.subr.mxu0 0.0
  %176 = vmatpush1.msra.mxu0 0.0
  %177 = vmatprep.mubr.f32.mxu0 0.0
  %178 = vmatmul.mubr.f32.gmra.mrb[0].mxu0 %v102
  %v179 = vpop.f32.mrb[0].mxu0
  %v180 = vadd.f32 0.0, %v179
  %v181 = vpop.f32.mrb[0].mxu0
  %182 = vmatprep.mubr.f32.mxu0 0.0
  %183 = vmatmul.mubr.f32.gmra.mrb[0].mxu0 %v105
  %v184 = vpop.f32.mrb[0].mxu0
  %v185 = vadd.f32 0.0, %v184
  %v186 = vpop.f32.mrb[0].mxu0
  %187 = vmatprep.mubr.f32.mxu0 0.0
  %188 = vmatmul.mubr.f32.gmra.mrb[0].mxu0 %v108
  %v189 = vpop.f32.mrb[0].mxu0
  %v190 = vadd.f32 0.0, %v189
  %v191 = vpop.f32.mrb[0].mxu0
  %192 = vmatprep.mubr.f32.mxu0 0.0
  %193 = vmatmul.mubr.f32.gmra.mrb[0].mxu0 %v111
  %v194 = vpop.f32.mrb[0].mxu0
  %v195 = vadd.f32 0.0, %v194
  %v196 = vpop.f32.mrb[0].mxu0
  %197 = vdwg.mxu0
  %198 = vst.msk [vmem:[%s4] sm:$0xff] %vm23, %v180
  %199 = vst.msk [vmem:[%s4 + $0x8] sm:$0xff] %vm23, %v185
  %200 = vst.msk [vmem:[%s4 + $0x10] sm:$0xff] %vm23, %v190
  %201 = vst.msk [vmem:[%s4 + $0x18] sm:$0xff] %vm23, %v195
  // Predicated region
  $region18: #{transformer_block.10} parent=0 // pred_check
    _
  $region19: #{transformer_block.10} parent=0 // pred_check_branch
    %203 = sbr.rel (0) target = $region21
  $region20: #{transformer_block.10} parent=0 // pred_region
    _
  $region21: #{transformer_block.10} parent=0 // pred_fallthru
    _
  // Predicated region
  $region22: #{transformer_block.10} parent=0 // pred_check
    _
  $region23: #{transformer_block.10} parent=0 // pred_check_branch
    %205 = sbr.rel (0) target = $region25
  $region24: #{transformer_block.10} parent=0 // pred_region
    _
  $region25: #{transformer_block.10} parent=0 // pred_fallthru
    _

// kernel: transformer_block.12
$region0: #{transformer_block.12}
  #allocation0 [shape = 'u32[]', space=smem, size = 0x4, offset = 0x4, fixed_abs, tag = 'smem constant byte address 0x4 - core index']
  #allocation1 [shape = 'u32[144,128]{1,0:T(1,128)}', space=vmem, size = 0x12000, scoped, tag = 'internal scratch']
  %s0 = inlined_call_operand.vmem [shape: f32[2,16,32], index: 0, kind: input, shape index: {}]
  %s1 = inlined_call_operand.vmem [shape: f32[2,16,32], index: 1, kind: input, shape index: {}]
  %s2 = inlined_call_operand.vmem [shape: f32[2,16,32], index: 2, kind: input, shape index: {}]
  %s3 = inlined_call_operand.vmem [shape: f32[2,16,32], index: 3, kind: output, shape index: {}]
  %s4 = sld [smem:[#allocation0]]
  $region45: #{transformer_block.12} parent=0
    _
  %s6 = ssub.s32 1, %s4
  %s7 = scalar_select 0, %s6, %s4
  loop: start=0, step=1, limit=4
  $region2: #{transformer_block.12} parent=0 // loop_pre_header
    _
  $region3: #{transformer_block.12} parent=0 // loop_header
    %s9 = sphi 0, %s13
    %p10 = scmp.ge.s32.totalorder %s9, 4
    %s16 = sphi 0, %s28
    %s17 = sphi 0, %s24
    %s18 = sphi 0, %s16
    %s19 = sphi 0, %s17
    %s20 = sphi 0, %s18
    %s21 = sphi 0, %s19
    %s33 = sphi 0, %s35
    %s36 = sphi 0, %s33
    %s37 = sphi 0, %s36
    %s53 = sphi 0, %s37
    %s59 = sphi 0, %s61
    %s62 = sphi 0, %s59
    %s63 = sphi 0, %s62
    %s79 = sphi 0, %s63
    %s85 = sphi 0, %s87
    %s88 = sphi 0, %s85
    %s89 = sphi 0, %s88
    %s105 = sphi 0, %s89
    %s113 = sphi 0, %s115
    %s116 = sphi 0, %s113
    %s117 = sphi 0, %s116
    %s133 = sphi 0, %s117
  $region4: #{transformer_block.12} parent=0 // loop_header_branch
    %12 = sbr.rel (%p10) target = $region8
  $region5: #{transformer_block.12} parent=0 // loop_body
    %s14 = ssub.s32 %s9, 1
    %s15 = ssub.s32 %s9, 2
    %s22 = sadd.s32 1, %s17
    %p23 = scmp.ge.s32.totalorder %s22, 1
    %s24 = scalar_select %p23, 0, %s22
    %s25 = sadd.s32 1, %s16
    %s26 = scalar_select %p23, %s25, %s16
    %p27 = scmp.ge.s32.totalorder %s26, 2
    %s28 = scalar_select %p27, 0, %s26
    %s29 = ssub.s32 %s16, %s28
    %s30 = ssub.s32 %s17, %s24
    %s31 = sor.u32 %s29, %s30
    %p32 = scmp.eq.s32.totalorder %s31, 0
    %s34 = sadd.s32 %s33, 1
    %s35 = scalar_select %p32, %s33, %s34
    %p38 = pneg %p32
    %p39 = scmp.eq.s32.totalorder %s9, 1
    %p40 = por %p38, %p39
    %p41 = scmp.ne.s32.totalorder %s33, %s36
    %p42 = scmp.eq.s32.totalorder %s9, 0
    %p43 = por %p41, %p42
    %p44 = scmp.ne.s32.totalorder %s33, %s36
    %p45 = scmp.eq.s32.totalorder %s14, 1
    %p46 = por %p44, %p45
    %p47 = scmp.ne.s32.totalorder %s36, %s37
    %p48 = scmp.eq.s32.totalorder %s14, 0
    %p49 = por %p47, %p48
    %p50 = scmp.ne.s32.totalorder %s36, %s37
    %p51 = scmp.eq.s32.totalorder %s15, 1
    %p52 = por %p50, %p51
    %p54 = scmp.ne.s32.totalorder %s37, %s53
    %p55 = scmp.eq.s32.totalorder %s15, 0
    %p56 = por %p54, %p55
    %s57 = ssub.s32 %s16, %s28
    %p58 = scmp.eq.s32.totalorder %s57, 0
    %s60 = sadd.s32 %s59, 1
    %s61 = scalar_select %p58, %s59, %s60
    %p64 = pneg %p58
    %p65 = scmp.eq.s32.totalorder %s9, 1
    %p66 = por %p64, %p65
    %p67 = scmp.ne.s32.totalorder %s59, %s62
    %p68 = scmp.eq.s32.totalorder %s9, 0
    %p69 = por %p67, %p68
    %p70 = scmp.ne.s32.totalorder %s59, %s62
    %p71 = scmp.eq.s32.totalorder %s14, 1
    %p72 = por %p70, %p71
    %p73 = scmp.ne.s32.totalorder %s62, %s63
    %p74 = scmp.eq.s32.totalorder %s14, 0
    %p75 = por %p73, %p74
    %p76 = scmp.ne.s32.totalorder %s62, %s63
    %p77 = scmp.eq.s32.totalorder %s15, 1
    %p78 = por %p76, %p77
    %p80 = scmp.ne.s32.totalorder %s63, %s79
    %p81 = scmp.eq.s32.totalorder %s15, 0
    %p82 = por %p80, %p81
    %s83 = ssub.s32 %s16, %s28
    %p84 = scmp.eq.s32.totalorder %s83, 0
    %s86 = sadd.s32 %s85, 1
    %s87 = scalar_select %p84, %s85, %s86
    %p90 = pneg %p84
    %p91 = scmp.eq.s32.totalorder %s9, 1
    %p92 = por %p90, %p91
    %p93 = scmp.ne.s32.totalorder %s85, %s88
    %p94 = scmp.eq.s32.totalorder %s9, 0
    %p95 = por %p93, %p94
    %p96 = scmp.ne.s32.totalorder %s85, %s88
    %p97 = scmp.eq.s32.totalorder %s14, 1
    %p98 = por %p96, %p97
    %p99 = scmp.ne.s32.totalorder %s88, %s89
    %p100 = scmp.eq.s32.totalorder %s14, 0
    %p101 = por %p99, %p100
    %p102 = scmp.ne.s32.totalorder %s88, %s89
    %p103 = scmp.eq.s32.totalorder %s15, 1
    %p104 = por %p102, %p103
    %p106 = scmp.ne.s32.totalorder %s89, %s105
    %p107 = scmp.eq.s32.totalorder %s15, 0
    %p108 = por %p106, %p107
    %s109 = ssub.s32 %s16, %s28
    %s110 = ssub.s32 %s17, %s24
    %s111 = sor.u32 %s109, %s110
    %p112 = scmp.eq.s32.totalorder %s111, 0
    %s114 = sadd.s32 %s113, 1
    %s115 = scalar_select %p112, %s113, %s114
    %p118 = pneg %p112
    %p119 = scmp.eq.s32.totalorder %s9, 1
    %p120 = por %p118, %p119
    %p121 = scmp.ne.s32.totalorder %s113, %s116
    %p122 = scmp.eq.s32.totalorder %s9, 0
    %p123 = por %p121, %p122
    %p124 = scmp.ne.s32.totalorder %s113, %s116
    %p125 = scmp.eq.s32.totalorder %s14, 1
    %p126 = por %p124, %p125
    %p127 = scmp.ne.s32.totalorder %s116, %s117
    %p128 = scmp.eq.s32.totalorder %s14, 0
    %p129 = por %p127, %p128
    %p130 = scmp.ne.s32.totalorder %s116, %s117
    %p131 = scmp.eq.s32.totalorder %s15, 1
    %p132 = por %p130, %p131
    %p134 = scmp.ne.s32.totalorder %s117, %s133
    %p135 = scmp.eq.s32.totalorder %s15, 0
    %p136 = por %p134, %p135
    %p137 = scmp.le.s32.totalorder 1, %s9
    %p138 = scmp.lt.s32.totalorder %s9, 3
    %p139 = pnand %p137, %p138
    %p140 = pneg %p139
    // Predicated region
    $region9: #{transformer_block.12} parent=5 // pred_check
      _
    $region10: #{transformer_block.12} parent=5 // pred_check_branch
      %142 = sbr.rel (%p139) target = $region12
    $region11: #{transformer_block.12} parent=5 // pred_region
      %s143 = ssub.s32 %s9, 1
    $region12: #{transformer_block.12} parent=5 // pred_fallthru
      _
    %p144 = scmp.lt.s32.totalorder %s9, 2
    // Predicated region
    $region13: #{transformer_block.12} parent=5 // pred_check
      %p145 = pneg %p144
    $region14: #{transformer_block.12} parent=5 // pred_check_branch
      %147 = sbr.rel (%p145) target = $region16
    $region15: #{transformer_block.12} parent=5 // pred_region
      // Predicated region
      $region17: #{transformer_block.12} parent=15 // pred_check
        %p148 = pneg %p43
      $region18: #{transformer_block.12} parent=15 // pred_check_branch
        %150 = sbr.rel (%p148) target = $region20
      $region19: #{transformer_block.12} parent=15 // pred_region
        %s151 = smul.u32 2, %s17
        %p152 = scmp.lt.s32.totalorder %s16, 1
        %s153 = scalar_select %p152, %s16, 1
        %p154 = scmp.lt.s32.totalorder %s151, 1
        %s155 = scalar_select %p154, %s151, 1
        %s156 = smul.addr %s153, 2
        %s157 = sadd.s32 %s155, %s156
        %s158 = smul.addr %s157, 8
        %s159 = scalar_lea.vmem %s0, %s158
        %s160 = smul.u32 2, %s17
      $region20: #{transformer_block.12} parent=15 // pred_fallthru
        _
      // Predicated region
      $region21: #{transformer_block.12} parent=15 // pred_check
        %p161 = pneg %p69
      $region22: #{transformer_block.12} parent=15 // pred_check_branch
        %163 = sbr.rel (%p161) target = $region24
      $region23: #{transformer_block.12} parent=15 // pred_region
        %p164 = scmp.lt.s32.totalorder %s16, 1
        %s165 = scalar_select %p164, %s16, 1
        %s166 = smul.addr %s165, 2
        %s167 = smul.addr %s166, 8
        %s168 = scalar_lea.vmem %s1, %s167
      $region24: #{transformer_block.12} parent=15 // pred_fallthru
        _
      // Predicated region
      $region25: #{transformer_block.12} parent=15 // pred_check
        %p169 = pneg %p95
      $region26: #{transformer_block.12} parent=15 // pred_check_branch
        %171 = sbr.rel (%p169) target = $region28
      $region27: #{transformer_block.12} parent=15 // pred_region
        %p172 = scmp.lt.s32.totalorder %s16, 1
        %s173 = scalar_select %p172, %s16, 1
        %s174 = smul.addr %s173, 2
        %s175 = smul.addr %s174, 8
        %s176 = scalar_lea.vmem %s2, %s175
      $region28: #{transformer_block.12} parent=15 // pred_fallthru
        _
    $region16: #{transformer_block.12} parent=5 // pred_fallthru
      _
    %p177 = scmp.le.s32.totalorder 1, %s9
    %p178 = scmp.lt.s32.totalorder %s9, 3
    %p179 = pnand %p177, %p178
    %p180 = pneg %p179
    // Predicated region
    $region29: #{transformer_block.12} parent=5 // pred_check
      _
    $region30: #{transformer_block.12} parent=5 // pred_check_branch
      %182 = sbr.rel (%p179) target = $region32
    $region31: #{transformer_block.12} parent=5 // pred_region
      %s183 = ssub.s32 %s9, 1
      %s184 = smul.u32 2, %s19
      %p185 = scmp.lt.s32.totalorder %s18, 1
      %s186 = scalar_select %p185, %s18, 1
      %p187 = scmp.lt.s32.totalorder %s184, 1
      %s188 = scalar_select %p187, %s184, 1
      %s189 = smul.addr %s186, 2
      %s190 = sadd.s32 %s188, %s189
      %s191 = smul.addr %s190, 8
      %s192 = scalar_lea.vmem %s0, %s191
      %p193 = pneg %p49
      %p194 = pneg %p46
      %p195 = scmp.lt.s32.totalorder %s18, 1
      %s196 = scalar_select %p195, %s18, 1
      %s197 = smul.addr %s196, 2
      %s198 = smul.addr %s197, 8
      %s199 = scalar_lea.vmem %s1, %s198
      %p200 = pneg %p75
      %p201 = pneg %p72
      %p202 = scmp.lt.s32.totalorder %s18, 1
      %s203 = scalar_select %p202, %s18, 1
      %s204 = smul.addr %s203, 2
      %s205 = smul.addr %s204, 8
      %s206 = scalar_lea.vmem %s2, %s205
      %p207 = pneg %p101
      %p208 = pneg %p98
      %p209 = pneg %p129
      %p210 = pneg %p126
      %s211 = smul.u32 2, %s19
      %p212 = scmp.lt.s32.totalorder %s18, 1
      %s213 = scalar_select %p212, %s18, 1
      %p214 = scmp.lt.s32.totalorder %s211, 1
      %s215 = scalar_select %p214, %s211, 1
      %s216 = smul.addr %s213, 2
      %s217 = sadd.s32 %s215, %s216
      %s218 = smul.addr %s217, 8
      %s219 = scalar_lea.vmem %s3, %s218
      %s220 = smul.u32 2, %s19
      %p221 = scmp.lt.s32.totalorder %s18, 1
      %s222 = scalar_select %p221, %s18, 1
      %p223 = scmp.lt.s32.totalorder %s220, 1
      %s224 = scalar_select %p223, %s220, 1
      %s225 = smul.addr %s222, 2
      %s226 = sadd.s32 %s224, %s225
      %s227 = smul.addr %s226, 8
      %s228 = scalar_lea.vmem %s0, %s227
      %s229 = smul.u32 2, %s19
      %p230 = scmp.lt.s32.totalorder %s18, 1
      %s231 = scalar_select %p230, %s18, 1
      %s232 = smul.addr %s231, 2
      %s233 = smul.addr %s232, 8
      %s234 = scalar_lea.vmem %s1, %s233
      %p235 = scmp.lt.s32.totalorder %s18, 1
      %s236 = scalar_select %p235, %s18, 1
      %s237 = smul.addr %s236, 2
      %s238 = smul.addr %s237, 8
      %s239 = scalar_lea.vmem %s2, %s238
      %s240 = smul.u32 2, %s19
      %p241 = scmp.lt.s32.totalorder %s18, 1
      %s242 = scalar_select %p241, %s18, 1
      %p243 = scmp.lt.s32.totalorder %s240, 1
      %s244 = scalar_select %p243, %s240, 1
      %s245 = smul.addr %s242, 2
      %s246 = sadd.s32 %s244, %s245
      %s247 = smul.addr %s246, 8
      %s248 = scalar_lea.vmem %s3, %s247
      %s249 = smul.u32 2, %s19
      %v250 = vld [vmem:[%s228] sm:$0xff]
      %v251 = vld [vmem:[%s228 + $0x8] sm:$0xff]
      %v252 = vld [vmem:[%s234] sm:$0xff]
      %v253 = vld [vmem:[%s234 + $0x8] sm:$0xff]
      %v254 = vld [vmem:[%s239] sm:$0xff]
      %v255 = vld [vmem:[%s239 + $0x8] sm:$0xff]
      %vm256 = vcmask 130048
      %v258 = vsel %vm256, %v250, 0
      %v261 = vsel %vm256, %v251, 0
      %v264 = vsel %vm256, %v252, 0
      %v267 = vsel %vm256, %v253, 0
      %269 = vmatprep.subr.mxu0 0.0
      %270 = vmatpush1.xpose.msra.mxu0 %v264
      %271 = vmatprep.subr.mxu0 0.0
      %272 = vmatpush1.xpose.msra.mxu0 %v267
      %273 = vmatprep.subr.mxu0 0.0
      %274 = vmatpush1.xpose.msra.mxu0 0.0
      %275 = vmatprep.subr.mxu0 0.0
      %276 = vmatpush1.xpose.msra.mxu0 0.0
      %277 = vmatprep.subr.mxu0 0.0
      %278 = vmatpush1.xpose.msra.mxu0 0.0
      %279 = vmatprep.subr.mxu0 0.0
      %280 = vmatpush1.xpose.msra.mxu0 0.0
      %281 = vmatprep.subr.mxu0 0.0
      %282 = vmatpush1.xpose.msra.mxu0 0.0
      %283 = vmatprep.subr.mxu0 0.0
      %284 = vmatpush1.xpose.msra.mxu0 0.0
      %285 = vmatprep.subr.mxu0 0.0
      %286 = vmatpush1.xpose.msra.mxu0 0.0
      %287 = vmatprep.subr.mxu0 0.0
      %288 = vmatpush1.xpose.msra.mxu0 0.0
      %289 = vmatprep.subr.mxu0 0.0
      %290 = vmatpush1.xpose.msra.mxu0 0.0
      %291 = vmatprep.subr.mxu0 0.0
      %292 = vmatpush1.xpose.msra.mxu0 0.0
      %293 = vmatprep.subr.mxu0 0.0
      %294 = vmatpush1.xpose.msra.mxu0 0.0
      %295 = vmatprep.subr.mxu0 0.0
      %296 = vmatpush1.xpose.msra.mxu0 0.0
      %297 = vmatprep.subr.mxu0 0.0
      %298 = vmatpush1.xpose.msra.mxu0 0.0
      %299 = vmatprep.subr.mxu0 0.0
      %300 = vmatpush1.xpose.msra.mxu0 0.0
      %301 = vmatprep.subr.mxu0 0.0
      %302 = vmatpush1.xpose.msra.mxu0 0.0
      %303 = vmatprep.subr.mxu0 0.0
      %304 = vmatpush1.xpose.msra.mxu0 0.0
      %305 = vmatprep.subr.mxu0 0.0
      %306 = vmatpush1.xpose.msra.mxu0 0.0
      %307 = vmatprep.subr.mxu0 0.0
      %308 = vmatpush1.xpose.msra.mxu0 0.0
      %309 = vmatprep.subr.mxu0 0.0
      %310 = vmatpush1.xpose.msra.mxu0 0.0
      %311 = vmatprep.subr.mxu0 0.0
      %312 = vmatpush1.xpose.msra.mxu0 0.0
      %313 = vmatprep.subr.mxu0 0.0
      %314 = vmatpush1.xpose.msra.mxu0 0.0
      %315 = vmatprep.subr.mxu0 0.0
      %316 = vmatpush1.xpose.msra.mxu0 0.0
      %317 = vmatprep.subr.mxu0 0.0
      %318 = vmatpush1.xpose.msra.mxu0 0.0
      %319 = vmatprep.subr.mxu0 0.0
      %320 = vmatpush1.xpose.msra.mxu0 0.0
      %321 = vmatprep.subr.mxu0 0.0
      %322 = vmatpush1.xpose.msra.mxu0 0.0
      %323 = vmatprep.subr.mxu0 0.0
      %324 = vmatpush1.xpose.msra.mxu0 0.0
      %325 = vmatprep.subr.mxu0 0.0
      %326 = vmatpush1.xpose.msra.mxu0 0.0
      %327 = vmatprep.subr.mxu0 0.0
      %328 = vmatpush1.xpose.msra.mxu0 0.0
      %329 = vmatprep.subr.mxu0 0.0
      %330 = vmatpush1.xpose.msra.mxu0 0.0
      %331 = vmatprep.subr.mxu0 0.0
      %332 = vmatpush1.xpose.msra.mxu0 0.0
      %333 = vmatprep.mubr.f32.mxu0 0.0
      %334 = vmatmul.mubr.f32.gmra.mrb[0].mxu0 %v258
      %v335 = vpop.f32.mrb[0].mxu0
      %v336 = vadd.f32 0.0, %v335
      %v337 = vpop.f32.mrb[0].mxu0
      %338 = vmatprep.mubr.f32.mxu0 0.0
      %339 = vmatmul.mubr.f32.gmra.mrb[0].mxu0 %v261
      %v340 = vpop.f32.mrb[0].mxu0
      %v341 = vadd.f32 0.0, %v340
      %v342 = vpop.f32.mrb[0].mxu0
      %343 = vdwg.mxu0
      %v344 = vmul.f32 %v336, 0.25
      %v345 = vmul.f32 %v341, 0.25
      %v346 = vsel %vm256, %v344, -inf
      %347 = vmax.xlane.f32.xlu0 %v346
      %v348 = vpop.xlane.xlu0 %347
      %v349 = vsel %vm256, %v345, -inf
      %350 = vmax.xlane.f32.xlu0 %v349
      %v351 = vpop.xlane.xlu0 %350
      %v352 = vsub.f32 %v344, %v348
      %v353 = vsub.f32 %v345, %v351
      %v354 = vmul.f32 %v352, 1.442695
      %v355 = vpow.pop %v354
      %v356 = vmul.f32 %v353, 1.442695
      %v357 = vpow.pop %v356
      %v358 = vsel %vm256, %v355, 0.0
      %359 = vadd.xlane.f32.xlu0 %v358
      %v360 = vpop.xlane.xlu0 %359
      %v361 = vsel %vm256, %v357, 0.0
      %362 = vadd.xlane.f32.xlu0 %v361
      %v363 = vpop.xlane.xlu0 %362
      %v365 = vsel %vm256, %v355, 0
      %v368 = vsel %vm256, %v357, 0
      %370 = vmatprep.subr.mxu0 0.0
      %371 = vmatpush1.msra.mxu0 %v254
      %372 = vmatprep.subr.mxu0 0.0
      %373 = vmatpush1.msra.mxu0 %v255
      %374 = vmatprep.subr.mxu0 0.0
      %375 = vmatpush1.msra.mxu0 0.0
      %376 = vmatprep.subr.mxu0 0.0
      %377 = vmatpush1.msra.mxu0 0.0
      %378 = vmatprep.subr.mxu0 0.0
      %379 = vmatpush1.msra.mxu0 0.0
      %380 = vmatprep.subr.mxu0 0.0
      %381 = vmatpush1.msra.mxu0 0.0
      %382 = vmatprep.subr.mxu0 0.0
      %383 = vmatpush1.msra.mxu0 0.0
      %384 = vmatprep.subr.mxu0 0.0
      %385 = vmatpush1.msra.mxu0 0.0
      %386 = vmatprep.subr.mxu0 0.0
      %387 = vmatpush1.msra.mxu0 0.0
      %388 = vmatprep.subr.mxu0 0.0
      %389 = vmatpush1.msra.mxu0 0.0
      %390 = vmatprep.subr.mxu0 0.0
      %391 = vmatpush1.msra.mxu0 0.0
      %392 = vmatprep.subr.mxu0 0.0
      %393 = vmatpush1.msra.mxu0 0.0
      %394 = vmatprep.subr.mxu0 0.0
      %395 = vmatpush1.msra.mxu0 0.0
      %396 = vmatprep.subr.mxu0 0.0
      %397 = vmatpush1.msra.mxu0 0.0
      %398 = vmatprep.subr.mxu0 0.0
      %399 = vmatpush1.msra.mxu0 0.0
      %400 = vmatprep.subr.mxu0 0.0
      %401 = vmatpush1.msra.mxu0 0.0
      %402 = vmatprep.subr.mxu0 0.0
      %403 = vmatpush1.msra.mxu0 0.0
      %404 = vmatprep.subr.mxu0 0.0
      %405 = vmatpush1.msra.mxu0 0.0
      %406 = vmatprep.subr.mxu0 0.0
      %407 = vmatpush1.msra.mxu0 0.0
      %408 = vmatprep.subr.mxu0 0.0
      %409 = vmatpush1.msra.mxu0 0.0
      %410 = vmatprep.subr.mxu0 0.0
      %411 = vmatpush1.msra.mxu0 0.0
      %412 = vmatprep.subr.mxu0 0.0
      %413 = vmatpush1.msra.mxu0 0.0
      %414 = vmatprep.subr.mxu0 0.0
      %415 = vmatpush1.msra.mxu0 0.0
      %416 = vmatprep.subr.mxu0 0.0
      %417 = vmatpush1.msra.mxu0 0.0
      %418 = vmatprep.subr.mxu0 0.0
      %419 = vmatpush1.msra.mxu0 0.0
      %420 = vmatprep.subr.mxu0 0.0
      %421 = vmatpush1.msra.mxu0 0.0
      %422 = vmatprep.subr.mxu0 0.0
      %423 = vmatpush1.msra.mxu0 0.0
      %424 = vmatprep.subr.mxu0 0.0
      %425 = vmatpush1.msra.mxu0 0.0
      %426 = vmatprep.subr.mxu0 0.0
      %427 = vmatpush1.msra.mxu0 0.0
      %428 = vmatprep.subr.mxu0 0.0
      %429 = vmatpush1.msra.mxu0 0.0
      %430 = vmatprep.subr.mxu0 0.0
      %431 = vmatpush1.msra.mxu0 0.0
      %432 = vmatprep.subr.mxu0 0.0
      %433 = vmatpush1.msra.mxu0 0.0
      %434 = vmatprep.mubr.f32.mxu0 0.0
      %435 = vmatmul.mubr.f32.gmra.mrb[0].mxu0 %v365
      %v436 = vpop.f32.mrb[0].mxu0
      %v437 = vadd.f32 0.0, %v436
      %v438 = vpop.f32.mrb[0].mxu0
      %439 = vmatprep.mubr.f32.mxu0 0.0
      %440 = vmatmul.mubr.f32.gmra.mrb[0].mxu0 %v368
      %v441 = vpop.f32.mrb[0].mxu0
      %v442 = vadd.f32 0.0, %v441
      %v443 = vpop.f32.mrb[0].mxu0
      %444 = vdwg.mxu0
      %v445 = vrcp.pop %v360
      %v446 = vrcp.pop %v363
      %v447 = vmul.f32 %v437, %v445
      %v448 = vmul.f32 %v442, %v446
      %449 = vrot.lane.b32.xlu0 %v250, 112
      %v450 = vpop.permute.xlu0 %449
      %451 = vrot.lane.b32.xlu0 %v251, 112
      %v452 = vpop.permute.xlu0 %451
      %453 = vrot.lane.b32.xlu0 %v252, 112
      %v454 = vpop.permute.xlu0 %453
      %455 = vrot.lane.b32.xlu0 %v253, 112
      %v456 = vpop.permute.xlu0 %455
      %v457 = vsel %vm256, %v450, 0
      %v459 = vsel %vm256, %v452, 0
      %v461 = vsel %vm256, %v454, 0
      %v463 = vsel %vm256, %v456, 0
      %465 = vmatprep.subr.mxu0 0.0
      %466 = vmatpush1.xpose.msra.mxu0 %v461
      %467 = vmatprep.subr.mxu0 0.0
      %468 = vmatpush1.xpose.msra.mxu0 %v463
      %469 = vmatprep.subr.mxu0 0.0
      %470 = vmatpush1.xpose.msra.mxu0 0.0
      %471 = vmatprep.subr.mxu0 0.0
      %472 = vmatpush1.xpose.msra.mxu0 0.0
      %473 = vmatprep.subr.mxu0 0.0
      %474 = vmatpush1.xpose.msra.mxu0 0.0
      %475 = vmatprep.subr.mxu0 0.0
      %476 = vmatpush1.xpose.msra.mxu0 0.0
      %477 = vmatprep.subr.mxu0 0.0
      %478 = vmatpush1.xpose.msra.mxu0 0.0
      %479 = vmatprep.subr.mxu0 0.0
      %480 = vmatpush1.xpose.msra.mxu0 0.0
      %481 = vmatprep.subr.mxu0 0.0
      %482 = vmatpush1.xpose.msra.mxu0 0.0
      %483 = vmatprep.subr.mxu0 0.0
      %484 = vmatpush1.xpose.msra.mxu0 0.0
      %485 = vmatprep.subr.mxu0 0.0
      %486 = vmatpush1.xpose.msra.mxu0 0.0
      %487 = vmatprep.subr.mxu0 0.0
      %488 = vmatpush1.xpose.msra.mxu0 0.0
      %489 = vmatprep.subr.mxu0 0.0
      %490 = vmatpush1.xpose.msra.mxu0 0.0
      %491 = vmatprep.subr.mxu0 0.0
      %492 = vmatpush1.xpose.msra.mxu0 0.0
      %493 = vmatprep.subr.mxu0 0.0
      %494 = vmatpush1.xpose.msra.mxu0 0.0
      %495 = vmatprep.subr.mxu0 0.0
      %496 = vmatpush1.xpose.msra.mxu0 0.0
      %497 = vmatprep.subr.mxu0 0.0
      %498 = vmatpush1.xpose.msra.mxu0 0.0
      %499 = vmatprep.subr.mxu0 0.0
      %500 = vmatpush1.xpose.msra.mxu0 0.0
      %501 = vmatprep.subr.mxu0 0.0
      %502 = vmatpush1.xpose.msra.mxu0 0.0
      %503 = vmatprep.subr.mxu0 0.0
      %504 = vmatpush1.xpose.msra.mxu0 0.0
      %505 = vmatprep.subr.mxu0 0.0
      %506 = vmatpush1.xpose.msra.mxu0 0.0
      %507 = vmatprep.subr.mxu0 0.0
      %508 = vmatpush1.xpose.msra.mxu0 0.0
      %509 = vmatprep.subr.mxu0 0.0
      %510 = vmatpush1.xpose.msra.mxu0 0.0
      %511 = vmatprep.subr.mxu0 0.0
      %512 = vmatpush1.xpose.msra.mxu0 0.0
      %513 = vmatprep.subr.mxu0 0.0
      %514 = vmatpush1.xpose.msra.mxu0 0.0
      %515 = vmatprep.subr.mxu0 0.0
      %516 = vmatpush1.xpose.msra.mxu0 0.0
      %517 = vmatprep.subr.mxu0 0.0
      %518 = vmatpush1.xpose.msra.mxu0 0.0
      %519 = vmatprep.subr.mxu0 0.0
      %520 = vmatpush1.xpose.msra.mxu0 0.0
      %521 = vmatprep.subr.mxu0 0.0
      %522 = vmatpush1.xpose.msra.mxu0 0.0
      %523 = vmatprep.subr.mxu0 0.0
      %524 = vmatpush1.xpose.msra.mxu0 0.0
      %525 = vmatprep.subr.mxu0 0.0
      %526 = vmatpush1.xpose.msra.mxu0 0.0
      %527 = vmatprep.subr.mxu0 0.0
      %528 = vmatpush1.xpose.msra.mxu0 0.0
      %529 = vmatprep.mubr.f32.mxu0 0.0
      %530 = vmatmul.mubr.f32.gmra.mrb[0].mxu0 %v457
      %v531 = vpop.f32.mrb[0].mxu0
      %v532 = vadd.f32 0.0, %v531
      %v533 = vpop.f32.mrb[0].mxu0
      %534 = vmatprep.mubr.f32.mxu0 0.0
      %535 = vmatmul.mubr.f32.gmra.mrb[0].mxu0 %v459
      %v536 = vpop.f32.mrb[0].mxu0
      %v537 = vadd.f32 0.0, %v536
      %v538 = vpop.f32.mrb[0].mxu0
      %539 = vdwg.mxu0
      %v540 = vmul.f32 %v532, 0.25
      %v541 = vmul.f32 %v537, 0.25
      %v542 = vsel %vm256, %v540, -inf
      %543 = vmax.xlane.f32.xlu0 %v542
      %v544 = vpop.xlane.xlu0 %543
      %v545 = vsel %vm256, %v541, -inf
      %546 = vmax.xlane.f32.xlu0 %v545
      %v547 = vpop.xlane.xlu0 %546
      %v548 = vsub.f32 %v540, %v544
      %v549 = vsub.f32 %v541, %v547
      %v550 = vmul.f32 %v548, 1.442695
      %v551 = vpow.pop %v550
      %v552 = vmul.f32 %v549, 1.442695
      %v553 = vpow.pop %v552
      %v554 = vsel %vm256, %v551, 0.0
      %555 = vadd.xlane.f32.xlu0 %v554
      %v556 = vpop.xlane.xlu0 %555
      %v557 = vsel %vm256, %v553, 0.0
      %558 = vadd.xlane.f32.xlu0 %v557
      %v559 = vpop.xlane.xlu0 %558
      %562 = vrot.lane.b32.xlu0 %v254, 112
      %v563 = vpop.permute.xlu0 %562
      %564 = vrot.lane.b32.xlu0 %v255, 112
      %v565 = vpop.permute.xlu0 %564
      %v569 = vsel %vm256, %v551, 0
      %v572 = vsel %vm256, %v553, 0
      %574 = vmatprep.subr.mxu0 0.0
      %575 = vmatpush1.msra.mxu0 %v563
      %576 = vmatprep.subr.mxu0 0.0
      %577 = vmatpush1.msra.mxu0 %v565
      %578 = vmatprep.subr.mxu0 0.0
      %579 = vmatpush1.msra.mxu0 0.0
      %580 = vmatprep.subr.mxu0 0.0
      %581 = vmatpush1.msra.mxu0 0.0
      %582 = vmatprep.subr.mxu0 0.0
      %583 = vmatpush1.msra.mxu0 0.0
      %584 = vmatprep.subr.mxu0 0.0
      %585 = vmatpush1.msra.mxu0 0.0
      %586 = vmatprep.subr.mxu0 0.0
      %587 = vmatpush1.msra.mxu0 0.0
      %588 = vmatprep.subr.mxu0 0.0
      %589 = vmatpush1.msra.mxu0 0.0
      %590 = vmatprep.subr.mxu0 0.0
      %591 = vmatpush1.msra.mxu0 0.0
      %592 = vmatprep.subr.mxu0 0.0
      %593 = vmatpush1.msra.mxu0 0.0
      %594 = vmatprep.subr.mxu0 0.0
      %595 = vmatpush1.msra.mxu0 0.0
      %596 = vmatprep.subr.mxu0 0.0
      %597 = vmatpush1.msra.mxu0 0.0
      %598 = vmatprep.subr.mxu0 0.0
      %599 = vmatpush1.msra.mxu0 0.0
      %600 = vmatprep.subr.mxu0 0.0
      %601 = vmatpush1.msra.mxu0 0.0
      %602 = vmatprep.subr.mxu0 0.0
      %603 = vmatpush1.msra.mxu0 0.0
      %604 = vmatprep.subr.mxu0 0.0
      %605 = vmatpush1.msra.mxu0 0.0
      %606 = vmatprep.subr.mxu0 0.0
      %607 = vmatpush1.msra.mxu0 0.0
      %608 = vmatprep.subr.mxu0 0.0
      %609 = vmatpush1.msra.mxu0 0.0
      %610 = vmatprep.subr.mxu0 0.0
      %611 = vmatpush1.msra.mxu0 0.0
      %612 = vmatprep.subr.mxu0 0.0
      %613 = vmatpush1.msra.mxu0 0.0
      %614 = vmatprep.subr.mxu0 0.0
      %615 = vmatpush1.msra.mxu0 0.0
      %616 = vmatprep.subr.mxu0 0.0
      %617 = vmatpush1.msra.mxu0 0.0
      %618 = vmatprep.subr.mxu0 0.0
      %619 = vmatpush1.msra.mxu0 0.0
      %620 = vmatprep.subr.mxu0 0.0
      %621 = vmatpush1.msra.mxu0 0.0
      %622 = vmatprep.subr.mxu0 0.0
      %623 = vmatpush1.msra.mxu0 0.0
      %624 = vmatprep.subr.mxu0 0.0
      %625 = vmatpush1.msra.mxu0 0.0
      %626 = vmatprep.subr.mxu0 0.0
      %627 = vmatpush1.msra.mxu0 0.0
      %628 = vmatprep.subr.mxu0 0.0
      %629 = vmatpush1.msra.mxu0 0.0
      %630 = vmatprep.subr.mxu0 0.0
      %631 = vmatpush1.msra.mxu0 0.0
      %632 = vmatprep.subr.mxu0 0.0
      %633 = vmatpush1.msra.mxu0 0.0
      %634 = vmatprep.subr.mxu0 0.0
      %635 = vmatpush1.msra.mxu0 0.0
      %636 = vmatprep.subr.mxu0 0.0
      %637 = vmatpush1.msra.mxu0 0.0
      %638 = vmatprep.mubr.f32.mxu0 0.0
      %639 = vmatmul.mubr.f32.gmra.mrb[0].mxu0 %v569
      %v640 = vpop.f32.mrb[0].mxu0
      %v641 = vadd.f32 0.0, %v640
      %v642 = vpop.f32.mrb[0].mxu0
      %643 = vmatprep.mubr.f32.mxu0 0.0
      %644 = vmatmul.mubr.f32.gmra.mrb[0].mxu0 %v572
      %v645 = vpop.f32.mrb[0].mxu0
      %v646 = vadd.f32 0.0, %v645
      %v647 = vpop.f32.mrb[0].mxu0
      %648 = vdwg.mxu0
      %v649 = vrcp.pop %v556
      %v650 = vrcp.pop %v559
      %v651 = vmul.f32 %v641, %v649
      %v652 = vmul.f32 %v646, %v650
      %655 = vrot.lane.b32.xlu0 %v651, 16
      %v656 = vpop.permute.xlu0 %655
      %657 = vrot.lane.b32.xlu0 %v652, 16
      %v658 = vpop.permute.xlu0 %657
      %v661 = vsel %vm256, %v447, %v656
      %v662 = vsel %vm256, %v448, %v658
      %vm663 = vcmask 261120
      %664 = vst.msk [vmem:[%s248] sm:$0xff] %vm663, %v661
      %665 = vst.msk [vmem:[%s248 + $0x8] sm:$0xff] %vm663, %v662
      %s666 = smul.u32 2, %s19
      %p667 = scmp.lt.s32.totalorder %s18, 1
      %s668 = scalar_select %p667, %s18, 1
      %p669 = scmp.lt.s32.totalorder %s666, 1
      %s670 = scalar_select %p669, %s666, 1
      %s671 = smul.addr %s668, 2
      %s672 = sadd.s32 %s670, %s671
      %s673 = smul.addr %s672, 8
      %s674 = scalar_lea.vmem %s3, %s673
      // Predicated region
      $region33: #{transformer_block.12} parent=31 // pred_check
        %p675 = pneg %p126
      $region34: #{transformer_block.12} parent=31 // pred_check_branch
        %677 = sbr.rel (%p675) target = $region36
      $region35: #{transformer_block.12} parent=31 // pred_region
        %s678 = smul.u32 2, %s19
      $region36: #{transformer_block.12} parent=31 // pred_fallthru
        _
    $region32: #{transformer_block.12} parent=5 // pred_fallthru
      _
    %p679 = scmp.le.s32.totalorder 2, %s9
    // Predicated region
    $region37: #{transformer_block.12} parent=5 // pred_check
      %p680 = pneg %p679
    $region38: #{transformer_block.12} parent=5 // pred_check_branch
      %682 = sbr.rel (%p680) target = $region40
    $region39: #{transformer_block.12} parent=5 // pred_region
      %s683 = ssub.s32 %s9, 2
      // Predicated region
      $region41: #{transformer_block.12} parent=39 // pred_check
        %p684 = pneg %p132
      $region42: #{transformer_block.12} parent=39 // pred_check_branch
        %686 = sbr.rel (%p684) target = $region44
      $region43: #{transformer_block.12} parent=39 // pred_region
        %s687 = smul.u32 2, %s21
        %p688 = scmp.lt.s32.totalorder %s20, 1
        %s689 = scalar_select %p688, %s20, 1
        %p690 = scmp.lt.s32.totalorder %s687, 1
        %s691 = scalar_select %p690, %s687, 1
        %s692 = smul.addr %s689, 2
        %s693 = sadd.s32 %s691, %s692
        %s694 = smul.addr %s693, 8
        %s695 = scalar_lea.vmem %s3, %s694
      $region44: #{transformer_block.12} parent=39 // pred_fallthru
        _
    $region40: #{transformer_block.12} parent=5 // pred_fallthru
      _
  $region6: #{transformer_block.12} parent=0 // loop_footer
    %s13 = sadd.s32 1, %s9
  $region7: #{transformer_block.12} parent=0 // loop_footer_branch
    %8 = sbr.rel target = $region3
  $region8: #{transformer_block.12} parent=0 // loop_exit
    _

// kernel: transformer_block.13
$region0: #{transformer_block.13}
  #allocation0 [shape = 'u32[]', space=smem, size = 0x4, offset = 0x4, fixed_abs, tag = 'smem constant byte address 0x4 - core index']
  #allocation1 [shape = 'u32[144,128]{1,0:T(1,128)}', space=vmem, size = 0x12000, scoped, tag = 'internal scratch']
  %s0 = inlined_call_operand.vmem [shape: f32[32,32], index: 0, kind: input, shape index: {}]
  %s1 = inlined_call_operand.vmem [shape: f32[32,32], index: 1, kind: input, shape index: {}]
  %s2 = inlined_call_operand.vmem [shape: f32[1,32], index: 2, kind: input, shape index: {}]
  %s3 = inlined_call_operand.vmem [shape: f32[32,32], index: 3, kind: input, shape index: {}, may-alias: {3,4}]
  %s4 = inlined_call_operand.vmem [shape: f32[32,32], index: 4, kind: output, shape index: {}, may-alias: {3,4}]
  %s5 = sld [smem:[#allocation0]]
  $region26: #{transformer_block.13} parent=0
    _
  %s7 = ssub.s32 1, %s5
  %s8 = scalar_select 0, %s7, %s5
  // Predicated region
  $region2: #{transformer_block.13} parent=0 // pred_check
    _
  $region3: #{transformer_block.13} parent=0 // pred_check_branch
    %10 = sbr.rel (0) target = $region5
  $region4: #{transformer_block.13} parent=0 // pred_region
    _
  $region5: #{transformer_block.13} parent=0 // pred_fallthru
    _
  // Predicated region
  $region6: #{transformer_block.13} parent=0 // pred_check
    _
  $region7: #{transformer_block.13} parent=0 // pred_check_branch
    %12 = sbr.rel (0) target = $region9
  $region8: #{transformer_block.13} parent=0 // pred_region
    _
  $region9: #{transformer_block.13} parent=0 // pred_fallthru
    _
  // Predicated region
  $region10: #{transformer_block.13} parent=0 // pred_check
    _
  $region11: #{transformer_block.13} parent=0 // pred_check_branch
    %14 = sbr.rel (0) target = $region13
  $region12: #{transformer_block.13} parent=0 // pred_region
    _
  $region13: #{transformer_block.13} parent=0 // pred_fallthru
    _
  // Predicated region
  $region14: #{transformer_block.13} parent=0 // pred_check
    _
  $region15: #{transformer_block.13} parent=0 // pred_check_branch
    %16 = sbr.rel (0) target = $region17
  $region16: #{transformer_block.13} parent=0 // pred_region
    _
  $region17: #{transformer_block.13} parent=0 // pred_fallthru
    _
  %v17 = vld [vmem:[%s0] sm:$0xff]
  %v18 = vld [vmem:[%s0 + $0x8] sm:$0xff]
  %v19 = vld [vmem:[%s0 + $0x10] sm:$0xff]
  %v20 = vld [vmem:[%s0 + $0x18] sm:$0xff]
  %v21 = vld [vmem:[%s1] sm:$0xff]
  %v22 = vld [vmem:[%s1 + $0x8] sm:$0xff]
  %v23 = vld [vmem:[%s1 + $0x10] sm:$0xff]
  %v24 = vld [vmem:[%s1 + $0x18] sm:$0xff]
  %v25 = vld [vmem:[%s2] sm:$0x1]
  %v27 = vlaneseq
  %v28 = vshrl.u32 %v27, 7
  %v29 = vsub.s32 0, %v28
  %v30 = vrot.slane %v25, %v29
  %vm32 = vcmask 261120
  %v34 = vsel %vm32, %v17, 0
  %v37 = vsel %vm32, %v18, 0
  %v40 = vsel %vm32, %v19, 0
  %v43 = vsel %vm32, %v20, 0
  %45 = vmatprep.subr.mxu0 0.0
  %46 = vmatpush1.msra.mxu0 %v21
  %47 = vmatprep.subr.mxu0 0.0
  %48 = vmatpush1.msra.mxu0 %v22
  %49 = vmatprep.subr.mxu0 0.0
  %50 = vmatpush1.msra.mxu0 %v23
  %51 = vmatprep.subr.mxu0 0.0
  %52 = vmatpush1.msra.mxu0 %v24
  %53 = vmatprep.subr.mxu0 0.0
  %54 = vmatpush1.msra.mxu0 0.0
  %55 = vmatprep.subr.mxu0 0.0
  %56 = vmatpush1.msra.mxu0 0.0
  %57 = vmatprep.subr.mxu0 0.0
  %58 = vmatpush1.msra.mxu0 0.0
  %59 = vmatprep.subr.mxu0 0.0
  %60 = vmatpush1.msra.mxu0 0.0
  %61 = vmatprep.subr.mxu0 0.0
  %62 = vmatpush1.msra.mxu0 0.0
  %63 = vmatprep.subr.mxu0 0.0
  %64 = vmatpush1.msra.mxu0 0.0
  %65 = vmatprep.subr.mxu0 0.0
  %66 = vmatpush1.msra.mxu0 0.0
  %67 = vmatprep.subr.mxu0 0.0
  %68 = vmatpush1.msra.mxu0 0.0
  %69 = vmatprep.subr.mxu0 0.0
  %70 = vmatpush1.msra.mxu0 0.0
  %71 = vmatprep.subr.mxu0 0.0
  %72 = vmatpush1.msra.mxu0 0.0
  %73 = vmatprep.subr.mxu0 0.0
  %74 = vmatpush1.msra.mxu0 0.0
  %75 = vmatprep.subr.mxu0 0.0
  %76 = vmatpush1.msra.mxu0 0.0
  %77 = vmatprep.subr.mxu0 0.0
  %78 = vmatpush1.msra.mxu0 0.0
  %79 = vmatprep.subr.mxu0 0.0
  %80 = vmatpush1.msra.mxu0 0.0
  %81 = vmatprep.subr.mxu0 0.0
  %82 = vmatpush1.msra.mxu0 0.0
  %83 = vmatprep.subr.mxu0 0.0
  %84 = vmatpush1.msra.mxu0 0.0
  %85 = vmatprep.subr.mxu0 0.0
  %86 = vmatpush1.msra.mxu0 0.0
  %87 = vmatprep.subr.mxu0 0.0
  %88 = vmatpush1.msra.mxu0 0.0
  %89 = vmatprep.subr.mxu0 0.0
  %90 = vmatpush1.msra.mxu0 0.0
  %91 = vmatprep.subr.mxu0 0.0
  %92 = vmatpush1.msra.mxu0 0.0
  %93 = vmatprep.subr.mxu0 0.0
  %94 = vmatpush1.msra.mxu0 0.0
  %95 = vmatprep.subr.mxu0 0.0
  %96 = vmatpush1.msra.mxu0 0.0
  %97 = vmatprep.subr.mxu0 0.0
  %98 = vmatpush1.msra.mxu0 0.0
  %99 = vmatprep.subr.mxu0 0.0
  %100 = vmatpush1.msra.mxu0 0.0
  %101 = vmatprep.subr.mxu0 0.0
  %102 = vmatpush1.msra.mxu0 0.0
  %103 = vmatprep.subr.mxu0 0.0
  %104 = vmatpush1.msra.mxu0 0.0
  %105 = vmatprep.subr.mxu0 0.0
  %106 = vmatpush1.msra.mxu0 0.0
  %107 = vmatprep.subr.mxu0 0.0
  %108 = vmatpush1.msra.mxu0 0.0
  %109 = vmatprep.mubr.f32.mxu0 0.0
  %110 = vmatmul.mubr.f32.gmra.mrb[0].mxu0 %v34
  %v111 = vpop.f32.mrb[0].mxu0
  %v112 = vadd.f32 %v30, %v111
  %v113 = vpop.f32.mrb[0].mxu0
  %114 = vmatprep.mubr.f32.mxu0 0.0
  %115 = vmatmul.mubr.f32.gmra.mrb[0].mxu0 %v37
  %v116 = vpop.f32.mrb[0].mxu0
  %v117 = vadd.f32 %v30, %v116
  %v118 = vpop.f32.mrb[0].mxu0
  %119 = vmatprep.mubr.f32.mxu0 0.0
  %120 = vmatmul.mubr.f32.gmra.mrb[0].mxu0 %v40
  %v121 = vpop.f32.mrb[0].mxu0
  %v122 = vadd.f32 %v30, %v121
  %v123 = vpop.f32.mrb[0].mxu0
  %124 = vmatprep.mubr.f32.mxu0 0.0
  %125 = vmatmul.mubr.f32.gmra.mrb[0].mxu0 %v43
  %v126 = vpop.f32.mrb[0].mxu0
  %v127 = vadd.f32 %v30, %v126
  %v128 = vpop.f32.mrb[0].mxu0
  %129 = vdwg.mxu0
  %v130 = vld [vmem:[%s3] sm:$0xff]
  %v131 = vld [vmem:[%s3 + $0x8] sm:$0xff]
  %v132 = vld [vmem:[%s3 + $0x10] sm:$0xff]
  %v133 = vld [vmem:[%s3 + $0x18] sm:$0xff]
  %v134 = vadd.f32 %v112, %v130
  %v135 = vadd.f32 %v117, %v131
  %v136 = vadd.f32 %v122, %v132
  %v137 = vadd.f32 %v127, %v133
  %138 = vst.msk [vmem:[%s4] sm:$0xff] %vm32, %v134
  %139 = vst.msk [vmem:[%s4 + $0x8] sm:$0xff] %vm32, %v135
  %140 = vst.msk [vmem:[%s4 + $0x10] sm:$0xff] %vm32, %v136
  %141 = vst.msk [vmem:[%s4 + $0x18] sm:$0xff] %vm32, %v137
  // Predicated region
  $region18: #{transformer_block.13} parent=0 // pred_check
    _
  $region19: #{transformer_block.13} parent=0 // pred_check_branch
    %143 = sbr.rel (0) target = $region21
  $region20: #{transformer_block.13} parent=0 // pred_region
    _
  $region21: #{transformer_block.13} parent=0 // pred_fallthru
    _
  // Predicated region
  $region22: #{transformer_block.13} parent=0 // pred_check
    _
  $region23: #{transformer_block.13} parent=0 // pred_check_branch
    %145 = sbr.rel (0) target = $region25
  $region24: #{transformer_block.13} parent=0 // pred_region
    _
  $region25: #{transformer_block.13} parent=0 // pred_fallthru
    _

// kernel: transformer_block.16
$region0: #{transformer_block.16}
  #allocation0 [shape = 'u32[]', space=smem, size = 0x4, offset = 0x4, fixed_abs, tag = 'smem constant byte address 0x4 - core index']
  #allocation1 [shape = 'u32[144,128]{1,0:T(1,128)}', space=vmem, size = 0x12000, scoped, tag = 'internal scratch']
  %s0 = inlined_call_operand.vmem [shape: f32[2,16,32], index: 0, kind: input, shape index: {}]
  %s1 = inlined_call_operand.vmem [shape: f32[2,8,32], index: 1, kind: input, shape index: {}]
  %s2 = inlined_call_operand.vmem [shape: f32[2,8,32], index: 2, kind: input, shape index: {}]
  %s3 = inlined_call_operand.vmem [shape: f32[2,16,32], index: 3, kind: output, shape index: {}]
  %s4 = sld [smem:[#allocation0]]
  $region45: #{transformer_block.16} parent=0
    _
  %s6 = ssub.s32 1, %s4
  %s7 = scalar_select 0, %s6, %s4
  loop: start=0, step=1, limit=4
  $region2: #{transformer_block.16} parent=0 // loop_pre_header
    _
  $region3: #{transformer_block.16} parent=0 // loop_header
    %s9 = sphi 0, %s13
    %p10 = scmp.ge.s32.totalorder %s9, 4
    %s16 = sphi 0, %s28
    %s17 = sphi 0, %s24
    %s18 = sphi 0, %s16
    %s19 = sphi 0, %s17
    %s20 = sphi 0, %s18
    %s21 = sphi 0, %s19
    %s33 = sphi 0, %s35
    %s36 = sphi 0, %s33
    %s37 = sphi 0, %s36
    %s53 = sphi 0, %s37
    %s59 = sphi 0, %s61
    %s62 = sphi 0, %s59
    %s63 = sphi 0, %s62
    %s79 = sphi 0, %s63
    %s85 = sphi 0, %s87
    %s88 = sphi 0, %s85
    %s89 = sphi 0, %s88
    %s105 = sphi 0, %s89
    %s113 = sphi 0, %s115
    %s116 = sphi 0, %s113
    %s117 = sphi 0, %s116
    %s133 = sphi 0, %s117
  $region4: #{transformer_block.16} parent=0 // loop_header_branch
    %12 = sbr.rel (%p10) target = $region8
  $region5: #{transformer_block.16} parent=0 // loop_body
    %s14 = ssub.s32 %s9, 1
    %s15 = ssub.s32 %s9, 2
    %s22 = sadd.s32 1, %s17
    %p23 = scmp.ge.s32.totalorder %s22, 1
    %s24 = scalar_select %p23, 0, %s22
    %s25 = sadd.s32 1, %s16
    %s26 = scalar_select %p23, %s25, %s16
    %p27 = scmp.ge.s32.totalorder %s26, 2
    %s28 = scalar_select %p27, 0, %s26
    %s29 = ssub.s32 %s16, %s28
    %s30 = ssub.s32 %s17, %s24
    %s31 = sor.u32 %s29, %s30
    %p32 = scmp.eq.s32.totalorder %s31, 0
    %s34 = sadd.s32 %s33, 1
    %s35 = scalar_select %p32, %s33, %s34
    %p38 = pneg %p32
    %p39 = scmp.eq.s32.totalorder %s9, 1
    %p40 = por %p38, %p39
    %p41 = scmp.ne.s32.totalorder %s33, %s36
    %p42 = scmp.eq.s32.totalorder %s9, 0
    %p43 = por %p41, %p42
    %p44 = scmp.ne.s32.totalorder %s33, %s36
    %p45 = scmp.eq.s32.totalorder %s14, 1
    %p46 = por %p44, %p45
    %p47 = scmp.ne.s32.totalorder %s36, %s37
    %p48 = scmp.eq.s32.totalorder %s14, 0
    %p49 = por %p47, %p48
    %p50 = scmp.ne.s32.totalorder %s36, %s37
    %p51 = scmp.eq.s32.totalorder %s15, 1
    %p52 = por %p50, %p51
    %p54 = scmp.ne.s32.totalorder %s37, %s53
    %p55 = scmp.eq.s32.totalorder %s15, 0
    %p56 = por %p54, %p55
    %s57 = ssub.s32 %s16, %s28
    %p58 = scmp.eq.s32.totalorder %s57, 0
    %s60 = sadd.s32 %s59, 1
    %s61 = scalar_select %p58, %s59, %s60
    %p64 = pneg %p58
    %p65 = scmp.eq.s32.totalorder %s9, 1
    %p66 = por %p64, %p65
    %p67 = scmp.ne.s32.totalorder %s59, %s62
    %p68 = scmp.eq.s32.totalorder %s9, 0
    %p69 = por %p67, %p68
    %p70 = scmp.ne.s32.totalorder %s59, %s62
    %p71 = scmp.eq.s32.totalorder %s14, 1
    %p72 = por %p70, %p71
    %p73 = scmp.ne.s32.totalorder %s62, %s63
    %p74 = scmp.eq.s32.totalorder %s14, 0
    %p75 = por %p73, %p74
    %p76 = scmp.ne.s32.totalorder %s62, %s63
    %p77 = scmp.eq.s32.totalorder %s15, 1
    %p78 = por %p76, %p77
    %p80 = scmp.ne.s32.totalorder %s63, %s79
    %p81 = scmp.eq.s32.totalorder %s15, 0
    %p82 = por %p80, %p81
    %s83 = ssub.s32 %s16, %s28
    %p84 = scmp.eq.s32.totalorder %s83, 0
    %s86 = sadd.s32 %s85, 1
    %s87 = scalar_select %p84, %s85, %s86
    %p90 = pneg %p84
    %p91 = scmp.eq.s32.totalorder %s9, 1
    %p92 = por %p90, %p91
    %p93 = scmp.ne.s32.totalorder %s85, %s88
    %p94 = scmp.eq.s32.totalorder %s9, 0
    %p95 = por %p93, %p94
    %p96 = scmp.ne.s32.totalorder %s85, %s88
    %p97 = scmp.eq.s32.totalorder %s14, 1
    %p98 = por %p96, %p97
    %p99 = scmp.ne.s32.totalorder %s88, %s89
    %p100 = scmp.eq.s32.totalorder %s14, 0
    %p101 = por %p99, %p100
    %p102 = scmp.ne.s32.totalorder %s88, %s89
    %p103 = scmp.eq.s32.totalorder %s15, 1
    %p104 = por %p102, %p103
    %p106 = scmp.ne.s32.totalorder %s89, %s105
    %p107 = scmp.eq.s32.totalorder %s15, 0
    %p108 = por %p106, %p107
    %s109 = ssub.s32 %s16, %s28
    %s110 = ssub.s32 %s17, %s24
    %s111 = sor.u32 %s109, %s110
    %p112 = scmp.eq.s32.totalorder %s111, 0
    %s114 = sadd.s32 %s113, 1
    %s115 = scalar_select %p112, %s113, %s114
    %p118 = pneg %p112
    %p119 = scmp.eq.s32.totalorder %s9, 1
    %p120 = por %p118, %p119
    %p121 = scmp.ne.s32.totalorder %s113, %s116
    %p122 = scmp.eq.s32.totalorder %s9, 0
    %p123 = por %p121, %p122
    %p124 = scmp.ne.s32.totalorder %s113, %s116
    %p125 = scmp.eq.s32.totalorder %s14, 1
    %p126 = por %p124, %p125
    %p127 = scmp.ne.s32.totalorder %s116, %s117
    %p128 = scmp.eq.s32.totalorder %s14, 0
    %p129 = por %p127, %p128
    %p130 = scmp.ne.s32.totalorder %s116, %s117
    %p131 = scmp.eq.s32.totalorder %s15, 1
    %p132 = por %p130, %p131
    %p134 = scmp.ne.s32.totalorder %s117, %s133
    %p135 = scmp.eq.s32.totalorder %s15, 0
    %p136 = por %p134, %p135
    %p137 = scmp.le.s32.totalorder 1, %s9
    %p138 = scmp.lt.s32.totalorder %s9, 3
    %p139 = pnand %p137, %p138
    %p140 = pneg %p139
    // Predicated region
    $region9: #{transformer_block.16} parent=5 // pred_check
      _
    $region10: #{transformer_block.16} parent=5 // pred_check_branch
      %142 = sbr.rel (%p139) target = $region12
    $region11: #{transformer_block.16} parent=5 // pred_region
      %s143 = ssub.s32 %s9, 1
    $region12: #{transformer_block.16} parent=5 // pred_fallthru
      _
    %p144 = scmp.lt.s32.totalorder %s9, 2
    // Predicated region
    $region13: #{transformer_block.16} parent=5 // pred_check
      %p145 = pneg %p144
    $region14: #{transformer_block.16} parent=5 // pred_check_branch
      %147 = sbr.rel (%p145) target = $region16
    $region15: #{transformer_block.16} parent=5 // pred_region
      // Predicated region
      $region17: #{transformer_block.16} parent=15 // pred_check
        %p148 = pneg %p43
      $region18: #{transformer_block.16} parent=15 // pred_check_branch
        %150 = sbr.rel (%p148) target = $region20
      $region19: #{transformer_block.16} parent=15 // pred_region
        %s151 = smul.u32 2, %s17
        %p152 = scmp.lt.s32.totalorder %s16, 1
        %s153 = scalar_select %p152, %s16, 1
        %p154 = scmp.lt.s32.totalorder %s151, 1
        %s155 = scalar_select %p154, %s151, 1
        %s156 = smul.addr %s153, 2
        %s157 = sadd.s32 %s155, %s156
        %s158 = smul.addr %s157, 8
        %s159 = scalar_lea.vmem %s0, %s158
        %s160 = smul.u32 2, %s17
      $region20: #{transformer_block.16} parent=15 // pred_fallthru
        _
      // Predicated region
      $region21: #{transformer_block.16} parent=15 // pred_check
        %p161 = pneg %p69
      $region22: #{transformer_block.16} parent=15 // pred_check_branch
        %163 = sbr.rel (%p161) target = $region24
      $region23: #{transformer_block.16} parent=15 // pred_region
        %p164 = scmp.lt.s32.totalorder %s16, 1
        %s165 = scalar_select %p164, %s16, 1
        %s166 = smul.addr %s165, 8
        %s167 = scalar_lea.vmem %s1, %s166
      $region24: #{transformer_block.16} parent=15 // pred_fallthru
        _
      // Predicated region
      $region25: #{transformer_block.16} parent=15 // pred_check
        %p168 = pneg %p95
      $region26: #{transformer_block.16} parent=15 // pred_check_branch
        %170 = sbr.rel (%p168) target = $region28
      $region27: #{transformer_block.16} parent=15 // pred_region
        %p171 = scmp.lt.s32.totalorder %s16, 1
        %s172 = scalar_select %p171, %s16, 1
        %s173 = smul.addr %s172, 8
        %s174 = scalar_lea.vmem %s2, %s173
      $region28: #{transformer_block.16} parent=15 // pred_fallthru
        _
    $region16: #{transformer_block.16} parent=5 // pred_fallthru
      _
    %p175 = scmp.le.s32.totalorder 1, %s9
    %p176 = scmp.lt.s32.totalorder %s9, 3
    %p177 = pnand %p175, %p176
    %p178 = pneg %p177
    // Predicated region
    $region29: #{transformer_block.16} parent=5 // pred_check
      _
    $region30: #{transformer_block.16} parent=5 // pred_check_branch
      %180 = sbr.rel (%p177) target = $region32
    $region31: #{transformer_block.16} parent=5 // pred_region
      %s181 = ssub.s32 %s9, 1
      %s182 = smul.u32 2, %s19
      %p183 = scmp.lt.s32.totalorder %s18, 1
      %s184 = scalar_select %p183, %s18, 1
      %p185 = scmp.lt.s32.totalorder %s182, 1
      %s186 = scalar_select %p185, %s182, 1
      %s187 = smul.addr %s184, 2
      %s188 = sadd.s32 %s186, %s187
      %s189 = smul.addr %s188, 8
      %s190 = scalar_lea.vmem %s0, %s189
      %p191 = pneg %p49
      %p192 = pneg %p46
      %p193 = scmp.lt.s32.totalorder %s18, 1
      %s194 = scalar_select %p193, %s18, 1
      %s195 = smul.addr %s194, 8
      %s196 = scalar_lea.vmem %s1, %s195
      %p197 = pneg %p75
      %p198 = pneg %p72
      %p199 = scmp.lt.s32.totalorder %s18, 1
      %s200 = scalar_select %p199, %s18, 1
      %s201 = smul.addr %s200, 8
      %s202 = scalar_lea.vmem %s2, %s201
      %p203 = pneg %p101
      %p204 = pneg %p98
      %p205 = pneg %p129
      %p206 = pneg %p126
      %s207 = smul.u32 2, %s19
      %p208 = scmp.lt.s32.totalorder %s18, 1
      %s209 = scalar_select %p208, %s18, 1
      %p210 = scmp.lt.s32.totalorder %s207, 1
      %s211 = scalar_select %p210, %s207, 1
      %s212 = smul.addr %s209, 2
      %s213 = sadd.s32 %s211, %s212
      %s214 = smul.addr %s213, 8
      %s215 = scalar_lea.vmem %s3, %s214
      %s216 = smul.u32 2, %s19
      %p217 = scmp.lt.s32.totalorder %s18, 1
      %s218 = scalar_select %p217, %s18, 1
      %p219 = scmp.lt.s32.totalorder %s216, 1
      %s220 = scalar_select %p219, %s216, 1
      %s221 = smul.addr %s218, 2
      %s222 = sadd.s32 %s220, %s221
      %s223 = smul.addr %s222, 8
      %s224 = scalar_lea.vmem %s0, %s223
      %s225 = smul.u32 2, %s19
      %p226 = scmp.lt.s32.totalorder %s18, 1
      %s227 = scalar_select %p226, %s18, 1
      %s228 = smul.addr %s227, 8
      %s229 = scalar_lea.vmem %s1, %s228
      %p230 = scmp.lt.s32.totalorder %s18, 1
      %s231 = scalar_select %p230, %s18, 1
      %s232 = smul.addr %s231, 8
      %s233 = scalar_lea.vmem %s2, %s232
      %s234 = smul.u32 2, %s19
      %p235 = scmp.lt.s32.totalorder %s18, 1
      %s236 = scalar_select %p235, %s18, 1
      %p237 = scmp.lt.s32.totalorder %s234, 1
      %s238 = scalar_select %p237, %s234, 1
      %s239 = smul.addr %s236, 2
      %s240 = sadd.s32 %s238, %s239
      %s241 = smul.addr %s240, 8
      %s242 = scalar_lea.vmem %s3, %s241
      %s243 = smul.u32 2, %s19
      %v244 = vld [vmem:[%s224] sm:$0xff]
      %v245 = vld [vmem:[%s224 + $0x8] sm:$0xff]
      %v246 = vld [vmem:[%s229] sm:$0xff]
      %v247 = vld [vmem:[%s233] sm:$0xff]
      %vm248 = vcmask 130048
      %v250 = vsel %vm248, %v244, 0
      %v253 = vsel %vm248, %v245, 0
      %v256 = vsel %vm248, %v246, 0
      %258 = vmatprep.subr.mxu0 0.0
      %259 = vmatpush1.xpose.msra.mxu0 %v256
      %260 = vmatprep.subr.mxu0 0.0
      %261 = vmatpush1.xpose.msra.mxu0 0.0
      %262 = vmatprep.subr.mxu0 0.0
      %263 = vmatpush1.xpose.msra.mxu0 0.0
      %264 = vmatprep.subr.mxu0 0.0
      %265 = vmatpush1.xpose.msra.mxu0 0.0
      %266 = vmatprep.subr.mxu0 0.0
      %267 = vmatpush1.xpose.msra.mxu0 0.0
      %268 = vmatprep.subr.mxu0 0.0
      %269 = vmatpush1.xpose.msra.mxu0 0.0
      %270 = vmatprep.subr.mxu0 0.0
      %271 = vmatpush1.xpose.msra.mxu0 0.0
      %272 = vmatprep.subr.mxu0 0.0
      %273 = vmatpush1.xpose.msra.mxu0 0.0
      %274 = vmatprep.subr.mxu0 0.0
      %275 = vmatpush1.xpose.msra.mxu0 0.0
      %276 = vmatprep.subr.mxu0 0.0
      %277 = vmatpush1.xpose.msra.mxu0 0.0
      %278 = vmatprep.subr.mxu0 0.0
      %279 = vmatpush1.xpose.msra.mxu0 0.0
      %280 = vmatprep.subr.mxu0 0.0
      %281 = vmatpush1.xpose.msra.mxu0 0.0
      %282 = vmatprep.subr.mxu0 0.0
      %283 = vmatpush1.xpose.msra.mxu0 0.0
      %284 = vmatprep.subr.mxu0 0.0
      %285 = vmatpush1.xpose.msra.mxu0 0.0
      %286 = vmatprep.subr.mxu0 0.0
      %287 = vmatpush1.xpose.msra.mxu0 0.0
      %288 = vmatprep.subr.mxu0 0.0
      %289 = vmatpush1.xpose.msra.mxu0 0.0
      %290 = vmatprep.subr.mxu0 0.0
      %291 = vmatpush1.xpose.msra.mxu0 0.0
      %292 = vmatprep.subr.mxu0 0.0
      %293 = vmatpush1.xpose.msra.mxu0 0.0
      %294 = vmatprep.subr.mxu0 0.0
      %295 = vmatpush1.xpose.msra.mxu0 0.0
      %296 = vmatprep.subr.mxu0 0.0
      %297 = vmatpush1.xpose.msra.mxu0 0.0
      %298 = vmatprep.subr.mxu0 0.0
      %299 = vmatpush1.xpose.msra.mxu0 0.0
      %300 = vmatprep.subr.mxu0 0.0
      %301 = vmatpush1.xpose.msra.mxu0 0.0
      %302 = vmatprep.subr.mxu0 0.0
      %303 = vmatpush1.xpose.msra.mxu0 0.0
      %304 = vmatprep.subr.mxu0 0.0
      %305 = vmatpush1.xpose.msra.mxu0 0.0
      %306 = vmatprep.subr.mxu0 0.0
      %307 = vmatpush1.xpose.msra.mxu0 0.0
      %308 = vmatprep.subr.mxu0 0.0
      %309 = vmatpush1.xpose.msra.mxu0 0.0
      %310 = vmatprep.subr.mxu0 0.0
      %311 = vmatpush1.xpose.msra.mxu0 0.0
      %312 = vmatprep.subr.mxu0 0.0
      %313 = vmatpush1.xpose.msra.mxu0 0.0
      %314 = vmatprep.subr.mxu0 0.0
      %315 = vmatpush1.xpose.msra.mxu0 0.0
      %316 = vmatprep.subr.mxu0 0.0
      %317 = vmatpush1.xpose.msra.mxu0 0.0
      %318 = vmatprep.subr.mxu0 0.0
      %319 = vmatpush1.xpose.msra.mxu0 0.0
      %320 = vmatprep.subr.mxu0 0.0
      %321 = vmatpush1.xpose.msra.mxu0 0.0
      %322 = vmatprep.mubr.f32.mxu0 0.0
      %323 = vmatmul.mubr.f32.gmra.mrb[0].mxu0 %v250
      %v324 = vpop.f32.mrb[0].mxu0
      %v325 = vadd.f32 0.0, %v324
      %v326 = vpop.f32.mrb[0].mxu0
      %327 = vmatprep.mubr.f32.mxu0 0.0
      %328 = vmatmul.mubr.f32.gmra.mrb[0].mxu0 %v253
      %v329 = vpop.f32.mrb[0].mxu0
      %v330 = vadd.f32 0.0, %v329
      %v331 = vpop.f32.mrb[0].mxu0
      %332 = vdwg.mxu0
      %v333 = vmul.f32 %v325, 0.25
      %v334 = vmul.f32 %v330, 0.25
      %vm335 = vcmask 64512
      %v336 = vsel %vm335, %v333, -inf
      %337 = vmax.xlane.f32.xlu0 %v336
      %v338 = vpop.xlane.xlu0 %337
      %v339 = vsel %vm335, %v334, -inf
      %340 = vmax.xlane.f32.xlu0 %v339
      %v341 = vpop.xlane.xlu0 %340
      %v342 = vsub.f32 %v333, %v338
      %v343 = vsub.f32 %v334, %v341
      %v344 = vmul.f32 %v342, 1.442695
      %v345 = vpow.pop %v344
      %v346 = vmul.f32 %v343, 1.442695
      %v347 = vpow.pop %v346
      %v348 = vsel %vm335, %v345, 0.0
      %349 = vadd.xlane.f32.xlu0 %v348
      %v350 = vpop.xlane.xlu0 %349
      %v351 = vsel %vm335, %v347, 0.0
      %352 = vadd.xlane.f32.xlu0 %v351
      %v353 = vpop.xlane.xlu0 %352
      %v355 = vsel %vm335, %v345, 0
      %v358 = vsel %vm335, %v347, 0
      %360 = vmatprep.subr.mxu0 0.0
      %361 = vmatpush1.msra.mxu0 %v247
      %362 = vmatprep.subr.mxu0 0.0
      %363 = vmatpush1.msra.mxu0 0.0
      %364 = vmatprep.subr.mxu0 0.0
      %365 = vmatpush1.msra.mxu0 0.0
      %366 = vmatprep.subr.mxu0 0.0
      %367 = vmatpush1.msra.mxu0 0.0
      %368 = vmatprep.subr.mxu0 0.0
      %369 = vmatpush1.msra.mxu0 0.0
      %370 = vmatprep.subr.mxu0 0.0
      %371 = vmatpush1.msra.mxu0 0.0
      %372 = vmatprep.subr.mxu0 0.0
      %373 = vmatpush1.msra.mxu0 0.0
      %374 = vmatprep.subr.mxu0 0.0
      %375 = vmatpush1.msra.mxu0 0.0
      %376 = vmatprep.subr.mxu0 0.0
      %377 = vmatpush1.msra.mxu0 0.0
      %378 = vmatprep.subr.mxu0 0.0
      %379 = vmatpush1.msra.mxu0 0.0
      %380 = vmatprep.subr.mxu0 0.0
      %381 = vmatpush1.msra.mxu0 0.0
      %382 = vmatprep.subr.mxu0 0.0
      %383 = vmatpush1.msra.mxu0 0.0
      %384 = vmatprep.subr.mxu0 0.0
      %385 = vmatpush1.msra.mxu0 0.0
      %386 = vmatprep.subr.mxu0 0.0
      %387 = vmatpush1.msra.mxu0 0.0
      %388 = vmatprep.subr.mxu0 0.0
      %389 = vmatpush1.msra.mxu0 0.0
      %390 = vmatprep.subr.mxu0 0.0
      %391 = vmatpush1.msra.mxu0 0.0
      %392 = vmatprep.subr.mxu0 0.0
      %393 = vmatpush1.msra.mxu0 0.0
      %394 = vmatprep.subr.mxu0 0.0
      %395 = vmatpush1.msra.mxu0 0.0
      %396 = vmatprep.subr.mxu0 0.0
      %397 = vmatpush1.msra.mxu0 0.0
      %398 = vmatprep.subr.mxu0 0.0
      %399 = vmatpush1.msra.mxu0 0.0
      %400 = vmatprep.subr.mxu0 0.0
      %401 = vmatpush1.msra.mxu0 0.0
      %402 = vmatprep.subr.mxu0 0.0
      %403 = vmatpush1.msra.mxu0 0.0
      %404 = vmatprep.subr.mxu0 0.0
      %405 = vmatpush1.msra.mxu0 0.0
      %406 = vmatprep.subr.mxu0 0.0
      %407 = vmatpush1.msra.mxu0 0.0
      %408 = vmatprep.subr.mxu0 0.0
      %409 = vmatpush1.msra.mxu0 0.0
      %410 = vmatprep.subr.mxu0 0.0
      %411 = vmatpush1.msra.mxu0 0.0
      %412 = vmatprep.subr.mxu0 0.0
      %413 = vmatpush1.msra.mxu0 0.0
      %414 = vmatprep.subr.mxu0 0.0
      %415 = vmatpush1.msra.mxu0 0.0
      %416 = vmatprep.subr.mxu0 0.0
      %417 = vmatpush1.msra.mxu0 0.0
      %418 = vmatprep.subr.mxu0 0.0
      %419 = vmatpush1.msra.mxu0 0.0
      %420 = vmatprep.subr.mxu0 0.0
      %421 = vmatpush1.msra.mxu0 0.0
      %422 = vmatprep.subr.mxu0 0.0
      %423 = vmatpush1.msra.mxu0 0.0
      %424 = vmatprep.mubr.f32.mxu0 0.0
      %425 = vmatmul.mubr.f32.gmra.mrb[0].mxu0 %v355
      %v426 = vpop.f32.mrb[0].mxu0
      %v427 = vadd.f32 0.0, %v426
      %v428 = vpop.f32.mrb[0].mxu0
      %429 = vmatprep.mubr.f32.mxu0 0.0
      %430 = vmatmul.mubr.f32.gmra.mrb[0].mxu0 %v358
      %v431 = vpop.f32.mrb[0].mxu0
      %v432 = vadd.f32 0.0, %v431
      %v433 = vpop.f32.mrb[0].mxu0
      %434 = vdwg.mxu0
      %v435 = vrcp.pop %v350
      %v436 = vrcp.pop %v353
      %v437 = vmul.f32 %v427, %v435
      %v438 = vmul.f32 %v432, %v436
      %439 = vrot.lane.b32.xlu0 %v244, 112
      %v440 = vpop.permute.xlu0 %439
      %441 = vrot.lane.b32.xlu0 %v245, 112
      %v442 = vpop.permute.xlu0 %441
      %443 = vrot.lane.b32.xlu0 %v246, 112
      %v444 = vpop.permute.xlu0 %443
      %v445 = vsel %vm248, %v440, 0
      %v447 = vsel %vm248, %v442, 0
      %v449 = vsel %vm248, %v444, 0
      %451 = vmatprep.subr.mxu0 0.0
      %452 = vmatpush1.xpose.msra.mxu0 %v449
      %453 = vmatprep.subr.mxu0 0.0
      %454 = vmatpush1.xpose.msra.mxu0 0.0
      %455 = vmatprep.subr.mxu0 0.0
      %456 = vmatpush1.xpose.msra.mxu0 0.0
      %457 = vmatprep.subr.mxu0 0.0
      %458 = vmatpush1.xpose.msra.mxu0 0.0
      %459 = vmatprep.subr.mxu0 0.0
      %460 = vmatpush1.xpose.msra.mxu0 0.0
      %461 = vmatprep.subr.mxu0 0.0
      %462 = vmatpush1.xpose.msra.mxu0 0.0
      %463 = vmatprep.subr.mxu0 0.0
      %464 = vmatpush1.xpose.msra.mxu0 0.0
      %465 = vmatprep.subr.mxu0 0.0
      %466 = vmatpush1.xpose.msra.mxu0 0.0
      %467 = vmatprep.subr.mxu0 0.0
      %468 = vmatpush1.xpose.msra.mxu0 0.0
      %469 = vmatprep.subr.mxu0 0.0
      %470 = vmatpush1.xpose.msra.mxu0 0.0
      %471 = vmatprep.subr.mxu0 0.0
      %472 = vmatpush1.xpose.msra.mxu0 0.0
      %473 = vmatprep.subr.mxu0 0.0
      %474 = vmatpush1.xpose.msra.mxu0 0.0
      %475 = vmatprep.subr.mxu0 0.0
      %476 = vmatpush1.xpose.msra.mxu0 0.0
      %477 = vmatprep.subr.mxu0 0.0
      %478 = vmatpush1.xpose.msra.mxu0 0.0
      %479 = vmatprep.subr.mxu0 0.0
      %480 = vmatpush1.xpose.msra.mxu0 0.0
      %481 = vmatprep.subr.mxu0 0.0
      %482 = vmatpush1.xpose.msra.mxu0 0.0
      %483 = vmatprep.subr.mxu0 0.0
      %484 = vmatpush1.xpose.msra.mxu0 0.0
      %485 = vmatprep.subr.mxu0 0.0
      %486 = vmatpush1.xpose.msra.mxu0 0.0
      %487 = vmatprep.subr.mxu0 0.0
      %488 = vmatpush1.xpose.msra.mxu0 0.0
      %489 = vmatprep.subr.mxu0 0.0
      %490 = vmatpush1.xpose.msra.mxu0 0.0
      %491 = vmatprep.subr.mxu0 0.0
      %492 = vmatpush1.xpose.msra.mxu0 0.0
      %493 = vmatprep.subr.mxu0 0.0
      %494 = vmatpush1.xpose.msra.mxu0 0.0
      %495 = vmatprep.subr.mxu0 0.0
      %496 = vmatpush1.xpose.msra.mxu0 0.0
      %497 = vmatprep.subr.mxu0 0.0
      %498 = vmatpush1.xpose.msra.mxu0 0.0
      %499 = vmatprep.subr.mxu0 0.0
      %500 = vmatpush1.xpose.msra.mxu0 0.0
      %501 = vmatprep.subr.mxu0 0.0
      %502 = vmatpush1.xpose.msra.mxu0 0.0
      %503 = vmatprep.subr.mxu0 0.0
      %504 = vmatpush1.xpose.msra.mxu0 0.0
      %505 = vmatprep.subr.mxu0 0.0
      %506 = vmatpush1.xpose.msra.mxu0 0.0
      %507 = vmatprep.subr.mxu0 0.0
      %508 = vmatpush1.xpose.msra.mxu0 0.0
      %509 = vmatprep.subr.mxu0 0.0
      %510 = vmatpush1.xpose.msra.mxu0 0.0
      %511 = vmatprep.subr.mxu0 0.0
      %512 = vmatpush1.xpose.msra.mxu0 0.0
      %513 = vmatprep.subr.mxu0 0.0
      %514 = vmatpush1.xpose.msra.mxu0 0.0
      %515 = vmatprep.mubr.f32.mxu0 0.0
      %516 = vmatmul.mubr.f32.gmra.mrb[0].mxu0 %v445
      %v517 = vpop.f32.mrb[0].mxu0
      %v518 = vadd.f32 0.0, %v517
      %v519 = vpop.f32.mrb[0].mxu0
      %520 = vmatprep.mubr.f32.mxu0 0.0
      %521 = vmatmul.mubr.f32.gmra.mrb[0].mxu0 %v447
      %v522 = vpop.f32.mrb[0].mxu0
      %v523 = vadd.f32 0.0, %v522
      %v524 = vpop.f32.mrb[0].mxu0
      %525 = vdwg.mxu0
      %v526 = vmul.f32 %v518, 0.25
      %v527 = vmul.f32 %v523, 0.25
      %v528 = vsel %vm335, %v526, -inf
      %529 = vmax.xlane.f32.xlu0 %v528
      %v530 = vpop.xlane.xlu0 %529
      %v531 = vsel %vm335, %v527, -inf
      %532 = vmax.xlane.f32.xlu0 %v531
      %v533 = vpop.xlane.xlu0 %532
      %v534 = vsub.f32 %v526, %v530
      %v535 = vsub.f32 %v527, %v533
      %v536 = vmul.f32 %v534, 1.442695
      %v537 = vpow.pop %v536
      %v538 = vmul.f32 %v535, 1.442695
      %v539 = vpow.pop %v538
      %v540 = vsel %vm335, %v537, 0.0
      %541 = vadd.xlane.f32.xlu0 %v540
      %v542 = vpop.xlane.xlu0 %541
      %v543 = vsel %vm335, %v539, 0.0
      %544 = vadd.xlane.f32.xlu0 %v543
      %v545 = vpop.xlane.xlu0 %544
      %547 = vrot.lane.b32.xlu0 %v247, 112
      %v548 = vpop.permute.xlu0 %547
      %v551 = vsel %vm335, %v537, 0
      %v554 = vsel %vm335, %v539, 0
      %556 = vmatprep.subr.mxu0 0.0
      %557 = vmatpush1.msra.mxu0 %v548
      %558 = vmatprep.subr.mxu0 0.0
      %559 = vmatpush1.msra.mxu0 0.0
      %560 = vmatprep.subr.mxu0 0.0
      %561 = vmatpush1.msra.mxu0 0.0
      %562 = vmatprep.subr.mxu0 0.0
      %563 = vmatpush1.msra.mxu0 0.0
      %564 = vmatprep.subr.mxu0 0.0
      %565 = vmatpush1.msra.mxu0 0.0
      %566 = vmatprep.subr.mxu0 0.0
      %567 = vmatpush1.msra.mxu0 0.0
      %568 = vmatprep.subr.mxu0 0.0
      %569 = vmatpush1.msra.mxu0 0.0
      %570 = vmatprep.subr.mxu0 0.0
      %571 = vmatpush1.msra.mxu0 0.0
      %572 = vmatprep.subr.mxu0 0.0
      %573 = vmatpush1.msra.mxu0 0.0
      %574 = vmatprep.subr.mxu0 0.0
      %575 = vmatpush1.msra.mxu0 0.0
      %576 = vmatprep.subr.mxu0 0.0
      %577 = vmatpush1.msra.mxu0 0.0
      %578 = vmatprep.subr.mxu0 0.0
      %579 = vmatpush1.msra.mxu0 0.0
      %580 = vmatprep.subr.mxu0 0.0
      %581 = vmatpush1.msra.mxu0 0.0
      %582 = vmatprep.subr.mxu0 0.0
      %583 = vmatpush1.msra.mxu0 0.0
      %584 = vmatprep.subr.mxu0 0.0
      %585 = vmatpush1.msra.mxu0 0.0
      %586 = vmatprep.subr.mxu0 0.0
      %587 = vmatpush1.msra.mxu0 0.0
      %588 = vmatprep.subr.mxu0 0.0
      %589 = vmatpush1.msra.mxu0 0.0
      %590 = vmatprep.subr.mxu0 0.0
      %591 = vmatpush1.msra.mxu0 0.0
      %592 = vmatprep.subr.mxu0 0.0
      %593 = vmatpush1.msra.mxu0 0.0
      %594 = vmatprep.subr.mxu0 0.0
      %595 = vmatpush1.msra.mxu0 0.0
      %596 = vmatprep.subr.mxu0 0.0
      %597 = vmatpush1.msra.mxu0 0.0
      %598 = vmatprep.subr.mxu0 0.0
      %599 = vmatpush1.msra.mxu0 0.0
      %600 = vmatprep.subr.mxu0 0.0
      %601 = vmatpush1.msra.mxu0 0.0
      %602 = vmatprep.subr.mxu0 0.0
      %603 = vmatpush1.msra.mxu0 0.0
      %604 = vmatprep.subr.mxu0 0.0
      %605 = vmatpush1.msra.mxu0 0.0
      %606 = vmatprep.subr.mxu0 0.0
      %607 = vmatpush1.msra.mxu0 0.0
      %608 = vmatprep.subr.mxu0 0.0
      %609 = vmatpush1.msra.mxu0 0.0
      %610 = vmatprep.subr.mxu0 0.0
      %611 = vmatpush1.msra.mxu0 0.0
      %612 = vmatprep.subr.mxu0 0.0
      %613 = vmatpush1.msra.mxu0 0.0
      %614 = vmatprep.subr.mxu0 0.0
      %615 = vmatpush1.msra.mxu0 0.0
      %616 = vmatprep.subr.mxu0 0.0
      %617 = vmatpush1.msra.mxu0 0.0
      %618 = vmatprep.subr.mxu0 0.0
      %619 = vmatpush1.msra.mxu0 0.0
      %620 = vmatprep.mubr.f32.mxu0 0.0
      %621 = vmatmul.mubr.f32.gmra.mrb[0].mxu0 %v551
      %v622 = vpop.f32.mrb[0].mxu0
      %v623 = vadd.f32 0.0, %v622
      %v624 = vpop.f32.mrb[0].mxu0
      %625 = vmatprep.mubr.f32.mxu0 0.0
      %626 = vmatmul.mubr.f32.gmra.mrb[0].mxu0 %v554
      %v627 = vpop.f32.mrb[0].mxu0
      %v628 = vadd.f32 0.0, %v627
      %v629 = vpop.f32.mrb[0].mxu0
      %630 = vdwg.mxu0
      %v631 = vrcp.pop %v542
      %v632 = vrcp.pop %v545
      %v633 = vmul.f32 %v623, %v631
      %v634 = vmul.f32 %v628, %v632
      %637 = vrot.lane.b32.xlu0 %v633, 16
      %v638 = vpop.permute.xlu0 %637
      %639 = vrot.lane.b32.xlu0 %v634, 16
      %v640 = vpop.permute.xlu0 %639
      %v643 = vsel %vm248, %v437, %v638
      %v644 = vsel %vm248, %v438, %v640
      %vm645 = vcmask 261120
      %646 = vst.msk [vmem:[%s242] sm:$0xff] %vm645, %v643
      %647 = vst.msk [vmem:[%s242 + $0x8] sm:$0xff] %vm645, %v644
      %s648 = smul.u32 2, %s19
      %p649 = scmp.lt.s32.totalorder %s18, 1
      %s650 = scalar_select %p649, %s18, 1
      %p651 = scmp.lt.s32.totalorder %s648, 1
      %s652 = scalar_select %p651, %s648, 1
      %s653 = smul.addr %s650, 2
      %s654 = sadd.s32 %s652, %s653
      %s655 = smul.addr %s654, 8
      %s656 = scalar_lea.vmem %s3, %s655
      // Predicated region
      $region33: #{transformer_block.16} parent=31 // pred_check
        %p657 = pneg %p126
      $region34: #{transformer_block.16} parent=31 // pred_check_branch
        %659 = sbr.rel (%p657) target = $region36
      $region35: #{transformer_block.16} parent=31 // pred_region
        %s660 = smul.u32 2, %s19
      $region36: #{transformer_block.16} parent=31 // pred_fallthru
        _
    $region32: #{transformer_block.16} parent=5 // pred_fallthru
      _
    %p661 = scmp.le.s32.totalorder 2, %s9
    // Predicated region
    $region37: #{transformer_block.16} parent=5 // pred_check
      %p662 = pneg %p661
    $region38: #{transformer_block.16} parent=5 // pred_check_branch
      %664 = sbr.rel (%p662) target = $region40
    $region39: #{transformer_block.16} parent=5 // pred_region
      %s665 = ssub.s32 %s9, 2
      // Predicated region
      $region41: #{transformer_block.16} parent=39 // pred_check
        %p666 = pneg %p132
      $region42: #{transformer_block.16} parent=39 // pred_check_branch
        %668 = sbr.rel (%p666) target = $region44
      $region43: #{transformer_block.16} parent=39 // pred_region
        %s669 = smul.u32 2, %s21
        %p670 = scmp.lt.s32.totalorder %s20, 1
        %s671 = scalar_select %p670, %s20, 1
        %p672 = scmp.lt.s32.totalorder %s669, 1
        %s673 = scalar_select %p672, %s669, 1
        %s674 = smul.addr %s671, 2
        %s675 = sadd.s32 %s673, %s674
        %s676 = smul.addr %s675, 8
        %s677 = scalar_lea.vmem %s3, %s676
      $region44: #{transformer_block.16} parent=39 // pred_fallthru
        _
    $region40: #{transformer_block.16} parent=5 // pred_fallthru
      _
  $region6: #{transformer_block.16} parent=0 // loop_footer
    %s13 = sadd.s32 1, %s9
  $region7: #{transformer_block.16} parent=0 // loop_footer_branch
    %8 = sbr.rel target = $region3
  $region8: #{transformer_block.16} parent=0 // loop_exit
    _

// kernel: transformer_block.18
$region0: #{transformer_block.18}
  #allocation0 [shape = 'u32[]', space=smem, size = 0x4, offset = 0x4, fixed_abs, tag = 'smem constant byte address 0x4 - core index']
  #allocation1 [shape = 'u32[144,128]{1,0:T(1,128)}', space=vmem, size = 0x12000, scoped, tag = 'internal scratch']
  %s0 = inlined_call_operand.vmem [shape: f32[32,32], index: 0, kind: input, shape index: {}]
  %s1 = inlined_call_operand.vmem [shape: f32[1,32], index: 1, kind: input, shape index: {}]
  %s2 = inlined_call_operand.vmem [shape: f32[1,32], index: 2, kind: input, shape index: {}]
  %s3 = inlined_call_operand.vmem [shape: f32[32,128], index: 3, kind: input, shape index: {}]
  %s4 = inlined_call_operand.vmem [shape: f32[1,128], index: 4, kind: input, shape index: {}]
  %s5 = inlined_call_operand.vmem [shape: f32[32,128], index: 5, kind: input, shape index: {}]
  %s6 = inlined_call_operand.vmem [shape: f32[1,128], index: 6, kind: input, shape index: {}]
  %s7 = inlined_call_operand.vmem [shape: f32[32,128], index: 7, kind: output, shape index: {}]
  %s8 = sld [smem:[#allocation0]]
  $region38: #{transformer_block.18} parent=0
    _
  %s10 = ssub.s32 1, %s8
  %s11 = scalar_select 0, %s10, %s8
  // Predicated region
  $region2: #{transformer_block.18} parent=0 // pred_check
    _
  $region3: #{transformer_block.18} parent=0 // pred_check_branch
    %13 = sbr.rel (0) target = $region5
  $region4: #{transformer_block.18} parent=0 // pred_region
    _
  $region5: #{transformer_block.18} parent=0 // pred_fallthru
    _
  // Predicated region
  $region6: #{transformer_block.18} parent=0 // pred_check
    _
  $region7: #{transformer_block.18} parent=0 // pred_check_branch
    %15 = sbr.rel (0) target = $region9
  $region8: #{transformer_block.18} parent=0 // pred_region
    _
  $region9: #{transformer_block.18} parent=0 // pred_fallthru
    _
  // Predicated region
  $region10: #{transformer_block.18} parent=0 // pred_check
    _
  $region11: #{transformer_block.18} parent=0 // pred_check_branch
    %17 = sbr.rel (0) target = $region13
  $region12: #{transformer_block.18} parent=0 // pred_region
    _
  $region13: #{transformer_block.18} parent=0 // pred_fallthru
    _
  // Predicated region
  $region14: #{transformer_block.18} parent=0 // pred_check
    _
  $region15: #{transformer_block.18} parent=0 // pred_check_branch
    %19 = sbr.rel (0) target = $region17
  $region16: #{transformer_block.18} parent=0 // pred_region
    _
  $region17: #{transformer_block.18} parent=0 // pred_fallthru
    _
  // Predicated region
  $region18: #{transformer_block.18} parent=0 // pred_check
    _
  $region19: #{transformer_block.18} parent=0 // pred_check_branch
    %21 = sbr.rel (0) target = $region21
  $region20: #{transformer_block.18} parent=0 // pred_region
    _
  $region21: #{transformer_block.18} parent=0 // pred_fallthru
    _
  // Predicated region
  $region22: #{transformer_block.18} parent=0 // pred_check
    _
  $region23: #{transformer_block.18} parent=0 // pred_check_branch
    %23 = sbr.rel (0) target = $region25
  $region24: #{transformer_block.18} parent=0 // pred_region
    _
  $region25: #{transformer_block.18} parent=0 // pred_fallthru
    _
  // Predicated region
  $region26: #{transformer_block.18} parent=0 // pred_check
    _
  $region27: #{transformer_block.18} parent=0 // pred_check_branch
    %25 = sbr.rel (0) target = $region29
  $region28: #{transformer_block.18} parent=0 // pred_region
    _
  $region29: #{transformer_block.18} parent=0 // pred_fallthru
    _
  %v26 = vld [vmem:[%s0] sm:$0xff]
  %v27 = vld [vmem:[%s0 + $0x8] sm:$0xff]
  %v28 = vld [vmem:[%s0 + $0x10] sm:$0xff]
  %v29 = vld [vmem:[%s0 + $0x18] sm:$0xff]
  %v30 = vld [vmem:[%s1] sm:$0x1]
  %v31 = vld [vmem:[%s2] sm:$0x1]
  %vm32 = vcmask 261120
  %v33 = vsel %vm32, %v26, 0.0
  %34 = vadd.xlane.f32.xlu0 %v33
  %v35 = vpop.xlane.xlu0 %34
  %v36 = vsel %vm32, %v27, 0.0
  %37 = vadd.xlane.f32.xlu0 %v36
  %v38 = vpop.xlane.xlu0 %37
  %v39 = vsel %vm32, %v28, 0.0
  %40 = vadd.xlane.f32.xlu0 %v39
  %v41 = vpop.xlane.xlu0 %40
  %v42 = vsel %vm32, %v29, 0.0
  %43 = vadd.xlane.f32.xlu0 %v42
  %v44 = vpop.xlane.xlu0 %43
  %v45 = vrcp.pop 32.0
  %v46 = vmul.f32 %v35, %v45
  %v47 = vmul.f32 %v38, %v45
  %v48 = vmul.f32 %v41, %v45
  %v49 = vmul.f32 %v44, %v45
  %v50 = vsub.f32 %v26, %v46
  %v51 = vsub.f32 %v27, %v47
  %v52 = vsub.f32 %v28, %v48
  %v53 = vsub.f32 %v29, %v49
  %v54 = vmul.f32 %v50, %v50
  %v55 = vmul.f32 %v51, %v51
  %v56 = vmul.f32 %v52, %v52
  %v57 = vmul.f32 %v53, %v53
  %v58 = vsel %vm32, %v54, 0.0
  %59 = vadd.xlane.f32.xlu0 %v58
  %v60 = vpop.xlane.xlu0 %59
  %v61 = vsel %vm32, %v55, 0.0
  %62 = vadd.xlane.f32.xlu0 %v61
  %v63 = vpop.xlane.xlu0 %62
  %v64 = vsel %vm32, %v56, 0.0
  %65 = vadd.xlane.f32.xlu0 %v64
  %v66 = vpop.xlane.xlu0 %65
  %v67 = vsel %vm32, %v57, 0.0
  %68 = vadd.xlane.f32.xlu0 %v67
  %v69 = vpop.xlane.xlu0 %68
  %v70 = vmul.f32 %v60, %v45
  %v71 = vmul.f32 %v63, %v45
  %v72 = vmul.f32 %v66, %v45
  %v73 = vmul.f32 %v69, %v45
  %v74 = vadd.f32 %v70, 1e-05
  %v75 = vadd.f32 %v71, 1e-05
  %v76 = vadd.f32 %v72, 1e-05
  %v77 = vadd.f32 %v73, 1e-05
  %v78 = vrsqrt.pop %v74
  %v79 = vrsqrt.pop %v75
  %v80 = vrsqrt.pop %v76
  %v81 = vrsqrt.pop %v77
  %v82 = vmul.f32 %v50, %v78
  %v83 = vmul.f32 %v51, %v79
  %v84 = vmul.f32 %v52, %v80
  %v85 = vmul.f32 %v53, %v81
  %v87 = vlaneseq
  %v88 = vshrl.u32 %v87, 7
  %v89 = vsub.s32 0, %v88
  %v90 = vrot.slane %v30, %v89
  %v92 = vmul.f32 %v82, %v90
  %v93 = vmul.f32 %v83, %v90
  %v94 = vmul.f32 %v84, %v90
  %v95 = vmul.f32 %v85, %v90
  %v97 = vlaneseq
  %v98 = vshrl.u32 %v97, 7
  %v99 = vsub.s32 0, %v98
  %v100 = vrot.slane %v31, %v99
  %v102 = vadd.f32 %v92, %v100
  %v103 = vadd.f32 %v93, %v100
  %v104 = vadd.f32 %v94, %v100
  %v105 = vadd.f32 %v95, %v100
  %v106 = vld [vmem:[%s3] sm:$0xff]
  %v107 = vld [vmem:[%s3 + $0x8] sm:$0xff]
  %v108 = vld [vmem:[%s3 + $0x10] sm:$0xff]
  %v109 = vld [vmem:[%s3 + $0x18] sm:$0xff]
  %v110 = vld [vmem:[%s4] sm:$0x1]
  %v112 = vlaneseq
  %v113 = vshrl.u32 %v112, 7
  %v114 = vsub.s32 0, %v113
  %v115 = vrot.slane %v110, %v114
  %v118 = vsel %vm32, %v102, 0
  %v121 = vsel %vm32, %v103, 0
  %v124 = vsel %vm32, %v104, 0
  %v127 = vsel %vm32, %v105, 0
  %129 = vmatprep.subr.mxu0 0.0
  %130 = vmatpush1.msra.mxu0 %v106
  %131 = vmatprep.subr.mxu0 0.0
  %132 = vmatpush1.msra.mxu0 %v107
  %133 = vmatprep.subr.mxu0 0.0
  %134 = vmatpush1.msra.mxu0 %v108
  %135 = vmatprep.subr.mxu0 0.0
  %136 = vmatpush1.msra.mxu0 %v109
  %137 = vmatprep.subr.mxu0 0.0
  %138 = vmatpush1.msra.mxu0 0.0
  %139 = vmatprep.subr.mxu0 0.0
  %140 = vmatpush1.msra.mxu0 0.0
  %141 = vmatprep.subr.mxu0 0.0
  %142 = vmatpush1.msra.mxu0 0.0
  %143 = vmatprep.subr.mxu0 0.0
  %144 = vmatpush1.msra.mxu0 0.0
  %145 = vmatprep.subr.mxu0 0.0
  %146 = vmatpush1.msra.mxu0 0.0
  %147 = vmatprep.subr.mxu0 0.0
  %148 = vmatpush1.msra.mxu0 0.0
  %149 = vmatprep.subr.mxu0 0.0
  %150 = vmatpush1.msra.mxu0 0.0
  %151 = vmatprep.subr.mxu0 0.0
  %152 = vmatpush1.msra.mxu0 0.0
  %153 = vmatprep.subr.mxu0 0.0
  %154 = vmatpush1.msra.mxu0 0.0
  %155 = vmatprep.subr.mxu0 0.0
  %156 = vmatpush1.msra.mxu0 0.0
  %157 = vmatprep.subr.mxu0 0.0
  %158 = vmatpush1.msra.mxu0 0.0
  %159 = vmatprep.subr.mxu0 0.0
  %160 = vmatpush1.msra.mxu0 0.0
  %161 = vmatprep.subr.mxu0 0.0
  %162 = vmatpush1.msra.mxu0 0.0
  %163 = vmatprep.subr.mxu0 0.0
  %164 = vmatpush1.msra.mxu0 0.0
  %165 = vmatprep.subr.mxu0 0.0
  %166 = vmatpush1.msra.mxu0 0.0
  %167 = vmatprep.subr.mxu0 0.0
  %168 = vmatpush1.msra.mxu0 0.0
  %169 = vmatprep.subr.mxu0 0.0
  %170 = vmatpush1.msra.mxu0 0.0
  %171 = vmatprep.subr.mxu0 0.0
  %172 = vmatpush1.msra.mxu0 0.0
  %173 = vmatprep.subr.mxu0 0.0
  %174 = vmatpush1.msra.mxu0 0.0
  %175 = vmatprep.subr.mxu0 0.0
  %176 = vmatpush1.msra.mxu0 0.0
  %177 = vmatprep.subr.mxu0 0.0
  %178 = vmatpush1.msra.mxu0 0.0
  %179 = vmatprep.subr.mxu0 0.0
  %180 = vmatpush1.msra.mxu0 0.0
  %181 = vmatprep.subr.mxu0 0.0
  %182 = vmatpush1.msra.mxu0 0.0
  %183 = vmatprep.subr.mxu0 0.0
  %184 = vmatpush1.msra.mxu0 0.0
  %185 = vmatprep.subr.mxu0 0.0
  %186 = vmatpush1.msra.mxu0 0.0
  %187 = vmatprep.subr.mxu0 0.0
  %188 = vmatpush1.msra.mxu0 0.0
  %189 = vmatprep.subr.mxu0 0.0
  %190 = vmatpush1.msra.mxu0 0.0
  %191 = vmatprep.subr.mxu0 0.0
  %192 = vmatpush1.msra.mxu0 0.0
  %193 = vmatprep.mubr.f32.mxu0 0.0
  %194 = vmatmul.mubr.f32.gmra.mrb[0].mxu0 %v118
  %v195 = vpop.f32.mrb[0].mxu0
  %v196 = vadd.f32 %v115, %v195
  %v197 = vpop.f32.mrb[0].mxu0
  %198 = vmatprep.mubr.f32.mxu0 0.0
  %199 = vmatmul.mubr.f32.gmra.mrb[0].mxu0 %v121
  %v200 = vpop.f32.mrb[0].mxu0
  %v201 = vadd.f32 %v115, %v200
  %v202 = vpop.f32.mrb[0].mxu0
  %203 = vmatprep.mubr.f32.mxu0 0.0
  %204 = vmatmul.mubr.f32.gmra.mrb[0].mxu0 %v124
  %v205 = vpop.f32.mrb[0].mxu0
  %v206 = vadd.f32 %v115, %v205
  %v207 = vpop.f32.mrb[0].mxu0
  %208 = vmatprep.mubr.f32.mxu0 0.0
  %209 = vmatmul.mubr.f32.gmra.mrb[0].mxu0 %v127
  %v210 = vpop.f32.mrb[0].mxu0
  %v211 = vadd.f32 %v115, %v210
  %v212 = vpop.f32.mrb[0].mxu0
  %213 = vdwg.mxu0
  %v214 = vld [vmem:[%s5] sm:$0xff]
  %v215 = vld [vmem:[%s5 + $0x8] sm:$0xff]
  %v216 = vld [vmem:[%s5 + $0x10] sm:$0xff]
  %v217 = vld [vmem:[%s5 + $0x18] sm:$0xff]
  %v218 = vld [vmem:[%s6] sm:$0x1]
  %v220 = vlaneseq
  %v221 = vshrl.u32 %v220, 7
  %v222 = vsub.s32 0, %v221
  %v223 = vrot.slane %v218, %v222
  %225 = vmatprep.subr.mxu0 0.0
  %226 = vmatpush1.msra.mxu0 %v214
  %227 = vmatprep.subr.mxu0 0.0
  %228 = vmatpush1.msra.mxu0 %v215
  %229 = vmatprep.subr.mxu0 0.0
  %230 = vmatpush1.msra.mxu0 %v216
  %231 = vmatprep.subr.mxu0 0.0
  %232 = vmatpush1.msra.mxu0 %v217
  %233 = vmatprep.subr.mxu0 0.0
  %234 = vmatpush1.msra.mxu0 0.0
  %235 = vmatprep.subr.mxu0 0.0
  %236 = vmatpush1.msra.mxu0 0.0
  %237 = vmatprep.subr.mxu0 0.0
  %238 = vmatpush1.msra.mxu0 0.0
  %239 = vmatprep.subr.mxu0 0.0
  %240 = vmatpush1.msra.mxu0 0.0
  %241 = vmatprep.subr.mxu0 0.0
  %242 = vmatpush1.msra.mxu0 0.0
  %243 = vmatprep.subr.mxu0 0.0
  %244 = vmatpush1.msra.mxu0 0.0
  %245 = vmatprep.subr.mxu0 0.0
  %246 = vmatpush1.msra.mxu0 0.0
  %247 = vmatprep.subr.mxu0 0.0
  %248 = vmatpush1.msra.mxu0 0.0
  %249 = vmatprep.subr.mxu0 0.0
  %250 = vmatpush1.msra.mxu0 0.0
  %251 = vmatprep.subr.mxu0 0.0
  %252 = vmatpush1.msra.mxu0 0.0
  %253 = vmatprep.subr.mxu0 0.0
  %254 = vmatpush1.msra.mxu0 0.0
  %255 = vmatprep.subr.mxu0 0.0
  %256 = vmatpush1.msra.mxu0 0.0
  %257 = vmatprep.subr.mxu0 0.0
  %258 = vmatpush1.msra.mxu0 0.0
  %259 = vmatprep.subr.mxu0 0.0
  %260 = vmatpush1.msra.mxu0 0.0
  %261 = vmatprep.subr.mxu0 0.0
  %262 = vmatpush1.msra.mxu0 0.0
  %263 = vmatprep.subr.mxu0 0.0
  %264 = vmatpush1.msra.mxu0 0.0
  %265 = vmatprep.subr.mxu0 0.0
  %266 = vmatpush1.msra.mxu0 0.0
  %267 = vmatprep.subr.mxu0 0.0
  %268 = vmatpush1.msra.mxu0 0.0
  %269 = vmatprep.subr.mxu0 0.0
  %270 = vmatpush1.msra.mxu0 0.0
  %271 = vmatprep.subr.mxu0 0.0
  %272 = vmatpush1.msra.mxu0 0.0
  %273 = vmatprep.subr.mxu0 0.0
  %274 = vmatpush1.msra.mxu0 0.0
  %275 = vmatprep.subr.mxu0 0.0
  %276 = vmatpush1.msra.mxu0 0.0
  %277 = vmatprep.subr.mxu0 0.0
  %278 = vmatpush1.msra.mxu0 0.0
  %279 = vmatprep.subr.mxu0 0.0
  %280 = vmatpush1.msra.mxu0 0.0
  %281 = vmatprep.subr.mxu0 0.0
  %282 = vmatpush1.msra.mxu0 0.0
  %283 = vmatprep.subr.mxu0 0.0
  %284 = vmatpush1.msra.mxu0 0.0
  %285 = vmatprep.subr.mxu0 0.0
  %286 = vmatpush1.msra.mxu0 0.0
  %287 = vmatprep.subr.mxu0 0.0
  %288 = vmatpush1.msra.mxu0 0.0
  %289 = vmatprep.mubr.f32.mxu0 0.0
  %290 = vmatmul.mubr.f32.gmra.mrb[0].mxu0 %v118
  %v291 = vpop.f32.mrb[0].mxu0
  %v292 = vadd.f32 %v223, %v291
  %v293 = vpop.f32.mrb[0].mxu0
  %294 = vmatprep.mubr.f32.mxu0 0.0
  %295 = vmatmul.mubr.f32.gmra.mrb[0].mxu0 %v121
  %v296 = vpop.f32.mrb[0].mxu0
  %v297 = vadd.f32 %v223, %v296
  %v298 = vpop.f32.mrb[0].mxu0
  %299 = vmatprep.mubr.f32.mxu0 0.0
  %300 = vmatmul.mubr.f32.gmra.mrb[0].mxu0 %v124
  %v301 = vpop.f32.mrb[0].mxu0
  %v302 = vadd.f32 %v223, %v301
  %v303 = vpop.f32.mrb[0].mxu0
  %304 = vmatprep.mubr.f32.mxu0 0.0
  %305 = vmatmul.mubr.f32.gmra.mrb[0].mxu0 %v127
  %v306 = vpop.f32.mrb[0].mxu0
  %v307 = vadd.f32 %v223, %v306
  %v308 = vpop.f32.mrb[0].mxu0
  %309 = vdwg.mxu0
  %v310 = vmul.f32 %v292, 0.5
  %v311 = vmul.f32 %v297, 0.5
  %v312 = vmul.f32 %v302, 0.5
  %v313 = vmul.f32 %v307, 0.5
  %v314 = vmul.f32 %v292, 0.70710677
  %v315 = vmul.f32 %v297, 0.70710677
  %v316 = vmul.f32 %v302, 0.70710677
  %v317 = vmul.f32 %v307, 0.70710677
  %v318 = vmax.f32 %v314, -3.832507
  %v319 = vmax.f32 %v315, -3.832507
  %v320 = vmax.f32 %v316, -3.832507
  %v321 = vmax.f32 %v317, -3.832507
  %v322 = vmin.f32 %v318, 3.832507
  %v323 = vmin.f32 %v319, 3.832507
  %v324 = vmin.f32 %v320, 3.832507
  %v325 = vmin.f32 %v321, 3.832507
  %v326 = vmul.f32 %v322, %v322
  %v327 = vmul.f32 %v323, %v323
  %v328 = vmul.f32 %v324, %v324
  %v329 = vmul.f32 %v325, %v325
  %v330 = vmul.f32 %v326, -2.7261424e-10
  %v331 = vmul.f32 %v327, -2.7261424e-10
  %v332 = vmul.f32 %v328, -2.7261424e-10
  %v333 = vmul.f32 %v329, -2.7261424e-10
  %v334 = vadd.f32 %v330, 2.7706815e-08
  %v335 = vadd.f32 %v331, 2.7706815e-08
  %v336 = vadd.f32 %v332, 2.7706815e-08
  %v337 = vadd.f32 %v333, 2.7706815e-08
  %v338 = vmul.f32 %v334, %v326
  %v339 = vmul.f32 %v335, %v327
  %v340 = vmul.f32 %v336, %v328
  %v341 = vmul.f32 %v337, %v329
  %v342 = vadd.f32 %v338, -2.101024e-06
  %v343 = vadd.f32 %v339, -2.101024e-06
  %v344 = vadd.f32 %v340, -2.101024e-06
  %v345 = vadd.f32 %v341, -2.101024e-06
  %v346 = vmul.f32 %v342, %v326
  %v347 = vmul.f32 %v343, %v327
  %v348 = vmul.f32 %v344, %v328
  %v349 = vmul.f32 %v345, %v329
  %v350 = vadd.f32 %v346, -5.6925062e-05
  %v351 = vadd.f32 %v347, -5.6925062e-05
  %v352 = vadd.f32 %v348, -5.6925062e-05
  %v353 = vadd.f32 %v349, -5.6925062e-05
  %v354 = vmul.f32 %v350, %v326
  %v355 = vmul.f32 %v351, %v327
  %v356 = vmul.f32 %v352, %v328
  %v357 = vmul.f32 %v353, %v329
  %v358 = vadd.f32 %v354, -0.00073499064
  %v359 = vadd.f32 %v355, -0.00073499064
  %v360 = vadd.f32 %v356, -0.00073499064
  %v361 = vadd.f32 %v357, -0.00073499064
  %v362 = vmul.f32 %v358, %v326
  %v363 = vmul.f32 %v359, %v327
  %v364 = vmul.f32 %v360, %v328
  %v365 = vmul.f32 %v361, %v329
  %v366 = vadd.f32 %v362, -0.0029546
  %v367 = vadd.f32 %v363, -0.0029546
  %v368 = vadd.f32 %v364, -0.0029546
  %v369 = vadd.f32 %v365, -0.0029546
  %v370 = vmul.f32 %v366, %v326
  %v371 = vmul.f32 %v367, %v327
  %v372 = vmul.f32 %v368, %v328
  %v373 = vmul.f32 %v369, %v329
  %v374 = vadd.f32 %v370, -0.016096033
  %v375 = vadd.f32 %v371, -0.016096033
  %v376 = vadd.f32 %v372, -0.016096033
  %v377 = vadd.f32 %v373, -0.016096033
  %v378 = vmul.f32 %v374, %v322
  %v379 = vmul.f32 %v375, %v323
  %v380 = vmul.f32 %v376, %v324
  %v381 = vmul.f32 %v377, %v325
  %v382 = vmul.f32 %v326, -1.45660715e-05
  %v383 = vmul.f32 %v327, -1.45660715e-05
  %v384 = vmul.f32 %v328, -1.45660715e-05
  %v385 = vmul.f32 %v329, -1.45660715e-05
  %v386 = vadd.f32 %v382, -0.00021337405
  %v387 = vadd.f32 %v383, -0.00021337405
  %v388 = vadd.f32 %v384, -0.00021337405
  %v389 = vadd.f32 %v385, -0.00021337405
  %v390 = vmul.f32 %v386, %v326
  %v391 = vmul.f32 %v387, %v327
  %v392 = vmul.f32 %v388, %v328
  %v393 = vmul.f32 %v389, %v329
  %v394 = vadd.f32 %v390, -0.001682827
  %v395 = vadd.f32 %v391, -0.001682827
  %v396 = vadd.f32 %v392, -0.001682827
  %v397 = vadd.f32 %v393, -0.001682827
  %v398 = vmul.f32 %v394, %v326
  %v399 = vmul.f32 %v395, %v327
  %v400 = vmul.f32 %v396, %v328
  %v401 = vmul.f32 %v397, %v329
  %v402 = vadd.f32 %v398, -0.0073733293
  %v403 = vadd.f32 %v399, -0.0073733293
  %v404 = vadd.f32 %v400, -0.0073733293
  %v405 = vadd.f32 %v401, -0.0073733293
  %v406 = vmul.f32 %v402, %v326
  %v407 = vmul.f32 %v403, %v327
  %v408 = vmul.f32 %v404, %v328
  %v409 = vmul.f32 %v405, %v329
  %v410 = vadd.f32 %v406, -0.014264739
  %v411 = vadd.f32 %v407, -0.014264739
  %v412 = vadd.f32 %v408, -0.014264739
  %v413 = vadd.f32 %v409, -0.014264739
  %v414 = vrcp.pop %v410
  %v415 = vmul.f32 %v378, %v414
  %v416 = vrcp.pop %v411
  %v417 = vmul.f32 %v379, %v416
  %v418 = vrcp.pop %v412
  %v419 = vmul.f32 %v380, %v418
  %v420 = vrcp.pop %v413
  %v421 = vmul.f32 %v381, %v420
  %v422 = vadd.f32 %v415, 1.0
  %v423 = vadd.f32 %v417, 1.0
  %v424 = vadd.f32 %v419, 1.0
  %v425 = vadd.f32 %v421, 1.0
  %v426 = vmul.f32 %v310, %v422
  %v427 = vmul.f32 %v311, %v423
  %v428 = vmul.f32 %v312, %v424
  %v429 = vmul.f32 %v313, %v425
  %v430 = vmul.f32 %v196, %v426
  %v431 = vmul.f32 %v201, %v427
  %v432 = vmul.f32 %v206, %v428
  %v433 = vmul.f32 %v211, %v429
  %434 = vst [vmem:[%s7] sm:$0xff] %v430
  %435 = vst [vmem:[%s7 + $0x8] sm:$0xff] %v431
  %436 = vst [vmem:[%s7 + $0x10] sm:$0xff] %v432
  %437 = vst [vmem:[%s7 + $0x18] sm:$0xff] %v433
  // Predicated region
  $region30: #{transformer_block.18} parent=0 // pred_check
    _
  $region31: #{transformer_block.18} parent=0 // pred_check_branch
    %439 = sbr.rel (0) target = $region33
  $region32: #{transformer_block.18} parent=0 // pred_region
    _
  $region33: #{transformer_block.18} parent=0 // pred_fallthru
    _
  // Predicated region
  $region34: #{transformer_block.18} parent=0 // pred_check
    _
  $region35: #{transformer_block.18} parent=0 // pred_check_branch
    %441 = sbr.rel (0) target = $region37
  $region36: #{transformer_block.18} parent=0 // pred_region
    _
  $region37: #{transformer_block.18} parent=0 // pred_fallthru
    _

// kernel: transformer_block.19
$region0: #{transformer_block.19}
  #allocation0 [shape = 'u32[]', space=smem, size = 0x4, offset = 0x4, fixed_abs, tag = 'smem constant byte address 0x4 - core index']
  #allocation1 [shape = 'u32[144,128]{1,0:T(1,128)}', space=vmem, size = 0x12000, scoped, tag = 'internal scratch']
  %s0 = inlined_call_operand.vmem [shape: f32[32,128], index: 0, kind: input, shape index: {}]
  %s1 = inlined_call_operand.vmem [shape: f32[128,32], index: 1, kind: input, shape index: {}]
  %s2 = inlined_call_operand.vmem [shape: f32[1,32], index: 2, kind: input, shape index: {}]
  %s3 = inlined_call_operand.vmem [shape: f32[32,32], index: 3, kind: input, shape index: {}, may-alias: {3,4}]
  %s4 = inlined_call_operand.vmem [shape: f32[32,32], index: 4, kind: output, shape index: {}, may-alias: {3,4}]
  %s5 = sld [smem:[#allocation0]]
  $region26: #{transformer_block.19} parent=0
    _
  %s7 = ssub.s32 1, %s5
  %s8 = scalar_select 0, %s7, %s5
  // Predicated region
  $region2: #{transformer_block.19} parent=0 // pred_check
    _
  $region3: #{transformer_block.19} parent=0 // pred_check_branch
    %10 = sbr.rel (0) target = $region5
  $region4: #{transformer_block.19} parent=0 // pred_region
    _
  $region5: #{transformer_block.19} parent=0 // pred_fallthru
    _
  // Predicated region
  $region6: #{transformer_block.19} parent=0 // pred_check
    _
  $region7: #{transformer_block.19} parent=0 // pred_check_branch
    %12 = sbr.rel (0) target = $region9
  $region8: #{transformer_block.19} parent=0 // pred_region
    _
  $region9: #{transformer_block.19} parent=0 // pred_fallthru
    _
  // Predicated region
  $region10: #{transformer_block.19} parent=0 // pred_check
    _
  $region11: #{transformer_block.19} parent=0 // pred_check_branch
    %14 = sbr.rel (0) target = $region13
  $region12: #{transformer_block.19} parent=0 // pred_region
    _
  $region13: #{transformer_block.19} parent=0 // pred_fallthru
    _
  // Predicated region
  $region14: #{transformer_block.19} parent=0 // pred_check
    _
  $region15: #{transformer_block.19} parent=0 // pred_check_branch
    %16 = sbr.rel (0) target = $region17
  $region16: #{transformer_block.19} parent=0 // pred_region
    _
  $region17: #{transformer_block.19} parent=0 // pred_fallthru
    _
  %v17 = vld [vmem:[%s0] sm:$0xff]
  %v18 = vld [vmem:[%s0 + $0x8] sm:$0xff]
  %v19 = vld [vmem:[%s0 + $0x10] sm:$0xff]
  %v20 = vld [vmem:[%s0 + $0x18] sm:$0xff]
  %v21 = vld [vmem:[%s1] sm:$0xff]
  %v22 = vld [vmem:[%s1 + $0x8] sm:$0xff]
  %v23 = vld [vmem:[%s1 + $0x10] sm:$0xff]
  %v24 = vld [vmem:[%s1 + $0x18] sm:$0xff]
  %v25 = vld [vmem:[%s1 + $0x20] sm:$0xff]
  %v26 = vld [vmem:[%s1 + $0x28] sm:$0xff]
  %v27 = vld [vmem:[%s1 + $0x30] sm:$0xff]
  %v28 = vld [vmem:[%s1 + $0x38] sm:$0xff]
  %v29 = vld [vmem:[%s1 + $0x40] sm:$0xff]
  %v30 = vld [vmem:[%s1 + $0x48] sm:$0xff]
  %v31 = vld [vmem:[%s1 + $0x50] sm:$0xff]
  %v32 = vld [vmem:[%s1 + $0x58] sm:$0xff]
  %v33 = vld [vmem:[%s1 + $0x60] sm:$0xff]
  %v34 = vld [vmem:[%s1 + $0x68] sm:$0xff]
  %v35 = vld [vmem:[%s1 + $0x70] sm:$0xff]
  %v36 = vld [vmem:[%s1 + $0x78] sm:$0xff]
  %v37 = vld [vmem:[%s2] sm:$0x1]
  %v39 = vlaneseq
  %v40 = vshrl.u32 %v39, 7
  %v41 = vsub.s32 0, %v40
  %v42 = vrot.slane %v37, %v41
  %44 = vmatprep.subr.mxu0 0.0
  %45 = vmatpush1.msra.mxu0 %v21
  %46 = vmatprep.subr.mxu0 0.0
  %47 = vmatpush1.msra.mxu0 %v22
  %48 = vmatprep.subr.mxu0 0.0
  %49 = vmatpush1.msra.mxu0 %v23
  %50 = vmatprep.subr.mxu0 0.0
  %51 = vmatpush1.msra.mxu0 %v24
  %52 = vmatprep.subr.mxu0 0.0
  %53 = vmatpush1.msra.mxu0 %v25
  %54 = vmatprep.subr.mxu0 0.0
  %55 = vmatpush1.msra.mxu0 %v26
  %56 = vmatprep.subr.mxu0 0.0
  %57 = vmatpush1.msra.mxu0 %v27
  %58 = vmatprep.subr.mxu0 0.0
  %59 = vmatpush1.msra.mxu0 %v28
  %60 = vmatprep.subr.mxu0 0.0
  %61 = vmatpush1.msra.mxu0 %v29
  %62 = vmatprep.subr.mxu0 0.0
  %63 = vmatpush1.msra.mxu0 %v30
  %64 = vmatprep.subr.mxu0 0.0
  %65 = vmatpush1.msra.mxu0 %v31
  %66 = vmatprep.subr.mxu0 0.0
  %67 = vmatpush1.msra.mxu0 %v32
  %68 = vmatprep.subr.mxu0 0.0
  %69 = vmatpush1.msra.mxu0 %v33
  %70 = vmatprep.subr.mxu0 0.0
  %71 = vmatpush1.msra.mxu0 %v34
  %72 = vmatprep.subr.mxu0 0.0
  %73 = vmatpush1.msra.mxu0 %v35
  %74 = vmatprep.subr.mxu0 0.0
  %75 = vmatpush1.msra.mxu0 %v36
  %76 = vmatprep.subr.mxu0 0.0
  %77 = vmatpush1.msra.mxu0 0.0
  %78 = vmatprep.subr.mxu0 0.0
  %79 = vmatpush1.msra.mxu0 0.0
  %80 = vmatprep.subr.mxu0 0.0
  %81 = vmatpush1.msra.mxu0 0.0
  %82 = vmatprep.subr.mxu0 0.0
  %83 = vmatpush1.msra.mxu0 0.0
  %84 = vmatprep.subr.mxu0 0.0
  %85 = vmatpush1.msra.mxu0 0.0
  %86 = vmatprep.subr.mxu0 0.0
  %87 = vmatpush1.msra.mxu0 0.0
  %88 = vmatprep.subr.mxu0 0.0
  %89 = vmatpush1.msra.mxu0 0.0
  %90 = vmatprep.subr.mxu0 0.0
  %91 = vmatpush1.msra.mxu0 0.0
  %92 = vmatprep.subr.mxu0 0.0
  %93 = vmatpush1.msra.mxu0 0.0
  %94 = vmatprep.subr.mxu0 0.0
  %95 = vmatpush1.msra.mxu0 0.0
  %96 = vmatprep.subr.mxu0 0.0
  %97 = vmatpush1.msra.mxu0 0.0
  %98 = vmatprep.subr.mxu0 0.0
  %99 = vmatpush1.msra.mxu0 0.0
  %100 = vmatprep.subr.mxu0 0.0
  %101 = vmatpush1.msra.mxu0 0.0
  %102 = vmatprep.subr.mxu0 0.0
  %103 = vmatpush1.msra.mxu0 0.0
  %104 = vmatprep.subr.mxu0 0.0
  %105 = vmatpush1.msra.mxu0 0.0
  %106 = vmatprep.subr.mxu0 0.0
  %107 = vmatpush1.msra.mxu0 0.0
  %108 = vmatprep.mubr.f32.mxu0 0.0
  %109 = vmatmul.mubr.f32.gmra.mrb[0].mxu0 %v17
  %v110 = vpop.f32.mrb[0].mxu0
  %v111 = vadd.f32 %v42, %v110
  %v112 = vpop.f32.mrb[0].mxu0
  %113 = vmatprep.mubr.f32.mxu0 0.0
  %114 = vmatmul.mubr.f32.gmra.mrb[0].mxu0 %v18
  %v115 = vpop.f32.mrb[0].mxu0
  %v116 = vadd.f32 %v42, %v115
  %v117 = vpop.f32.mrb[0].mxu0
  %118 = vmatprep.mubr.f32.mxu0 0.0
  %119 = vmatmul.mubr.f32.gmra.mrb[0].mxu0 %v19
  %v120 = vpop.f32.mrb[0].mxu0
  %v121 = vadd.f32 %v42, %v120
  %v122 = vpop.f32.mrb[0].mxu0
  %123 = vmatprep.mubr.f32.mxu0 0.0
  %124 = vmatmul.mubr.f32.gmra.mrb[0].mxu0 %v20
  %v125 = vpop.f32.mrb[0].mxu0
  %v126 = vadd.f32 %v42, %v125
  %v127 = vpop.f32.mrb[0].mxu0
  %128 = vdwg.mxu0
  %v129 = vld [vmem:[%s3] sm:$0xff]
  %v130 = vld [vmem:[%s3 + $0x8] sm:$0xff]
  %v131 = vld [vmem:[%s3 + $0x10] sm:$0xff]
  %v132 = vld [vmem:[%s3 + $0x18] sm:$0xff]
  %v133 = vadd.f32 %v111, %v129
  %v134 = vadd.f32 %v116, %v130
  %v135 = vadd.f32 %v121, %v131
  %v136 = vadd.f32 %v126, %v132
  %vm137 = vcmask 261120
  %138 = vst.msk [vmem:[%s4] sm:$0xff] %vm137, %v133
  %139 = vst.msk [vmem:[%s4 + $0x8] sm:$0xff] %vm137, %v134
  %140 = vst.msk [vmem:[%s4 + $0x10] sm:$0xff] %vm137, %v135
  %141 = vst.msk [vmem:[%s4 + $0x18] sm:$0xff] %vm137, %v136
  // Predicated region
  $region18: #{transformer_block.19} parent=0 // pred_check
    _
  $region19: #{transformer_block.19} parent=0 // pred_check_branch
    %143 = sbr.rel (0) target = $region21
  $region20: #{transformer_block.19} parent=0 // pred_region
    _
  $region21: #{transformer_block.19} parent=0 // pred_fallthru
    _
  // Predicated region
  $region22: #{transformer_block.19} parent=0 // pred_check
    _
  $region23: #{transformer_block.19} parent=0 // pred_check_branch
    %145 = sbr.rel (0) target = $region25
  $region24: #{transformer_block.19} parent=0 // pred_region
    _
  $region25: #{transformer_block.19} parent=0 // pred_fallthru
    _

</llo_original>
